<compile_context>
chip_gen: v7x
topology: tpu7x:2x2x1
jax: 0.10.0
libtpu: 0.0.40
codegen_flags: <defaults>
</compile_context>

<pallas_src>
import jax
import jax.numpy as jnp
from jax.experimental import pallas as pl
from jax.experimental.pallas import tpu as pltpu

EPS = 1e-5


def _layernorm(x, gamma, beta):
    # x: (..., D); gamma/beta: (1, D). PyTorch LayerNorm semantics (biased var).
    mean = jnp.mean(x, axis=-1, keepdims=True)
    xc = x - mean
    var = jnp.mean(xc * xc, axis=-1, keepdims=True)
    inv = jax.lax.rsqrt(var + EPS)
    return (xc * inv) * gamma + beta


def _gelu(x):
    # Exact (erf-based) GELU, matching torch.nn.GELU default.
    return 0.5 * x * (1.0 + jax.lax.erf(x * 0.7071067811865476))


def mixer_block_kernel(
    x_ref,                          # (Bt, P, D)
    g1_ref, b1_ref,                 # norm1 gamma/beta        (1, D)
    wt1_ref, bt1_ref,               # token-mix fc1: (T, P), (T, 1)
    wt2_ref, bt2_ref,               # token-mix fc2: (P, T), (P, 1)
    g2_ref, b2_ref,                 # norm2 gamma/beta        (1, D)
    wc1_ref, bc1_ref,               # channel-mix fc1: (D, C), (1, C)
    wc2_ref, bc2_ref,               # channel-mix fc2: (C, D), (1, D)
    o_ref,                          # (Bt, P, D)
):
    x = x_ref[...].astype(jnp.float32)          # (Bt, P, D)
    bt, p, d = x.shape
    t = wt1_ref.shape[0]

    # ---- token mixing branch (no transposes) ----
    y = _layernorm(x, g1_ref[...], b1_ref[...])                     # (Bt, P, D)
    # Hoisted weight broadcasts (once per grid step).
    wt1_b = jnp.broadcast_to(wt1_ref[...], (bt, t, p))              # (Bt, T, P)
    wt2_b = jnp.broadcast_to(wt2_ref[...], (bt, p, t))              # (Bt, P, T)
    # h[b,t,d] = sum_p wt1[t,p] * y[b,p,d]   -> output order matches dot_general, no transpose
    h = jnp.einsum("btp,bpd->btd", wt1_b, y,
                   preferred_element_type=jnp.float32)              # (Bt, T, D)
    h = _gelu(h + bt1_ref[...])                                     # (T,1) bias bcast over D
    # z[b,p,d] = sum_t wt2[p,t] * h[b,t,d]
    z = jnp.einsum("bpt,btd->bpd", wt2_b, h,
                   preferred_element_type=jnp.float32)              # (Bt, P, D)
    x = x + z + bt2_ref[...]                                        # residual, (P,1) bias

    # ---- channel mixing branch (flattened to fill MXU M dim) ----
    y = _layernorm(x, g2_ref[...], b2_ref[...])                     # (Bt, P, D)
    y2 = y.reshape(bt * p, d)                                       # layout-preserving
    h2 = jnp.dot(y2, wc1_ref[...],
                 preferred_element_type=jnp.float32) + bc1_ref[...]  # (Bt*P, C)
    h2 = _gelu(h2)
    z2 = jnp.dot(h2, wc2_ref[...],
                 preferred_element_type=jnp.float32) + bc2_ref[...]  # (Bt*P, D)
    x = x + z2.reshape(bt, p, d)

    o_ref[...] = x.astype(o_ref.dtype)


def _pick_batch_block(b, target):
    for cand in (target, 8, 4, 2, 1):
        if cand <= b and b % cand == 0:
            return cand
    return 1


def mixer_block(x, params, *, batch_block=8):
    B, P, D = x.shape
    T = params["wt1"].shape[0]
    C = params["wc1"].shape[1]
    Bt = _pick_batch_block(B, batch_block)

    # TODO(synk): if D/T/C are not multiples of 128, pad lane dims in the
    # wrapper (with masked LayerNorm) for unmasked full-lane stores.

    def full(shape):
        nd = len(shape)
        return pl.BlockSpec(shape, lambda b, _nd=nd: (0,) * _nd)

    in_specs = [
        pl.BlockSpec((Bt, P, D), lambda b: (b, 0, 0)),   # x
        full((1, D)), full((1, D)),                      # norm1
        full((T, P)), full((T, 1)),                      # token fc1
        full((P, T)), full((P, 1)),                      # token fc2
        full((1, D)), full((1, D)),                      # norm2
        full((D, C)), full((1, C)),                      # channel fc1
        full((C, D)), full((1, D)),                      # channel fc2
    ]

    # Advisory cost estimate so XLA schedules neighbors sensibly.
    flops = 4 * B * P * D * T + 4 * B * P * D * C
    transcendentals = B * T * D + B * P * C              # one erf per GELU elem
    itemsize = x.dtype.itemsize
    bytes_accessed = itemsize * 2 * B * P * D + sum(
        int(v.size) * v.dtype.itemsize for v in params.values())

    return pl.pallas_call(
        mixer_block_kernel,
        out_shape=jax.ShapeDtypeStruct((B, P, D), x.dtype),
        grid=(B // Bt,),
        in_specs=in_specs,
        out_specs=pl.BlockSpec((Bt, P, D), lambda b: (b, 0, 0)),
        compiler_params=pltpu.CompilerParams(
            dimension_semantics=("parallel",)),
        cost_estimate=pl.CostEstimate(
            flops=flops,
            transcendentals=transcendentals,
            bytes_accessed=bytes_accessed),
    )(
        x,
        params["g1"], params["b1"],
        params["wt1"], params["bt1"],
        params["wt2"], params["bt2"],
        params["g2"], params["b2"],
        params["wc1"], params["bc1"],
        params["wc2"], params["bc2"],
    )


def make_params(key, d_x, num_patches, d_tokens_mlp, d_channels_mlp):
    ks = jax.random.split(key, 8)
    s = 0.02
    f32 = jnp.float32
    return {
        # norm1 / norm2 (LayerNorm over d_x)
        "g1": jnp.ones((1, d_x), f32),
        "b1": jnp.zeros((1, d_x), f32),
        "g2": jnp.ones((1, d_x), f32),
        "b2": jnp.zeros((1, d_x), f32),
        # token mixing MLP: num_patches -> d_tokens_mlp -> num_patches
        # (weights in PyTorch (out, in) layout)
        "wt1": s * jax.random.normal(ks[0], (d_tokens_mlp, num_patches), f32),
        "bt1": s * jax.random.normal(ks[1], (d_tokens_mlp, 1), f32),
        "wt2": s * jax.random.normal(ks[2], (num_patches, d_tokens_mlp), f32),
        "bt2": s * jax.random.normal(ks[3], (num_patches, 1), f32),
        # channel mixing MLP: d_x -> d_channels_mlp -> d_x ((in, out) layout)
        "wc1": s * jax.random.normal(ks[4], (d_x, d_channels_mlp), f32),
        "bc1": s * jax.random.normal(ks[5], (1, d_channels_mlp), f32),
        "wc2": s * jax.random.normal(ks[6], (d_channels_mlp, d_x), f32),
        "bc2": s * jax.random.normal(ks[7], (1, d_x), f32),
    }


def mixer_block_ref(x, p):
    # Pure-JAX reference mirroring the PyTorch forward (with transposes).
    def ln(v, g, b):
        m = jnp.mean(v, -1, keepdims=True)
        var = jnp.mean((v - m) ** 2, -1, keepdims=True)
        return (v - m) / jnp.sqrt(var + EPS) * g + b

    gelu = lambda v: jax.nn.gelu(v, approximate=False)

    # token mixing: y (B, D, P); PyTorch Linear -> y @ W.T + b
    y = ln(x, p["g1"], p["b1"]).transpose(0, 2, 1)
    y = gelu(y @ p["wt1"].T + p["bt1"].reshape(-1))
    y = y @ p["wt2"].T + p["bt2"].reshape(-1)
    x = x + y.transpose(0, 2, 1)
    # channel mixing (weights stored (in, out))
    y = ln(x, p["g2"], p["b2"])
    y = gelu(y @ p["wc1"] + p["bc1"]) @ p["wc2"] + p["bc2"]
    return x + y


if __name__ == "__main__":
    # Small, lane-friendly shapes: D and C multiples of 128, P multiple of 8.
    B, P, D = 16, 16, 128           # batch, num_patches, d_x
    T, C = 64, 256                  # d_tokens_mlp, d_channels_mlp

    key = jax.random.PRNGKey(0)
    kx, kp = jax.random.split(key)
    x = jax.random.normal(kx, (B, P, D), jnp.float32)
    params = make_params(kp, D, P, T, C)

    out = mixer_block(x, params)
    out = jax.block_until_ready(out)

    ref = mixer_block_ref(x, params)
    assert out.shape == (B, P, D)
    assert jnp.allclose(out, ref, atol=1e-4, rtol=1e-4), float(
        jnp.max(jnp.abs(out - ref)))
    print("KERNEL_OK")
</pallas_src>

<mosaic_0001>
module attributes {stable_mosaic.version = 11 : i64} {
  func.func @mixer_block_kernel(%arg0: i32, %arg1: memref<8x16x128xf32, #tpu.memory_space<vmem>>, %arg2: memref<1x128xf32, #tpu.memory_space<vmem>>, %arg3: memref<1x128xf32, #tpu.memory_space<vmem>>, %arg4: memref<64x16xf32, #tpu.memory_space<vmem>>, %arg5: memref<64x1xf32, #tpu.memory_space<vmem>>, %arg6: memref<16x64xf32, #tpu.memory_space<vmem>>, %arg7: memref<16x1xf32, #tpu.memory_space<vmem>>, %arg8: memref<1x128xf32, #tpu.memory_space<vmem>>, %arg9: memref<1x128xf32, #tpu.memory_space<vmem>>, %arg10: memref<128x256xf32, #tpu.memory_space<vmem>>, %arg11: memref<1x256xf32, #tpu.memory_space<vmem>>, %arg12: memref<256x128xf32, #tpu.memory_space<vmem>>, %arg13: memref<1x128xf32, #tpu.memory_space<vmem>>, %arg14: memref<8x16x128xf32, #tpu.memory_space<vmem>>) attributes {dimension_semantics = [#tpu.dimension_semantics<parallel>], iteration_bounds = array<i64: 2>, scalar_prefetch = 0 : i64, scratch_operands = 0 : i64, tpu.core_type = #tpu.core_type<tc>, window_params = [{transform_indices = @transform_0, window_bounds = array<i64: 8, 16, 128>}, {pipeline_mode = #tpu.pipeline_mode<synchronous>, transform_indices = @transform_1, window_bounds = array<i64: 1, 128>}, {pipeline_mode = #tpu.pipeline_mode<synchronous>, transform_indices = @transform_2, window_bounds = array<i64: 1, 128>}, {pipeline_mode = #tpu.pipeline_mode<synchronous>, transform_indices = @transform_3, window_bounds = array<i64: 64, 16>}, {pipeline_mode = #tpu.pipeline_mode<synchronous>, transform_indices = @transform_4, window_bounds = array<i64: 64, 1>}, {pipeline_mode = #tpu.pipeline_mode<synchronous>, transform_indices = @transform_5, window_bounds = array<i64: 16, 64>}, {pipeline_mode = #tpu.pipeline_mode<synchronous>, transform_indices = @transform_6, window_bounds = array<i64: 16, 1>}, {pipeline_mode = #tpu.pipeline_mode<synchronous>, transform_indices = @transform_7, window_bounds = array<i64: 1, 128>}, {pipeline_mode = #tpu.pipeline_mode<synchronous>, transform_indices = @transform_8, window_bounds = array<i64: 1, 128>}, {pipeline_mode = #tpu.pipeline_mode<synchronous>, transform_indices = @transform_9, window_bounds = array<i64: 128, 256>}, {pipeline_mode = #tpu.pipeline_mode<synchronous>, transform_indices = @transform_10, window_bounds = array<i64: 1, 256>}, {pipeline_mode = #tpu.pipeline_mode<synchronous>, transform_indices = @transform_11, window_bounds = array<i64: 256, 128>}, {pipeline_mode = #tpu.pipeline_mode<synchronous>, transform_indices = @transform_12, window_bounds = array<i64: 1, 128>}, {transform_indices = @transform_13, window_bounds = array<i64: 8, 16, 128>}]} {
    %c0 = arith.constant 0 : index
    %c0_0 = arith.constant 0 : index
    %c0_1 = arith.constant 0 : index
    %0 = vector.load %arg1[%c0, %c0_0, %c0_1] : memref<8x16x128xf32, #tpu.memory_space<vmem>>, vector<8x16x128xf32>
    %c0_2 = arith.constant 0 : index
    %c0_3 = arith.constant 0 : index
    %1 = vector.load %arg2[%c0_2, %c0_3] : memref<1x128xf32, #tpu.memory_space<vmem>>, vector<1x128xf32>
    %c0_4 = arith.constant 0 : index
    %c0_5 = arith.constant 0 : index
    %2 = vector.load %arg3[%c0_4, %c0_5] : memref<1x128xf32, #tpu.memory_space<vmem>>, vector<1x128xf32>
    %cst = arith.constant dense<0.000000e+00> : vector<8x16xf32>
    %3 = vector.multi_reduction <add>, %0, %cst [2] : vector<8x16x128xf32> to vector<8x16xf32>
    %4 = vector.shape_cast %3 : vector<8x16xf32> to vector<8x16x1xf32>
    %cst_6 = arith.constant 1.280000e+02 : f32
    %5 = vector.broadcast %cst_6 : f32 to vector<8x16x1xf32>
    %6 = arith.divf %4, %5 : vector<8x16x1xf32>
    %7 = vector.broadcast %6 : vector<8x16x1xf32> to vector<8x16x128xf32>
    %8 = arith.subf %0, %7 : vector<8x16x128xf32>
    %9 = arith.mulf %8, %8 : vector<8x16x128xf32>
    %cst_7 = arith.constant dense<0.000000e+00> : vector<8x16xf32>
    %10 = vector.multi_reduction <add>, %9, %cst_7 [2] : vector<8x16x128xf32> to vector<8x16xf32>
    %11 = vector.shape_cast %10 : vector<8x16xf32> to vector<8x16x1xf32>
    %cst_8 = arith.constant 1.280000e+02 : f32
    %12 = vector.broadcast %cst_8 : f32 to vector<8x16x1xf32>
    %13 = arith.divf %11, %12 : vector<8x16x1xf32>
    %cst_9 = arith.constant 9.99999974E-6 : f32
    %14 = vector.broadcast %cst_9 : f32 to vector<8x16x1xf32>
    %15 = arith.addf %13, %14 : vector<8x16x1xf32>
    %16 = math.rsqrt %15 : vector<8x16x1xf32>
    %17 = vector.broadcast %16 : vector<8x16x1xf32> to vector<8x16x128xf32>
    %18 = arith.mulf %8, %17 : vector<8x16x128xf32>
    %19 = vector.shape_cast %1 : vector<1x128xf32> to vector<1x1x128xf32>
    %20 = vector.broadcast %19 : vector<1x1x128xf32> to vector<8x16x128xf32>
    %21 = arith.mulf %18, %20 : vector<8x16x128xf32>
    %22 = vector.shape_cast %2 : vector<1x128xf32> to vector<1x1x128xf32>
    %23 = vector.broadcast %22 : vector<1x1x128xf32> to vector<8x16x128xf32>
    %24 = arith.addf %21, %23 : vector<8x16x128xf32>
    %c0_10 = arith.constant 0 : index
    %c0_11 = arith.constant 0 : index
    %25 = vector.load %arg4[%c0_10, %c0_11] : memref<64x16xf32, #tpu.memory_space<vmem>>, vector<64x16xf32>
    %26 = vector.shape_cast %25 : vector<64x16xf32> to vector<1x64x16xf32>
    %27 = vector.broadcast %26 : vector<1x64x16xf32> to vector<8x64x16xf32>
    %c0_12 = arith.constant 0 : index
    %c0_13 = arith.constant 0 : index
    %28 = vector.load %arg6[%c0_12, %c0_13] : memref<16x64xf32, #tpu.memory_space<vmem>>, vector<16x64xf32>
    %29 = vector.shape_cast %28 : vector<16x64xf32> to vector<1x16x64xf32>
    %30 = vector.broadcast %29 : vector<1x16x64xf32> to vector<8x16x64xf32>
    "tpu.trace_start"() <{level = 10 : i32, message = "btp,bpd->btd"}> : () -> ()
    %cst_14 = arith.constant dense<0.000000e+00> : vector<8x64x128xf32>
    %31 = tpu.matmul %27, %24, %cst_14 {dimension_numbers = #tpu.dot_dimension_numbers<[2], [1], [1], [2], [0, 0, 0, 1, 1, 2], [0], [0]>} : vector<8x64x16xf32>, vector<8x16x128xf32>, vector<8x64x128xf32> -> vector<8x64x128xf32>
    "tpu.trace_stop"() : () -> ()
    %c0_15 = arith.constant 0 : index
    %c0_16 = arith.constant 0 : index
    %32 = vector.load %arg5[%c0_15, %c0_16] : memref<64x1xf32, #tpu.memory_space<vmem>>, vector<64x1xf32>
    %33 = vector.shape_cast %32 : vector<64x1xf32> to vector<1x64x1xf32>
    %34 = vector.broadcast %33 : vector<1x64x1xf32> to vector<8x64x128xf32>
    %35 = arith.addf %31, %34 : vector<8x64x128xf32>
    %cst_17 = arith.constant 5.000000e-01 : f32
    %36 = vector.broadcast %cst_17 : f32 to vector<8x64x128xf32>
    %37 = arith.mulf %36, %35 : vector<8x64x128xf32>
    %cst_18 = arith.constant 0.707106769 : f32
    %38 = vector.broadcast %cst_18 : f32 to vector<8x64x128xf32>
    %39 = arith.mulf %35, %38 : vector<8x64x128xf32>
    %40 = math.erf %39 : vector<8x64x128xf32>
    %cst_19 = arith.constant 1.000000e+00 : f32
    %41 = vector.broadcast %cst_19 : f32 to vector<8x64x128xf32>
    %42 = arith.addf %41, %40 : vector<8x64x128xf32>
    %43 = arith.mulf %37, %42 : vector<8x64x128xf32>
    "tpu.trace_start"() <{level = 10 : i32, message = "bpt,btd->bpd"}> : () -> ()
    %cst_20 = arith.constant dense<0.000000e+00> : vector<8x16x128xf32>
    %44 = tpu.matmul %30, %43, %cst_20 {dimension_numbers = #tpu.dot_dimension_numbers<[2], [1], [1], [2], [0, 0, 0, 1, 1, 2], [0], [0]>} : vector<8x16x64xf32>, vector<8x64x128xf32>, vector<8x16x128xf32> -> vector<8x16x128xf32>
    "tpu.trace_stop"() : () -> ()
    %45 = arith.addf %0, %44 : vector<8x16x128xf32>
    %c0_21 = arith.constant 0 : index
    %c0_22 = arith.constant 0 : index
    %46 = vector.load %arg7[%c0_21, %c0_22] : memref<16x1xf32, #tpu.memory_space<vmem>>, vector<16x1xf32>
    %47 = vector.shape_cast %46 : vector<16x1xf32> to vector<1x16x1xf32>
    %48 = vector.broadcast %47 : vector<1x16x1xf32> to vector<8x16x128xf32>
    %49 = arith.addf %45, %48 : vector<8x16x128xf32>
    %c0_23 = arith.constant 0 : index
    %c0_24 = arith.constant 0 : index
    %50 = vector.load %arg8[%c0_23, %c0_24] : memref<1x128xf32, #tpu.memory_space<vmem>>, vector<1x128xf32>
    %c0_25 = arith.constant 0 : index
    %c0_26 = arith.constant 0 : index
    %51 = vector.load %arg9[%c0_25, %c0_26] : memref<1x128xf32, #tpu.memory_space<vmem>>, vector<1x128xf32>
    %cst_27 = arith.constant dense<0.000000e+00> : vector<8x16xf32>
    %52 = vector.multi_reduction <add>, %49, %cst_27 [2] : vector<8x16x128xf32> to vector<8x16xf32>
    %53 = vector.shape_cast %52 : vector<8x16xf32> to vector<8x16x1xf32>
    %cst_28 = arith.constant 1.280000e+02 : f32
    %54 = vector.broadcast %cst_28 : f32 to vector<8x16x1xf32>
    %55 = arith.divf %53, %54 : vector<8x16x1xf32>
    %56 = vector.broadcast %55 : vector<8x16x1xf32> to vector<8x16x128xf32>
    %57 = arith.subf %49, %56 : vector<8x16x128xf32>
    %58 = arith.mulf %57, %57 : vector<8x16x128xf32>
    %cst_29 = arith.constant dense<0.000000e+00> : vector<8x16xf32>
    %59 = vector.multi_reduction <add>, %58, %cst_29 [2] : vector<8x16x128xf32> to vector<8x16xf32>
    %60 = vector.shape_cast %59 : vector<8x16xf32> to vector<8x16x1xf32>
    %cst_30 = arith.constant 1.280000e+02 : f32
    %61 = vector.broadcast %cst_30 : f32 to vector<8x16x1xf32>
    %62 = arith.divf %60, %61 : vector<8x16x1xf32>
    %cst_31 = arith.constant 9.99999974E-6 : f32
    %63 = vector.broadcast %cst_31 : f32 to vector<8x16x1xf32>
    %64 = arith.addf %62, %63 : vector<8x16x1xf32>
    %65 = math.rsqrt %64 : vector<8x16x1xf32>
    %66 = vector.broadcast %65 : vector<8x16x1xf32> to vector<8x16x128xf32>
    %67 = arith.mulf %57, %66 : vector<8x16x128xf32>
    %68 = vector.shape_cast %50 : vector<1x128xf32> to vector<1x1x128xf32>
    %69 = vector.broadcast %68 : vector<1x1x128xf32> to vector<8x16x128xf32>
    %70 = arith.mulf %67, %69 : vector<8x16x128xf32>
    %71 = vector.shape_cast %51 : vector<1x128xf32> to vector<1x1x128xf32>
    %72 = vector.broadcast %71 : vector<1x1x128xf32> to vector<8x16x128xf32>
    %73 = arith.addf %70, %72 : vector<8x16x128xf32>
    %74 = vector.shape_cast %73 : vector<8x16x128xf32> to vector<128x128xf32>
    %c0_32 = arith.constant 0 : index
    %c0_33 = arith.constant 0 : index
    %75 = vector.load %arg10[%c0_32, %c0_33] : memref<128x256xf32, #tpu.memory_space<vmem>>, vector<128x256xf32>
    %cst_34 = arith.constant dense<0.000000e+00> : vector<128x256xf32>
    %76 = tpu.matmul %74, %75, %cst_34 {dimension_numbers = #tpu.dot_dimension_numbers<[1], [0], [0], [1], [0, 0, 1, 1], [], []>} : vector<128x128xf32>, vector<128x256xf32>, vector<128x256xf32> -> vector<128x256xf32>
    %c0_35 = arith.constant 0 : index
    %c0_36 = arith.constant 0 : index
    %77 = vector.load %arg11[%c0_35, %c0_36] : memref<1x256xf32, #tpu.memory_space<vmem>>, vector<1x256xf32>
    %78 = vector.broadcast %77 : vector<1x256xf32> to vector<128x256xf32>
    %79 = arith.addf %76, %78 : vector<128x256xf32>
    %cst_37 = arith.constant 5.000000e-01 : f32
    %80 = vector.broadcast %cst_37 : f32 to vector<128x256xf32>
    %81 = arith.mulf %80, %79 : vector<128x256xf32>
    %cst_38 = arith.constant 0.707106769 : f32
    %82 = vector.broadcast %cst_38 : f32 to vector<128x256xf32>
    %83 = arith.mulf %79, %82 : vector<128x256xf32>
    %84 = math.erf %83 : vector<128x256xf32>
    %cst_39 = arith.constant 1.000000e+00 : f32
    %85 = vector.broadcast %cst_39 : f32 to vector<128x256xf32>
    %86 = arith.addf %85, %84 : vector<128x256xf32>
    %87 = arith.mulf %81, %86 : vector<128x256xf32>
    %c0_40 = arith.constant 0 : index
    %c0_41 = arith.constant 0 : index
    %88 = vector.load %arg12[%c0_40, %c0_41] : memref<256x128xf32, #tpu.memory_space<vmem>>, vector<256x128xf32>
    %cst_42 = arith.constant dense<0.000000e+00> : vector<128x128xf32>
    %89 = tpu.matmul %87, %88, %cst_42 {dimension_numbers = #tpu.dot_dimension_numbers<[1], [0], [0], [1], [0, 0, 1, 1], [], []>} : vector<128x256xf32>, vector<256x128xf32>, vector<128x128xf32> -> vector<128x128xf32>
    %c0_43 = arith.constant 0 : index
    %c0_44 = arith.constant 0 : index
    %90 = vector.load %arg13[%c0_43, %c0_44] : memref<1x128xf32, #tpu.memory_space<vmem>>, vector<1x128xf32>
    %91 = vector.broadcast %90 : vector<1x128xf32> to vector<128x128xf32>
    %92 = arith.addf %89, %91 : vector<128x128xf32>
    %93 = vector.shape_cast %92 : vector<128x128xf32> to vector<8x16x128xf32>
    %94 = arith.addf %49, %93 : vector<8x16x128xf32>
    %c0_45 = arith.constant 0 : index
    %c0_46 = arith.constant 0 : index
    %c0_47 = arith.constant 0 : index
    %95 = vector.load %arg14[%c0_45, %c0_46, %c0_47] : memref<8x16x128xf32, #tpu.memory_space<vmem>>, vector<8x16x128xf32>
    tpu.vector_store %arg14[%c0_45, %c0_46, %c0_47], %94 {strides = array<i32>} : memref<8x16x128xf32, #tpu.memory_space<vmem>>, vector<8x16x128xf32>,
    return
  }
  func.func @transform_0(%arg0: i32) -> (i32, i32, i32) {
    %c0_i32 = arith.constant 0 : i32
    %c0_i32_0 = arith.constant 0 : i32
    %c0_i32_1 = arith.constant 0 : i32
    return %arg0, %c0_i32, %c0_i32_0 : i32, i32, i32
  }
  func.func @transform_1(%arg0: i32) -> (i32, i32) {
    %c0_i32 = arith.constant 0 : i32
    %c0_i32_0 = arith.constant 0 : i32
    %c0_i32_1 = arith.constant 0 : i32
    return %c0_i32, %c0_i32_0 : i32, i32
  }
  func.func @transform_2(%arg0: i32) -> (i32, i32) {
    %c0_i32 = arith.constant 0 : i32
    %c0_i32_0 = arith.constant 0 : i32
    %c0_i32_1 = arith.constant 0 : i32
    return %c0_i32, %c0_i32_0 : i32, i32
  }
  func.func @transform_3(%arg0: i32) -> (i32, i32) {
    %c0_i32 = arith.constant 0 : i32
    %c0_i32_0 = arith.constant 0 : i32
    %c0_i32_1 = arith.constant 0 : i32
    return %c0_i32, %c0_i32_0 : i32, i32
  }
  func.func @transform_4(%arg0: i32) -> (i32, i32) {
    %c0_i32 = arith.constant 0 : i32
    %c0_i32_0 = arith.constant 0 : i32
    %c0_i32_1 = arith.constant 0 : i32
    return %c0_i32, %c0_i32_0 : i32, i32
  }
  func.func @transform_5(%arg0: i32) -> (i32, i32) {
    %c0_i32 = arith.constant 0 : i32
    %c0_i32_0 = arith.constant 0 : i32
    %c0_i32_1 = arith.constant 0 : i32
    return %c0_i32, %c0_i32_0 : i32, i32
  }
  func.func @transform_6(%arg0: i32) -> (i32, i32) {
    %c0_i32 = arith.constant 0 : i32
    %c0_i32_0 = arith.constant 0 : i32
    %c0_i32_1 = arith.constant 0 : i32
    return %c0_i32, %c0_i32_0 : i32, i32
  }
  func.func @transform_7(%arg0: i32) -> (i32, i32) {
    %c0_i32 = arith.constant 0 : i32
    %c0_i32_0 = arith.constant 0 : i32
    %c0_i32_1 = arith.constant 0 : i32
    return %c0_i32, %c0_i32_0 : i32, i32
  }
  func.func @transform_8(%arg0: i32) -> (i32, i32) {
    %c0_i32 = arith.constant 0 : i32
    %c0_i32_0 = arith.constant 0 : i32
    %c0_i32_1 = arith.constant 0 : i32
    return %c0_i32, %c0_i32_0 : i32, i32
  }
  func.func @transform_9(%arg0: i32) -> (i32, i32) {
    %c0_i32 = arith.constant 0 : i32
    %c0_i32_0 = arith.constant 0 : i32
    %c0_i32_1 = arith.constant 0 : i32
    return %c0_i32, %c0_i32_0 : i32, i32
  }
  func.func @transform_10(%arg0: i32) -> (i32, i32) {
    %c0_i32 = arith.constant 0 : i32
    %c0_i32_0 = arith.constant 0 : i32
    %c0_i32_1 = arith.constant 0 : i32
    return %c0_i32, %c0_i32_0 : i32, i32
  }
  func.func @transform_11(%arg0: i32) -> (i32, i32) {
    %c0_i32 = arith.constant 0 : i32
    %c0_i32_0 = arith.constant 0 : i32
    %c0_i32_1 = arith.constant 0 : i32
    return %c0_i32, %c0_i32_0 : i32, i32
  }
  func.func @transform_12(%arg0: i32) -> (i32, i32) {
    %c0_i32 = arith.constant 0 : i32
    %c0_i32_0 = arith.constant 0 : i32
    %c0_i32_1 = arith.constant 0 : i32
    return %c0_i32, %c0_i32_0 : i32, i32
  }
  func.func @transform_13(%arg0: i32) -> (i32, i32, i32) {
    %c0_i32 = arith.constant 0 : i32
    %c0_i32_0 = arith.constant 0 : i32
    %c0_i32_1 = arith.constant 0 : i32
    return %arg0, %c0_i32, %c0_i32_0 : i32, i32, i32
  }
}

</mosaic_0001>

<llo_original>
// kernel: tpu_custom_call.1
$region0: #{tpu_custom_call.1}
  #allocation0 [shape = 'u32[]', space=smem, size = 0x4, offset = 0x4, fixed_abs, tag = 'smem constant byte address 0x4 - core index']
  #allocation1 [shape = 'u32[144,128]{1,0:T(1,128)}', space=vmem, size = 0x12000, scoped, tag = 'internal scratch']
  %s0 = inlined_call_operand.hbm [shape: f32[16,16,128], index: 0, kind: input, shape index: {}]
  %s1 = inlined_call_operand.vmem [shape: f32[1,128], index: 1, kind: input, shape index: {}]
  %s2 = inlined_call_operand.vmem [shape: f32[1,128], index: 2, kind: input, shape index: {}]
  %s3 = inlined_call_operand.vmem [shape: f32[64,16], index: 3, kind: input, shape index: {}]
  %s4 = inlined_call_operand.vmem [shape: f32[64,1], index: 4, kind: input, shape index: {}]
  %s5 = inlined_call_operand.vmem [shape: f32[16,64], index: 5, kind: input, shape index: {}]
  %s6 = inlined_call_operand.vmem [shape: f32[16,1], index: 6, kind: input, shape index: {}]
  %s7 = inlined_call_operand.vmem [shape: f32[1,128], index: 7, kind: input, shape index: {}]
  %s8 = inlined_call_operand.vmem [shape: f32[1,128], index: 8, kind: input, shape index: {}]
  %s9 = inlined_call_operand.hbm [shape: f32[128,256], index: 9, kind: input, shape index: {}]
  %s10 = inlined_call_operand.vmem [shape: f32[1,256], index: 10, kind: input, shape index: {}]
  %s11 = inlined_call_operand.hbm [shape: f32[256,128], index: 11, kind: input, shape index: {}]
  %s12 = inlined_call_operand.vmem [shape: f32[1,128], index: 12, kind: input, shape index: {}]
  %s13 = inlined_call_operand.hbm [shape: f32[16,16,128], index: 13, kind: output, shape index: {}]
  %s14 = sld [smem:[#allocation0]]
  $region97: #{tpu_custom_call.1} parent=0
    _
  %s16 = ssub.s32 1, %s14
  %s17 = scalar_select 0, %s16, %s14
  $region1: #{tpu_custom_call.1} parent=0
    #allocation2 [shape = 'u8[131072]{0}', space=vmem, size = 0x20000, scoped, tag = 'input window, operand 0']
    #allocation3 [shape = 's32[2]{0}', space=sflag, size = 0x8, scoped, tag = 'scoped memory for tpu_custom_call.1']
    #allocation4 [shape = 's32[2]{0}', space=sflag, size = 0x8, scoped, tag = 'scoped memory for tpu_custom_call.1']
    #allocation5 [shape = 'u8[131072]{0}', space=vmem, size = 0x20000, scoped, tag = 'input window, operand 9, single buffered']
    #allocation6 [shape = 's32[1]{0}', space=sflag, size = 0x4, scoped, tag = 'scoped memory for tpu_custom_call.1']
    #allocation7 [shape = 'u8[131072]{0}', space=vmem, size = 0x20000, scoped, tag = 'input window, operand 11, single buffered']
    #allocation8 [shape = 'u8[131072]{0}', space=vmem, size = 0x20000, scoped, tag = 'output window, operand 0']
    %18 = vsyncpa [#allocation3], 0
    %s19 = scalar_lea.sflag [#allocation3], 1
    %20 = vsyncpa %s19, 0
    %21 = vsyncpa [#allocation6], 0
    %22 = vsyncpa [#allocation4], 0
    %s23 = scalar_lea.sflag [#allocation4], 1
    %24 = vsyncpa %s23, 0
    loop: start=0, step=1, limit=4
    $region2: #{tpu_custom_call.1} parent=1 // loop_pre_header
      _
    $region3: #{tpu_custom_call.1} parent=1 // loop_header
      %s26 = sphi 0, %s30
      %p27 = scmp.ge.s32.totalorder %s26, 4
      %s36 = sphi 0, %s38
      %s39 = sphi 0, %s36
      %s40 = sphi 0, %s39
      %s56 = sphi 0, %s40
      %s60 = sphi 0, %s60
      %s62 = sphi 0, %s60
      %s63 = sphi 0, %s62
      %s77 = sphi 0, %s63
      %s81 = sphi 0, %s81
      %s83 = sphi 0, %s81
      %s84 = sphi 0, %s83
      %s98 = sphi 0, %s84
      %s102 = sphi 0, %s102
      %s104 = sphi 0, %s102
      %s105 = sphi 0, %s104
      %s119 = sphi 0, %s105
      %s123 = sphi 0, %s123
      %s125 = sphi 0, %s123
      %s126 = sphi 0, %s125
      %s140 = sphi 0, %s126
      %s144 = sphi 0, %s144
      %s146 = sphi 0, %s144
      %s147 = sphi 0, %s146
      %s161 = sphi 0, %s147
      %s165 = sphi 0, %s165
      %s167 = sphi 0, %s165
      %s168 = sphi 0, %s167
      %s182 = sphi 0, %s168
      %s186 = sphi 0, %s186
      %s188 = sphi 0, %s186
      %s189 = sphi 0, %s188
      %s203 = sphi 0, %s189
      %s207 = sphi 0, %s207
      %s209 = sphi 0, %s207
      %s210 = sphi 0, %s209
      %s224 = sphi 0, %s210
      %s228 = sphi 0, %s228
      %s230 = sphi 0, %s228
      %s231 = sphi 0, %s230
      %s245 = sphi 0, %s231
      %s249 = sphi 0, %s249
      %s251 = sphi 0, %s249
      %s252 = sphi 0, %s251
      %s266 = sphi 0, %s252
      %s270 = sphi 0, %s270
      %s272 = sphi 0, %s270
      %s273 = sphi 0, %s272
      %s287 = sphi 0, %s273
      %s291 = sphi 0, %s291
      %s293 = sphi 0, %s291
      %s294 = sphi 0, %s293
      %s308 = sphi 0, %s294
      %s314 = sphi 0, %s316
      %s317 = sphi 0, %s314
      %s318 = sphi 0, %s317
      %s334 = sphi 0, %s318
    $region4: #{tpu_custom_call.1} parent=1 // loop_header_branch
      %29 = sbr.rel (%p27) target = $region8
    $region5: #{tpu_custom_call.1} parent=1 // loop_body
      %s31 = ssub.s32 %s26, 1
      %s32 = ssub.s32 %s26, 2
      %s33 = sadd.s32 %s26, 1
      %s34 = ssub.s32 %s26, %s33
      %p35 = scmp.eq.s32.totalorder %s34, 0
      %s37 = sadd.s32 %s36, 1
      %s38 = scalar_select %p35, %s36, %s37
      %p41 = pneg %p35
      %p42 = scmp.eq.s32.totalorder %s26, 1
      %p43 = por %p41, %p42
      %p44 = scmp.ne.s32.totalorder %s36, %s39
      %p45 = scmp.eq.s32.totalorder %s26, 0
      %p46 = por %p44, %p45
      %p47 = scmp.ne.s32.totalorder %s36, %s39
      %p48 = scmp.eq.s32.totalorder %s31, 1
      %p49 = por %p47, %p48
      %p50 = scmp.ne.s32.totalorder %s39, %s40
      %p51 = scmp.eq.s32.totalorder %s31, 0
      %p52 = por %p50, %p51
      %p53 = scmp.ne.s32.totalorder %s39, %s40
      %p54 = scmp.eq.s32.totalorder %s32, 1
      %p55 = por %p53, %p54
      %p57 = scmp.ne.s32.totalorder %s40, %s56
      %p58 = scmp.eq.s32.totalorder %s32, 0
      %p59 = por %p57, %p58
      %s61 = sadd.s32 %s60, 1
      %p64 = scmp.eq.s32.totalorder %s26, 1
      %p65 = scmp.ne.s32.totalorder %s60, %s62
      %p66 = scmp.eq.s32.totalorder %s26, 0
      %p67 = por %p65, %p66
      %p68 = scmp.ne.s32.totalorder %s60, %s62
      %p69 = scmp.eq.s32.totalorder %s31, 1
      %p70 = por %p68, %p69
      %p71 = scmp.ne.s32.totalorder %s62, %s63
      %p72 = scmp.eq.s32.totalorder %s31, 0
      %p73 = por %p71, %p72
      %p74 = scmp.ne.s32.totalorder %s62, %s63
      %p75 = scmp.eq.s32.totalorder %s32, 1
      %p76 = por %p74, %p75
      %p78 = scmp.ne.s32.totalorder %s63, %s77
      %p79 = scmp.eq.s32.totalorder %s32, 0
      %p80 = por %p78, %p79
      %s82 = sadd.s32 %s81, 1
      %p85 = scmp.eq.s32.totalorder %s26, 1
      %p86 = scmp.ne.s32.totalorder %s81, %s83
      %p87 = scmp.eq.s32.totalorder %s26, 0
      %p88 = por %p86, %p87
      %p89 = scmp.ne.s32.totalorder %s81, %s83
      %p90 = scmp.eq.s32.totalorder %s31, 1
      %p91 = por %p89, %p90
      %p92 = scmp.ne.s32.totalorder %s83, %s84
      %p93 = scmp.eq.s32.totalorder %s31, 0
      %p94 = por %p92, %p93
      %p95 = scmp.ne.s32.totalorder %s83, %s84
      %p96 = scmp.eq.s32.totalorder %s32, 1
      %p97 = por %p95, %p96
      %p99 = scmp.ne.s32.totalorder %s84, %s98
      %p100 = scmp.eq.s32.totalorder %s32, 0
      %p101 = por %p99, %p100
      %s103 = sadd.s32 %s102, 1
      %p106 = scmp.eq.s32.totalorder %s26, 1
      %p107 = scmp.ne.s32.totalorder %s102, %s104
      %p108 = scmp.eq.s32.totalorder %s26, 0
      %p109 = por %p107, %p108
      %p110 = scmp.ne.s32.totalorder %s102, %s104
      %p111 = scmp.eq.s32.totalorder %s31, 1
      %p112 = por %p110, %p111
      %p113 = scmp.ne.s32.totalorder %s104, %s105
      %p114 = scmp.eq.s32.totalorder %s31, 0
      %p115 = por %p113, %p114
      %p116 = scmp.ne.s32.totalorder %s104, %s105
      %p117 = scmp.eq.s32.totalorder %s32, 1
      %p118 = por %p116, %p117
      %p120 = scmp.ne.s32.totalorder %s105, %s119
      %p121 = scmp.eq.s32.totalorder %s32, 0
      %p122 = por %p120, %p121
      %s124 = sadd.s32 %s123, 1
      %p127 = scmp.eq.s32.totalorder %s26, 1
      %p128 = scmp.ne.s32.totalorder %s123, %s125
      %p129 = scmp.eq.s32.totalorder %s26, 0
      %p130 = por %p128, %p129
      %p131 = scmp.ne.s32.totalorder %s123, %s125
      %p132 = scmp.eq.s32.totalorder %s31, 1
      %p133 = por %p131, %p132
      %p134 = scmp.ne.s32.totalorder %s125, %s126
      %p135 = scmp.eq.s32.totalorder %s31, 0
      %p136 = por %p134, %p135
      %p137 = scmp.ne.s32.totalorder %s125, %s126
      %p138 = scmp.eq.s32.totalorder %s32, 1
      %p139 = por %p137, %p138
      %p141 = scmp.ne.s32.totalorder %s126, %s140
      %p142 = scmp.eq.s32.totalorder %s32, 0
      %p143 = por %p141, %p142
      %s145 = sadd.s32 %s144, 1
      %p148 = scmp.eq.s32.totalorder %s26, 1
      %p149 = scmp.ne.s32.totalorder %s144, %s146
      %p150 = scmp.eq.s32.totalorder %s26, 0
      %p151 = por %p149, %p150
      %p152 = scmp.ne.s32.totalorder %s144, %s146
      %p153 = scmp.eq.s32.totalorder %s31, 1
      %p154 = por %p152, %p153
      %p155 = scmp.ne.s32.totalorder %s146, %s147
      %p156 = scmp.eq.s32.totalorder %s31, 0
      %p157 = por %p155, %p156
      %p158 = scmp.ne.s32.totalorder %s146, %s147
      %p159 = scmp.eq.s32.totalorder %s32, 1
      %p160 = por %p158, %p159
      %p162 = scmp.ne.s32.totalorder %s147, %s161
      %p163 = scmp.eq.s32.totalorder %s32, 0
      %p164 = por %p162, %p163
      %s166 = sadd.s32 %s165, 1
      %p169 = scmp.eq.s32.totalorder %s26, 1
      %p170 = scmp.ne.s32.totalorder %s165, %s167
      %p171 = scmp.eq.s32.totalorder %s26, 0
      %p172 = por %p170, %p171
      %p173 = scmp.ne.s32.totalorder %s165, %s167
      %p174 = scmp.eq.s32.totalorder %s31, 1
      %p175 = por %p173, %p174
      %p176 = scmp.ne.s32.totalorder %s167, %s168
      %p177 = scmp.eq.s32.totalorder %s31, 0
      %p178 = por %p176, %p177
      %p179 = scmp.ne.s32.totalorder %s167, %s168
      %p180 = scmp.eq.s32.totalorder %s32, 1
      %p181 = por %p179, %p180
      %p183 = scmp.ne.s32.totalorder %s168, %s182
      %p184 = scmp.eq.s32.totalorder %s32, 0
      %p185 = por %p183, %p184
      %s187 = sadd.s32 %s186, 1
      %p190 = scmp.eq.s32.totalorder %s26, 1
      %p191 = scmp.ne.s32.totalorder %s186, %s188
      %p192 = scmp.eq.s32.totalorder %s26, 0
      %p193 = por %p191, %p192
      %p194 = scmp.ne.s32.totalorder %s186, %s188
      %p195 = scmp.eq.s32.totalorder %s31, 1
      %p196 = por %p194, %p195
      %p197 = scmp.ne.s32.totalorder %s188, %s189
      %p198 = scmp.eq.s32.totalorder %s31, 0
      %p199 = por %p197, %p198
      %p200 = scmp.ne.s32.totalorder %s188, %s189
      %p201 = scmp.eq.s32.totalorder %s32, 1
      %p202 = por %p200, %p201
      %p204 = scmp.ne.s32.totalorder %s189, %s203
      %p205 = scmp.eq.s32.totalorder %s32, 0
      %p206 = por %p204, %p205
      %s208 = sadd.s32 %s207, 1
      %p211 = scmp.eq.s32.totalorder %s26, 1
      %p212 = scmp.ne.s32.totalorder %s207, %s209
      %p213 = scmp.eq.s32.totalorder %s26, 0
      %p214 = por %p212, %p213
      %p215 = scmp.ne.s32.totalorder %s207, %s209
      %p216 = scmp.eq.s32.totalorder %s31, 1
      %p217 = por %p215, %p216
      %p218 = scmp.ne.s32.totalorder %s209, %s210
      %p219 = scmp.eq.s32.totalorder %s31, 0
      %p220 = por %p218, %p219
      %p221 = scmp.ne.s32.totalorder %s209, %s210
      %p222 = scmp.eq.s32.totalorder %s32, 1
      %p223 = por %p221, %p222
      %p225 = scmp.ne.s32.totalorder %s210, %s224
      %p226 = scmp.eq.s32.totalorder %s32, 0
      %p227 = por %p225, %p226
      %s229 = sadd.s32 %s228, 1
      %p232 = scmp.eq.s32.totalorder %s26, 1
      %p233 = scmp.ne.s32.totalorder %s228, %s230
      %p234 = scmp.eq.s32.totalorder %s26, 0
      %p235 = por %p233, %p234
      %p236 = scmp.ne.s32.totalorder %s228, %s230
      %p237 = scmp.eq.s32.totalorder %s31, 1
      %p238 = por %p236, %p237
      %p239 = scmp.ne.s32.totalorder %s230, %s231
      %p240 = scmp.eq.s32.totalorder %s31, 0
      %p241 = por %p239, %p240
      %p242 = scmp.ne.s32.totalorder %s230, %s231
      %p243 = scmp.eq.s32.totalorder %s32, 1
      %p244 = por %p242, %p243
      %p246 = scmp.ne.s32.totalorder %s231, %s245
      %p247 = scmp.eq.s32.totalorder %s32, 0
      %p248 = por %p246, %p247
      %s250 = sadd.s32 %s249, 1
      %p253 = scmp.eq.s32.totalorder %s26, 1
      %p254 = scmp.ne.s32.totalorder %s249, %s251
      %p255 = scmp.eq.s32.totalorder %s26, 0
      %p256 = por %p254, %p255
      %p257 = scmp.ne.s32.totalorder %s249, %s251
      %p258 = scmp.eq.s32.totalorder %s31, 1
      %p259 = por %p257, %p258
      %p260 = scmp.ne.s32.totalorder %s251, %s252
      %p261 = scmp.eq.s32.totalorder %s31, 0
      %p262 = por %p260, %p261
      %p263 = scmp.ne.s32.totalorder %s251, %s252
      %p264 = scmp.eq.s32.totalorder %s32, 1
      %p265 = por %p263, %p264
      %p267 = scmp.ne.s32.totalorder %s252, %s266
      %p268 = scmp.eq.s32.totalorder %s32, 0
      %p269 = por %p267, %p268
      %s271 = sadd.s32 %s270, 1
      %p274 = scmp.eq.s32.totalorder %s26, 1
      %p275 = scmp.ne.s32.totalorder %s270, %s272
      %p276 = scmp.eq.s32.totalorder %s26, 0
      %p277 = por %p275, %p276
      %p278 = scmp.ne.s32.totalorder %s270, %s272
      %p279 = scmp.eq.s32.totalorder %s31, 1
      %p280 = por %p278, %p279
      %p281 = scmp.ne.s32.totalorder %s272, %s273
      %p282 = scmp.eq.s32.totalorder %s31, 0
      %p283 = por %p281, %p282
      %p284 = scmp.ne.s32.totalorder %s272, %s273
      %p285 = scmp.eq.s32.totalorder %s32, 1
      %p286 = por %p284, %p285
      %p288 = scmp.ne.s32.totalorder %s273, %s287
      %p289 = scmp.eq.s32.totalorder %s32, 0
      %p290 = por %p288, %p289
      %s292 = sadd.s32 %s291, 1
      %p295 = scmp.eq.s32.totalorder %s26, 1
      %p296 = scmp.ne.s32.totalorder %s291, %s293
      %p297 = scmp.eq.s32.totalorder %s26, 0
      %p298 = por %p296, %p297
      %p299 = scmp.ne.s32.totalorder %s291, %s293
      %p300 = scmp.eq.s32.totalorder %s31, 1
      %p301 = por %p299, %p300
      %p302 = scmp.ne.s32.totalorder %s293, %s294
      %p303 = scmp.eq.s32.totalorder %s31, 0
      %p304 = por %p302, %p303
      %p305 = scmp.ne.s32.totalorder %s293, %s294
      %p306 = scmp.eq.s32.totalorder %s32, 1
      %p307 = por %p305, %p306
      %p309 = scmp.ne.s32.totalorder %s294, %s308
      %p310 = scmp.eq.s32.totalorder %s32, 0
      %p311 = por %p309, %p310
      %s312 = ssub.s32 %s26, %s33
      %p313 = scmp.eq.s32.totalorder %s312, 0
      %s315 = sadd.s32 %s314, 1
      %s316 = scalar_select %p313, %s314, %s315
      %p319 = pneg %p313
      %p320 = scmp.eq.s32.totalorder %s26, 1
      %p321 = por %p319, %p320
      %p322 = scmp.ne.s32.totalorder %s314, %s317
      %p323 = scmp.eq.s32.totalorder %s26, 0
      %p324 = por %p322, %p323
      %p325 = scmp.ne.s32.totalorder %s314, %s317
      %p326 = scmp.eq.s32.totalorder %s31, 1
      %p327 = por %p325, %p326
      %p328 = scmp.ne.s32.totalorder %s317, %s318
      %p329 = scmp.eq.s32.totalorder %s31, 0
      %p330 = por %p328, %p329
      %p331 = scmp.ne.s32.totalorder %s317, %s318
      %p332 = scmp.eq.s32.totalorder %s32, 1
      %p333 = por %p331, %p332
      %p335 = scmp.ne.s32.totalorder %s318, %s334
      %p336 = scmp.eq.s32.totalorder %s32, 0
      %p337 = por %p335, %p336
      %p338 = scmp.le.s32.totalorder 1, %s26
      %p339 = scmp.lt.s32.totalorder %s26, 3
      %p340 = pnand %p338, %p339
      %p341 = pneg %p340
      // Predicated region
      $region9: #{tpu_custom_call.1} parent=5 // pred_check
        _
      $region10: #{tpu_custom_call.1} parent=5 // pred_check_branch
        %343 = sbr.rel (%p340) target = $region12
      $region11: #{tpu_custom_call.1} parent=5 // pred_region
        %s344 = ssub.s32 %s26, 1
        // Predicated region
        $region13: #{tpu_custom_call.1} parent=11 // pred_check
          %p345 = pneg %p73
        $region14: #{tpu_custom_call.1} parent=11 // pred_check_branch
          %347 = sbr.rel (%p345) target = $region16
        $region15: #{tpu_custom_call.1} parent=11 // pred_region
          _
        $region16: #{tpu_custom_call.1} parent=11 // pred_fallthru
          _
        // Predicated region
        $region17: #{tpu_custom_call.1} parent=11 // pred_check
          %p348 = pneg %p94
        $region18: #{tpu_custom_call.1} parent=11 // pred_check_branch
          %350 = sbr.rel (%p348) target = $region20
        $region19: #{tpu_custom_call.1} parent=11 // pred_region
          _
        $region20: #{tpu_custom_call.1} parent=11 // pred_fallthru
          _
        // Predicated region
        $region21: #{tpu_custom_call.1} parent=11 // pred_check
          %p351 = pneg %p115
        $region22: #{tpu_custom_call.1} parent=11 // pred_check_branch
          %353 = sbr.rel (%p351) target = $region24
        $region23: #{tpu_custom_call.1} parent=11 // pred_region
          _
        $region24: #{tpu_custom_call.1} parent=11 // pred_fallthru
          _
        // Predicated region
        $region25: #{tpu_custom_call.1} parent=11 // pred_check
          %p354 = pneg %p136
        $region26: #{tpu_custom_call.1} parent=11 // pred_check_branch
          %356 = sbr.rel (%p354) target = $region28
        $region27: #{tpu_custom_call.1} parent=11 // pred_region
          _
        $region28: #{tpu_custom_call.1} parent=11 // pred_fallthru
          _
        // Predicated region
        $region29: #{tpu_custom_call.1} parent=11 // pred_check
          %p357 = pneg %p157
        $region30: #{tpu_custom_call.1} parent=11 // pred_check_branch
          %359 = sbr.rel (%p357) target = $region32
        $region31: #{tpu_custom_call.1} parent=11 // pred_region
          _
        $region32: #{tpu_custom_call.1} parent=11 // pred_fallthru
          _
        // Predicated region
        $region33: #{tpu_custom_call.1} parent=11 // pred_check
          %p360 = pneg %p178
        $region34: #{tpu_custom_call.1} parent=11 // pred_check_branch
          %362 = sbr.rel (%p360) target = $region36
        $region35: #{tpu_custom_call.1} parent=11 // pred_region
          _
        $region36: #{tpu_custom_call.1} parent=11 // pred_fallthru
          _
        // Predicated region
        $region37: #{tpu_custom_call.1} parent=11 // pred_check
          %p363 = pneg %p199
        $region38: #{tpu_custom_call.1} parent=11 // pred_check_branch
          %365 = sbr.rel (%p363) target = $region40
        $region39: #{tpu_custom_call.1} parent=11 // pred_region
          _
        $region40: #{tpu_custom_call.1} parent=11 // pred_fallthru
          _
        // Predicated region
        $region41: #{tpu_custom_call.1} parent=11 // pred_check
          %p366 = pneg %p220
        $region42: #{tpu_custom_call.1} parent=11 // pred_check_branch
          %368 = sbr.rel (%p366) target = $region44
        $region43: #{tpu_custom_call.1} parent=11 // pred_region
          _
        $region44: #{tpu_custom_call.1} parent=11 // pred_fallthru
          _
        // Predicated region
        $region45: #{tpu_custom_call.1} parent=11 // pred_check
          %p369 = pneg %p241
        $region46: #{tpu_custom_call.1} parent=11 // pred_check_branch
          %371 = sbr.rel (%p369) target = $region48
        $region47: #{tpu_custom_call.1} parent=11 // pred_region
          %s373 = ssub.s32 4096, 4096
          %374 = vsyncadd [#allocation6], %s373
          %s375 = sshll.u32 [#allocation5], 4
          %s376 = int_to_ptr.vmem [resolvable:$true] %s375
          %381 = dma.hbm_to_vmem [thread:$0]  %s9, 4096, %s376, [#allocation6], 256, 256, 16
        $region48: #{tpu_custom_call.1} parent=11 // pred_fallthru
          _
        // Predicated region
        $region49: #{tpu_custom_call.1} parent=11 // pred_check
          %p382 = pneg %p262
        $region50: #{tpu_custom_call.1} parent=11 // pred_check_branch
          %384 = sbr.rel (%p382) target = $region52
        $region51: #{tpu_custom_call.1} parent=11 // pred_region
          _
        $region52: #{tpu_custom_call.1} parent=11 // pred_fallthru
          _
        // Predicated region
        $region53: #{tpu_custom_call.1} parent=11 // pred_check
          %p385 = pneg %p283
        $region54: #{tpu_custom_call.1} parent=11 // pred_check_branch
          %387 = sbr.rel (%p385) target = $region56
        $region55: #{tpu_custom_call.1} parent=11 // pred_region
          %s389 = ssub.s32 4096, 4096
          %390 = vsyncadd [#allocation6], %s389
          %s391 = sshll.u32 [#allocation7], 4
          %s392 = int_to_ptr.vmem [resolvable:$true] %s391
          %397 = dma.hbm_to_vmem [thread:$0]  %s11, 4096, %s392, [#allocation6], 128, 128, 8
        $region56: #{tpu_custom_call.1} parent=11 // pred_fallthru
          _
        // Predicated region
        $region57: #{tpu_custom_call.1} parent=11 // pred_check
          %p398 = pneg %p304
        $region58: #{tpu_custom_call.1} parent=11 // pred_check_branch
          %400 = sbr.rel (%p398) target = $region60
        $region59: #{tpu_custom_call.1} parent=11 // pred_region
          _
        $region60: #{tpu_custom_call.1} parent=11 // pred_fallthru
          _
      $region12: #{tpu_custom_call.1} parent=5 // pred_fallthru
        _
      %p401 = scmp.lt.s32.totalorder %s26, 2
      // Predicated region
      $region61: #{tpu_custom_call.1} parent=5 // pred_check
        %p402 = pneg %p401
      $region62: #{tpu_custom_call.1} parent=5 // pred_check_branch
        %404 = sbr.rel (%p402) target = $region64
      $region63: #{tpu_custom_call.1} parent=5 // pred_region
        // Predicated region
        $region65: #{tpu_custom_call.1} parent=63 // pred_check
          %p405 = pneg %p46
        $region66: #{tpu_custom_call.1} parent=63 // pred_check_branch
          %407 = sbr.rel (%p405) target = $region68
        $region67: #{tpu_custom_call.1} parent=63 // pred_region
          %s408 = sand.u32 %s36, 1
          %s409 = scalar_lea.sflag [#allocation3], %s408
          %s410 = sand.u32 %s36, 1
          %s411 = smul.addr %s410, 128
          %s412 = scalar_lea.vmem [#allocation2], %s411
          %s413 = smul.u32 8, %s26
          %s415 = ssub.s32 2048, 2048
          %416 = vsyncadd %s409, %s415
          %s417 = smul.addr %s413, 2
          %s418 = smul.addr %s417, 128
          %s419 = scalar_lea.hbm %s0, %s418
          %s420 = sshll.u32 %s412, 4
          %s421 = int_to_ptr.vmem [resolvable:$true] %s420
          %426 = dma.hbm_to_vmem [thread:$0]  %s419, 2048, %s421, %s409, 128, 128, 8
        $region68: #{tpu_custom_call.1} parent=63 // pred_fallthru
          _
      $region64: #{tpu_custom_call.1} parent=5 // pred_fallthru
        _
      %p427 = scmp.le.s32.totalorder 1, %s26
      %p428 = scmp.lt.s32.totalorder %s26, 3
      %p429 = pnand %p427, %p428
      %p430 = pneg %p429
      // Predicated region
      $region69: #{tpu_custom_call.1} parent=5 // pred_check
        _
      $region70: #{tpu_custom_call.1} parent=5 // pred_check_branch
        %432 = sbr.rel (%p429) target = $region72
      $region71: #{tpu_custom_call.1} parent=5 // pred_region
        %s433 = ssub.s32 %s26, 1
        %s434 = sand.u32 %s39, 1
        %s435 = scalar_lea.sflag [#allocation3], %s434
        %s436 = sand.u32 %s39, 1
        %s437 = smul.addr %s436, 128
        %s438 = scalar_lea.vmem [#allocation2], %s437
        // Predicated region
        $region73: #{tpu_custom_call.1} parent=71 // pred_check
          %p439 = pneg %p52
        $region74: #{tpu_custom_call.1} parent=71 // pred_check_branch
          %441 = sbr.rel (%p439) target = $region76
        $region75: #{tpu_custom_call.1} parent=71 // pred_region
          %442 = dma.done %s435, 2048
        $region76: #{tpu_custom_call.1} parent=71 // pred_fallthru
          _
        // Predicated region
        $region77: #{tpu_custom_call.1} parent=71 // pred_check
          %p443 = pneg %p241
        $region78: #{tpu_custom_call.1} parent=71 // pred_check_branch
          %445 = sbr.rel (%p443) target = $region80
        $region79: #{tpu_custom_call.1} parent=71 // pred_region
          %446 = dma.done [#allocation6], 4096
        $region80: #{tpu_custom_call.1} parent=71 // pred_fallthru
          _
        // Predicated region
        $region81: #{tpu_custom_call.1} parent=71 // pred_check
          %p447 = pneg %p283
        $region82: #{tpu_custom_call.1} parent=71 // pred_check_branch
          %449 = sbr.rel (%p447) target = $region84
        $region83: #{tpu_custom_call.1} parent=71 // pred_region
          %450 = dma.done [#allocation6], 4096
        $region84: #{tpu_custom_call.1} parent=71 // pred_fallthru
          _
        %s451 = sand.u32 %s39, 1
        %s452 = scalar_lea.sflag [#allocation3], %s451
        %s453 = sand.u32 %s39, 1
        %s454 = smul.addr %s453, 128
        %s455 = scalar_lea.vmem [#allocation2], %s454
        %p456 = pneg %p52
        %p457 = pneg %p49
        %p458 = pneg %p73
        %p459 = pneg %p70
        %p460 = pneg %p94
        %p461 = pneg %p91
        %p462 = pneg %p115
        %p463 = pneg %p112
        %p464 = pneg %p136
        %p465 = pneg %p133
        %p466 = pneg %p157
        %p467 = pneg %p154
        %p468 = pneg %p178
        %p469 = pneg %p175
        %p470 = pneg %p199
        %p471 = pneg %p196
        %p472 = pneg %p220
        %p473 = pneg %p217
        %p474 = pneg %p241
        %p475 = pneg %p238
        %p476 = pneg %p262
        %p477 = pneg %p259
        %p478 = pneg %p283
        %p479 = pneg %p280
        %p480 = pneg %p304
        %p481 = pneg %p301
        %p482 = pneg %p330
        %p483 = pneg %p327
        %s484 = sand.u32 %s317, 1
        %s485 = scalar_lea.sflag [#allocation4], %s484
        %s486 = sand.u32 %s317, 1
        %s487 = smul.addr %s486, 128
        %s488 = scalar_lea.vmem [#allocation8], %s487
        %s489 = smul.u32 8, %s31
        %s490 = smul.u32 8, %s31
        %v491 = vld [vmem:[%s438] sm:$0xff]
        %v492 = vld [vmem:[%s438 + $0x8] sm:$0xff]
        %v493 = vld [vmem:[%s438 + $0x10] sm:$0xff]
        %v494 = vld [vmem:[%s438 + $0x18] sm:$0xff]
        %v495 = vld [vmem:[%s438 + $0x20] sm:$0xff]
        %v496 = vld [vmem:[%s438 + $0x28] sm:$0xff]
        %v497 = vld [vmem:[%s438 + $0x30] sm:$0xff]
        %v498 = vld [vmem:[%s438 + $0x38] sm:$0xff]
        %v499 = vld [vmem:[%s438 + $0x40] sm:$0xff]
        %v500 = vld [vmem:[%s438 + $0x48] sm:$0xff]
        %v501 = vld [vmem:[%s438 + $0x50] sm:$0xff]
        %v502 = vld [vmem:[%s438 + $0x58] sm:$0xff]
        %v503 = vld [vmem:[%s438 + $0x60] sm:$0xff]
        %v504 = vld [vmem:[%s438 + $0x68] sm:$0xff]
        %v505 = vld [vmem:[%s438 + $0x70] sm:$0xff]
        %v506 = vld [vmem:[%s438 + $0x78] sm:$0xff]
        %v507 = vld [vmem:[%s1] sm:$0x1]
        %v508 = vld [vmem:[%s2] sm:$0x1]
        %509 = vadd.xlane.f32.xlu0 %v491
        %v510 = vpop.xlane.xlu0 %509
        %511 = vadd.xlane.f32.xlu0 %v492
        %v512 = vpop.xlane.xlu0 %511
        %513 = vadd.xlane.f32.xlu0 %v493
        %v514 = vpop.xlane.xlu0 %513
        %515 = vadd.xlane.f32.xlu0 %v494
        %v516 = vpop.xlane.xlu0 %515
        %517 = vadd.xlane.f32.xlu0 %v495
        %v518 = vpop.xlane.xlu0 %517
        %519 = vadd.xlane.f32.xlu0 %v496
        %v520 = vpop.xlane.xlu0 %519
        %521 = vadd.xlane.f32.xlu0 %v497
        %v522 = vpop.xlane.xlu0 %521
        %523 = vadd.xlane.f32.xlu0 %v498
        %v524 = vpop.xlane.xlu0 %523
        %525 = vadd.xlane.f32.xlu0 %v499
        %v526 = vpop.xlane.xlu0 %525
        %527 = vadd.xlane.f32.xlu0 %v500
        %v528 = vpop.xlane.xlu0 %527
        %529 = vadd.xlane.f32.xlu0 %v501
        %v530 = vpop.xlane.xlu0 %529
        %531 = vadd.xlane.f32.xlu0 %v502
        %v532 = vpop.xlane.xlu0 %531
        %533 = vadd.xlane.f32.xlu0 %v503
        %v534 = vpop.xlane.xlu0 %533
        %535 = vadd.xlane.f32.xlu0 %v504
        %v536 = vpop.xlane.xlu0 %535
        %537 = vadd.xlane.f32.xlu0 %v505
        %v538 = vpop.xlane.xlu0 %537
        %539 = vadd.xlane.f32.xlu0 %v506
        %v540 = vpop.xlane.xlu0 %539
        %v541 = vrcp.pop 128.0
        %v542 = vmul.f32 %v510, %v541
        %v543 = vmul.f32 %v512, %v541
        %v544 = vmul.f32 %v514, %v541
        %v545 = vmul.f32 %v516, %v541
        %v546 = vmul.f32 %v518, %v541
        %v547 = vmul.f32 %v520, %v541
        %v548 = vmul.f32 %v522, %v541
        %v549 = vmul.f32 %v524, %v541
        %v550 = vmul.f32 %v526, %v541
        %v551 = vmul.f32 %v528, %v541
        %v552 = vmul.f32 %v530, %v541
        %v553 = vmul.f32 %v532, %v541
        %v554 = vmul.f32 %v534, %v541
        %v555 = vmul.f32 %v536, %v541
        %v556 = vmul.f32 %v538, %v541
        %v557 = vmul.f32 %v540, %v541
        %v558 = vsub.f32 %v491, %v542
        %v559 = vsub.f32 %v492, %v543
        %v560 = vsub.f32 %v493, %v544
        %v561 = vsub.f32 %v494, %v545
        %v562 = vsub.f32 %v495, %v546
        %v563 = vsub.f32 %v496, %v547
        %v564 = vsub.f32 %v497, %v548
        %v565 = vsub.f32 %v498, %v549
        %v566 = vsub.f32 %v499, %v550
        %v567 = vsub.f32 %v500, %v551
        %v568 = vsub.f32 %v501, %v552
        %v569 = vsub.f32 %v502, %v553
        %v570 = vsub.f32 %v503, %v554
        %v571 = vsub.f32 %v504, %v555
        %v572 = vsub.f32 %v505, %v556
        %v573 = vsub.f32 %v506, %v557
        %v574 = vmul.f32 %v558, %v558
        %v575 = vmul.f32 %v559, %v559
        %v576 = vmul.f32 %v560, %v560
        %v577 = vmul.f32 %v561, %v561
        %v578 = vmul.f32 %v562, %v562
        %v579 = vmul.f32 %v563, %v563
        %v580 = vmul.f32 %v564, %v564
        %v581 = vmul.f32 %v565, %v565
        %v582 = vmul.f32 %v566, %v566
        %v583 = vmul.f32 %v567, %v567
        %v584 = vmul.f32 %v568, %v568
        %v585 = vmul.f32 %v569, %v569
        %v586 = vmul.f32 %v570, %v570
        %v587 = vmul.f32 %v571, %v571
        %v588 = vmul.f32 %v572, %v572
        %v589 = vmul.f32 %v573, %v573
        %590 = vadd.xlane.f32.xlu0 %v574
        %v591 = vpop.xlane.xlu0 %590
        %592 = vadd.xlane.f32.xlu0 %v575
        %v593 = vpop.xlane.xlu0 %592
        %594 = vadd.xlane.f32.xlu0 %v576
        %v595 = vpop.xlane.xlu0 %594
        %596 = vadd.xlane.f32.xlu0 %v577
        %v597 = vpop.xlane.xlu0 %596
        %598 = vadd.xlane.f32.xlu0 %v578
        %v599 = vpop.xlane.xlu0 %598
        %600 = vadd.xlane.f32.xlu0 %v579
        %v601 = vpop.xlane.xlu0 %600
        %602 = vadd.xlane.f32.xlu0 %v580
        %v603 = vpop.xlane.xlu0 %602
        %604 = vadd.xlane.f32.xlu0 %v581
        %v605 = vpop.xlane.xlu0 %604
        %606 = vadd.xlane.f32.xlu0 %v582
        %v607 = vpop.xlane.xlu0 %606
        %608 = vadd.xlane.f32.xlu0 %v583
        %v609 = vpop.xlane.xlu0 %608
        %610 = vadd.xlane.f32.xlu0 %v584
        %v611 = vpop.xlane.xlu0 %610
        %612 = vadd.xlane.f32.xlu0 %v585
        %v613 = vpop.xlane.xlu0 %612
        %614 = vadd.xlane.f32.xlu0 %v586
        %v615 = vpop.xlane.xlu0 %614
        %616 = vadd.xlane.f32.xlu0 %v587
        %v617 = vpop.xlane.xlu0 %616
        %618 = vadd.xlane.f32.xlu0 %v588
        %v619 = vpop.xlane.xlu0 %618
        %620 = vadd.xlane.f32.xlu0 %v589
        %v621 = vpop.xlane.xlu0 %620
        %v622 = vmul.f32 %v591, %v541
        %v623 = vmul.f32 %v593, %v541
        %v624 = vmul.f32 %v595, %v541
        %v625 = vmul.f32 %v597, %v541
        %v626 = vmul.f32 %v599, %v541
        %v627 = vmul.f32 %v601, %v541
        %v628 = vmul.f32 %v603, %v541
        %v629 = vmul.f32 %v605, %v541
        %v630 = vmul.f32 %v607, %v541
        %v631 = vmul.f32 %v609, %v541
        %v632 = vmul.f32 %v611, %v541
        %v633 = vmul.f32 %v613, %v541
        %v634 = vmul.f32 %v615, %v541
        %v635 = vmul.f32 %v617, %v541
        %v636 = vmul.f32 %v619, %v541
        %v637 = vmul.f32 %v621, %v541
        %v638 = vadd.f32 %v622, 1e-05
        %v639 = vadd.f32 %v623, 1e-05
        %v640 = vadd.f32 %v624, 1e-05
        %v641 = vadd.f32 %v625, 1e-05
        %v642 = vadd.f32 %v626, 1e-05
        %v643 = vadd.f32 %v627, 1e-05
        %v644 = vadd.f32 %v628, 1e-05
        %v645 = vadd.f32 %v629, 1e-05
        %v646 = vadd.f32 %v630, 1e-05
        %v647 = vadd.f32 %v631, 1e-05
        %v648 = vadd.f32 %v632, 1e-05
        %v649 = vadd.f32 %v633, 1e-05
        %v650 = vadd.f32 %v634, 1e-05
        %v651 = vadd.f32 %v635, 1e-05
        %v652 = vadd.f32 %v636, 1e-05
        %v653 = vadd.f32 %v637, 1e-05
        %v654 = vrsqrt.pop %v638
        %v655 = vrsqrt.pop %v639
        %v656 = vrsqrt.pop %v640
        %v657 = vrsqrt.pop %v641
        %v658 = vrsqrt.pop %v642
        %v659 = vrsqrt.pop %v643
        %v660 = vrsqrt.pop %v644
        %v661 = vrsqrt.pop %v645
        %v662 = vrsqrt.pop %v646
        %v663 = vrsqrt.pop %v647
        %v664 = vrsqrt.pop %v648
        %v665 = vrsqrt.pop %v649
        %v666 = vrsqrt.pop %v650
        %v667 = vrsqrt.pop %v651
        %v668 = vrsqrt.pop %v652
        %v669 = vrsqrt.pop %v653
        %v670 = vmul.f32 %v558, %v654
        %v671 = vmul.f32 %v559, %v655
        %v672 = vmul.f32 %v560, %v656
        %v673 = vmul.f32 %v561, %v657
        %v674 = vmul.f32 %v562, %v658
        %v675 = vmul.f32 %v563, %v659
        %v676 = vmul.f32 %v564, %v660
        %v677 = vmul.f32 %v565, %v661
        %v678 = vmul.f32 %v566, %v662
        %v679 = vmul.f32 %v567, %v663
        %v680 = vmul.f32 %v568, %v664
        %v681 = vmul.f32 %v569, %v665
        %v682 = vmul.f32 %v570, %v666
        %v683 = vmul.f32 %v571, %v667
        %v684 = vmul.f32 %v572, %v668
        %v685 = vmul.f32 %v573, %v669
        %v687 = vlaneseq
        %v688 = vshrl.u32 %v687, 7
        %v689 = vsub.s32 0, %v688
        %v690 = vrot.slane %v507, %v689
        %v692 = vmul.f32 %v670, %v690
        %v693 = vmul.f32 %v671, %v690
        %v694 = vmul.f32 %v672, %v690
        %v695 = vmul.f32 %v673, %v690
        %v696 = vmul.f32 %v674, %v690
        %v697 = vmul.f32 %v675, %v690
        %v698 = vmul.f32 %v676, %v690
        %v699 = vmul.f32 %v677, %v690
        %v700 = vmul.f32 %v678, %v690
        %v701 = vmul.f32 %v679, %v690
        %v702 = vmul.f32 %v680, %v690
        %v703 = vmul.f32 %v681, %v690
        %v704 = vmul.f32 %v682, %v690
        %v705 = vmul.f32 %v683, %v690
        %v706 = vmul.f32 %v684, %v690
        %v707 = vmul.f32 %v685, %v690
        %v709 = vlaneseq
        %v710 = vshrl.u32 %v709, 7
        %v711 = vsub.s32 0, %v710
        %v712 = vrot.slane %v508, %v711
        %v714 = vadd.f32 %v692, %v712
        %v715 = vadd.f32 %v693, %v712
        %v716 = vadd.f32 %v694, %v712
        %v717 = vadd.f32 %v695, %v712
        %v718 = vadd.f32 %v696, %v712
        %v719 = vadd.f32 %v697, %v712
        %v720 = vadd.f32 %v698, %v712
        %v721 = vadd.f32 %v699, %v712
        %v722 = vadd.f32 %v700, %v712
        %v723 = vadd.f32 %v701, %v712
        %v724 = vadd.f32 %v702, %v712
        %v725 = vadd.f32 %v703, %v712
        %v726 = vadd.f32 %v704, %v712
        %v727 = vadd.f32 %v705, %v712
        %v728 = vadd.f32 %v706, %v712
        %v729 = vadd.f32 %v707, %v712
        %v730 = vld [vmem:[%s3] sm:$0xff]
        %v731 = vld [vmem:[%s3 + $0x8] sm:$0xff]
        %v732 = vld [vmem:[%s3 + $0x10] sm:$0xff]
        %v733 = vld [vmem:[%s3 + $0x18] sm:$0xff]
        %v734 = vld [vmem:[%s3 + $0x20] sm:$0xff]
        %v735 = vld [vmem:[%s3 + $0x28] sm:$0xff]
        %v736 = vld [vmem:[%s3 + $0x30] sm:$0xff]
        %v737 = vld [vmem:[%s3 + $0x38] sm:$0xff]
        %v738 = vld [vmem:[%s5] sm:$0xff]
        %v739 = vld [vmem:[%s5 + $0x8] sm:$0xff]
        %v740 = vld [vmem:[%s4] sm:$0xff]
        %v741 = vld [vmem:[%s4 + $0x8] sm:$0xff]
        %v742 = vld [vmem:[%s4 + $0x10] sm:$0xff]
        %v743 = vld [vmem:[%s4 + $0x18] sm:$0xff]
        %v744 = vld [vmem:[%s4 + $0x20] sm:$0xff]
        %v745 = vld [vmem:[%s4 + $0x28] sm:$0xff]
        %v746 = vld [vmem:[%s4 + $0x30] sm:$0xff]
        %v747 = vld [vmem:[%s4 + $0x38] sm:$0xff]
        %749 = vset.pattern.permute.xlu0 0
        %750 = vperm.xlu0 %749, %v740
        %v751 = vpop.permute.xlu0 %750
        %754 = vset.pattern.permute.xlu0 0
        %755 = vperm.xlu0 %754, %v741
        %v756 = vpop.permute.xlu0 %755
        %759 = vset.pattern.permute.xlu0 0
        %760 = vperm.xlu0 %759, %v742
        %v761 = vpop.permute.xlu0 %760
        %764 = vset.pattern.permute.xlu0 0
        %765 = vperm.xlu0 %764, %v743
        %v766 = vpop.permute.xlu0 %765
        %769 = vset.pattern.permute.xlu0 0
        %770 = vperm.xlu0 %769, %v744
        %v771 = vpop.permute.xlu0 %770
        %774 = vset.pattern.permute.xlu0 0
        %775 = vperm.xlu0 %774, %v745
        %v776 = vpop.permute.xlu0 %775
        %779 = vset.pattern.permute.xlu0 0
        %780 = vperm.xlu0 %779, %v746
        %v781 = vpop.permute.xlu0 %780
        %784 = vset.pattern.permute.xlu0 0
        %785 = vperm.xlu0 %784, %v747
        %v786 = vpop.permute.xlu0 %785
        %vm788 = vcmask 130048
        %v790 = vsel %vm788, %v730, 0
        %v793 = vsel %vm788, %v731, 0
        %v796 = vsel %vm788, %v732, 0
        %v799 = vsel %vm788, %v733, 0
        %v802 = vsel %vm788, %v734, 0
        %v805 = vsel %vm788, %v735, 0
        %v808 = vsel %vm788, %v736, 0
        %v811 = vsel %vm788, %v737, 0
        %813 = vmatprep.subr.mxu0 0.0
        %814 = vmatpush1.msra.mxu0 %v714
        %815 = vmatprep.subr.mxu0 0.0
        %816 = vmatpush1.msra.mxu0 %v715
        %817 = vmatprep.subr.mxu0 0.0
        %818 = vmatpush1.msra.mxu0 0.0
        %819 = vmatprep.subr.mxu0 0.0
        %820 = vmatpush1.msra.mxu0 0.0
        %821 = vmatprep.subr.mxu0 0.0
        %822 = vmatpush1.msra.mxu0 0.0
        %823 = vmatprep.subr.mxu0 0.0
        %824 = vmatpush1.msra.mxu0 0.0
        %825 = vmatprep.subr.mxu0 0.0
        %826 = vmatpush1.msra.mxu0 0.0
        %827 = vmatprep.subr.mxu0 0.0
        %828 = vmatpush1.msra.mxu0 0.0
        %829 = vmatprep.subr.mxu0 0.0
        %830 = vmatpush1.msra.mxu0 0.0
        %831 = vmatprep.subr.mxu0 0.0
        %832 = vmatpush1.msra.mxu0 0.0
        %833 = vmatprep.subr.mxu0 0.0
        %834 = vmatpush1.msra.mxu0 0.0
        %835 = vmatprep.subr.mxu0 0.0
        %836 = vmatpush1.msra.mxu0 0.0
        %837 = vmatprep.subr.mxu0 0.0
        %838 = vmatpush1.msra.mxu0 0.0
        %839 = vmatprep.subr.mxu0 0.0
        %840 = vmatpush1.msra.mxu0 0.0
        %841 = vmatprep.subr.mxu0 0.0
        %842 = vmatpush1.msra.mxu0 0.0
        %843 = vmatprep.subr.mxu0 0.0
        %844 = vmatpush1.msra.mxu0 0.0
        %845 = vmatprep.subr.mxu0 0.0
        %846 = vmatpush1.msra.mxu0 0.0
        %847 = vmatprep.subr.mxu0 0.0
        %848 = vmatpush1.msra.mxu0 0.0
        %849 = vmatprep.subr.mxu0 0.0
        %850 = vmatpush1.msra.mxu0 0.0
        %851 = vmatprep.subr.mxu0 0.0
        %852 = vmatpush1.msra.mxu0 0.0
        %853 = vmatprep.subr.mxu0 0.0
        %854 = vmatpush1.msra.mxu0 0.0
        %855 = vmatprep.subr.mxu0 0.0
        %856 = vmatpush1.msra.mxu0 0.0
        %857 = vmatprep.subr.mxu0 0.0
        %858 = vmatpush1.msra.mxu0 0.0
        %859 = vmatprep.subr.mxu0 0.0
        %860 = vmatpush1.msra.mxu0 0.0
        %861 = vmatprep.subr.mxu0 0.0
        %862 = vmatpush1.msra.mxu0 0.0
        %863 = vmatprep.subr.mxu0 0.0
        %864 = vmatpush1.msra.mxu0 0.0
        %865 = vmatprep.subr.mxu0 0.0
        %866 = vmatpush1.msra.mxu0 0.0
        %867 = vmatprep.subr.mxu0 0.0
        %868 = vmatpush1.msra.mxu0 0.0
        %869 = vmatprep.subr.mxu0 0.0
        %870 = vmatpush1.msra.mxu0 0.0
        %871 = vmatprep.subr.mxu0 0.0
        %872 = vmatpush1.msra.mxu0 0.0
        %873 = vmatprep.subr.mxu0 0.0
        %874 = vmatpush1.msra.mxu0 0.0
        %875 = vmatprep.subr.mxu0 0.0
        %876 = vmatpush1.msra.mxu0 0.0
        %877 = vmatprep.mubr.f32.mxu0 0.0
        %878 = vmatmul.mubr.f32.gmra.mrb[0].mxu0 %v790
        %v879 = vpop.f32.mrb[0].mxu0
        %v880 = vadd.f32 %v751, %v879
        %v881 = vpop.f32.mrb[0].mxu0
        %882 = vmatprep.mubr.f32.mxu0 0.0
        %883 = vmatmul.mubr.f32.gmra.mrb[0].mxu0 %v793
        %v884 = vpop.f32.mrb[0].mxu0
        %v885 = vadd.f32 %v756, %v884
        %v886 = vpop.f32.mrb[0].mxu0
        %887 = vmatprep.mubr.f32.mxu0 0.0
        %888 = vmatmul.mubr.f32.gmra.mrb[0].mxu0 %v796
        %v889 = vpop.f32.mrb[0].mxu0
        %v890 = vadd.f32 %v761, %v889
        %v891 = vpop.f32.mrb[0].mxu0
        %892 = vmatprep.mubr.f32.mxu0 0.0
        %893 = vmatmul.mubr.f32.gmra.mrb[0].mxu0 %v799
        %v894 = vpop.f32.mrb[0].mxu0
        %v895 = vadd.f32 %v766, %v894
        %v896 = vpop.f32.mrb[0].mxu0
        %897 = vmatprep.mubr.f32.mxu0 0.0
        %898 = vmatmul.mubr.f32.gmra.mrb[0].mxu0 %v802
        %v899 = vpop.f32.mrb[0].mxu0
        %v900 = vadd.f32 %v771, %v899
        %v901 = vpop.f32.mrb[0].mxu0
        %902 = vmatprep.mubr.f32.mxu0 0.0
        %903 = vmatmul.mubr.f32.gmra.mrb[0].mxu0 %v805
        %v904 = vpop.f32.mrb[0].mxu0
        %v905 = vadd.f32 %v776, %v904
        %v906 = vpop.f32.mrb[0].mxu0
        %907 = vmatprep.mubr.f32.mxu0 0.0
        %908 = vmatmul.mubr.f32.gmra.mrb[0].mxu0 %v808
        %v909 = vpop.f32.mrb[0].mxu0
        %v910 = vadd.f32 %v781, %v909
        %v911 = vpop.f32.mrb[0].mxu0
        %912 = vmatprep.mubr.f32.mxu0 0.0
        %913 = vmatmul.mubr.f32.gmra.mrb[0].mxu0 %v811
        %v914 = vpop.f32.mrb[0].mxu0
        %v915 = vadd.f32 %v786, %v914
        %v916 = vpop.f32.mrb[0].mxu0
        %917 = vdwg.mxu0
        %918 = vmatprep.subr.mxu0 0.0
        %919 = vmatpush1.msra.mxu0 %v716
        %920 = vmatprep.subr.mxu0 0.0
        %921 = vmatpush1.msra.mxu0 %v717
        %922 = vmatprep.subr.mxu0 0.0
        %923 = vmatpush1.msra.mxu0 0.0
        %924 = vmatprep.subr.mxu0 0.0
        %925 = vmatpush1.msra.mxu0 0.0
        %926 = vmatprep.subr.mxu0 0.0
        %927 = vmatpush1.msra.mxu0 0.0
        %928 = vmatprep.subr.mxu0 0.0
        %929 = vmatpush1.msra.mxu0 0.0
        %930 = vmatprep.subr.mxu0 0.0
        %931 = vmatpush1.msra.mxu0 0.0
        %932 = vmatprep.subr.mxu0 0.0
        %933 = vmatpush1.msra.mxu0 0.0
        %934 = vmatprep.subr.mxu0 0.0
        %935 = vmatpush1.msra.mxu0 0.0
        %936 = vmatprep.subr.mxu0 0.0
        %937 = vmatpush1.msra.mxu0 0.0
        %938 = vmatprep.subr.mxu0 0.0
        %939 = vmatpush1.msra.mxu0 0.0
        %940 = vmatprep.subr.mxu0 0.0
        %941 = vmatpush1.msra.mxu0 0.0
        %942 = vmatprep.subr.mxu0 0.0
        %943 = vmatpush1.msra.mxu0 0.0
        %944 = vmatprep.subr.mxu0 0.0
        %945 = vmatpush1.msra.mxu0 0.0
        %946 = vmatprep.subr.mxu0 0.0
        %947 = vmatpush1.msra.mxu0 0.0
        %948 = vmatprep.subr.mxu0 0.0
        %949 = vmatpush1.msra.mxu0 0.0
        %950 = vmatprep.subr.mxu0 0.0
        %951 = vmatpush1.msra.mxu0 0.0
        %952 = vmatprep.subr.mxu0 0.0
        %953 = vmatpush1.msra.mxu0 0.0
        %954 = vmatprep.subr.mxu0 0.0
        %955 = vmatpush1.msra.mxu0 0.0
        %956 = vmatprep.subr.mxu0 0.0
        %957 = vmatpush1.msra.mxu0 0.0
        %958 = vmatprep.subr.mxu0 0.0
        %959 = vmatpush1.msra.mxu0 0.0
        %960 = vmatprep.subr.mxu0 0.0
        %961 = vmatpush1.msra.mxu0 0.0
        %962 = vmatprep.subr.mxu0 0.0
        %963 = vmatpush1.msra.mxu0 0.0
        %964 = vmatprep.subr.mxu0 0.0
        %965 = vmatpush1.msra.mxu0 0.0
        %966 = vmatprep.subr.mxu0 0.0
        %967 = vmatpush1.msra.mxu0 0.0
        %968 = vmatprep.subr.mxu0 0.0
        %969 = vmatpush1.msra.mxu0 0.0
        %970 = vmatprep.subr.mxu0 0.0
        %971 = vmatpush1.msra.mxu0 0.0
        %972 = vmatprep.subr.mxu0 0.0
        %973 = vmatpush1.msra.mxu0 0.0
        %974 = vmatprep.subr.mxu0 0.0
        %975 = vmatpush1.msra.mxu0 0.0
        %976 = vmatprep.subr.mxu0 0.0
        %977 = vmatpush1.msra.mxu0 0.0
        %978 = vmatprep.subr.mxu0 0.0
        %979 = vmatpush1.msra.mxu0 0.0
        %980 = vmatprep.subr.mxu0 0.0
        %981 = vmatpush1.msra.mxu0 0.0
        %982 = vmatprep.mubr.f32.mxu0 0.0
        %983 = vmatmul.mubr.f32.gmra.mrb[0].mxu0 %v790
        %v984 = vpop.f32.mrb[0].mxu0
        %v985 = vadd.f32 %v751, %v984
        %v986 = vpop.f32.mrb[0].mxu0
        %987 = vmatprep.mubr.f32.mxu0 0.0
        %988 = vmatmul.mubr.f32.gmra.mrb[0].mxu0 %v793
        %v989 = vpop.f32.mrb[0].mxu0
        %v990 = vadd.f32 %v756, %v989
        %v991 = vpop.f32.mrb[0].mxu0
        %992 = vmatprep.mubr.f32.mxu0 0.0
        %993 = vmatmul.mubr.f32.gmra.mrb[0].mxu0 %v796
        %v994 = vpop.f32.mrb[0].mxu0
        %v995 = vadd.f32 %v761, %v994
        %v996 = vpop.f32.mrb[0].mxu0
        %997 = vmatprep.mubr.f32.mxu0 0.0
        %998 = vmatmul.mubr.f32.gmra.mrb[0].mxu0 %v799
        %v999 = vpop.f32.mrb[0].mxu0
        %v1000 = vadd.f32 %v766, %v999
        %v1001 = vpop.f32.mrb[0].mxu0
        %1002 = vmatprep.mubr.f32.mxu0 0.0
        %1003 = vmatmul.mubr.f32.gmra.mrb[0].mxu0 %v802
        %v1004 = vpop.f32.mrb[0].mxu0
        %v1005 = vadd.f32 %v771, %v1004
        %v1006 = vpop.f32.mrb[0].mxu0
        %1007 = vmatprep.mubr.f32.mxu0 0.0
        %1008 = vmatmul.mubr.f32.gmra.mrb[0].mxu0 %v805
        %v1009 = vpop.f32.mrb[0].mxu0
        %v1010 = vadd.f32 %v776, %v1009
        %v1011 = vpop.f32.mrb[0].mxu0
        %1012 = vmatprep.mubr.f32.mxu0 0.0
        %1013 = vmatmul.mubr.f32.gmra.mrb[0].mxu0 %v808
        %v1014 = vpop.f32.mrb[0].mxu0
        %v1015 = vadd.f32 %v781, %v1014
        %v1016 = vpop.f32.mrb[0].mxu0
        %1017 = vmatprep.mubr.f32.mxu0 0.0
        %1018 = vmatmul.mubr.f32.gmra.mrb[0].mxu0 %v811
        %v1019 = vpop.f32.mrb[0].mxu0
        %v1020 = vadd.f32 %v786, %v1019
        %v1021 = vpop.f32.mrb[0].mxu0
        %1022 = vdwg.mxu0
        %1023 = vmatprep.subr.mxu0 0.0
        %1024 = vmatpush1.msra.mxu0 %v718
        %1025 = vmatprep.subr.mxu0 0.0
        %1026 = vmatpush1.msra.mxu0 %v719
        %1027 = vmatprep.subr.mxu0 0.0
        %1028 = vmatpush1.msra.mxu0 0.0
        %1029 = vmatprep.subr.mxu0 0.0
        %1030 = vmatpush1.msra.mxu0 0.0
        %1031 = vmatprep.subr.mxu0 0.0
        %1032 = vmatpush1.msra.mxu0 0.0
        %1033 = vmatprep.subr.mxu0 0.0
        %1034 = vmatpush1.msra.mxu0 0.0
        %1035 = vmatprep.subr.mxu0 0.0
        %1036 = vmatpush1.msra.mxu0 0.0
        %1037 = vmatprep.subr.mxu0 0.0
        %1038 = vmatpush1.msra.mxu0 0.0
        %1039 = vmatprep.subr.mxu0 0.0
        %1040 = vmatpush1.msra.mxu0 0.0
        %1041 = vmatprep.subr.mxu0 0.0
        %1042 = vmatpush1.msra.mxu0 0.0
        %1043 = vmatprep.subr.mxu0 0.0
        %1044 = vmatpush1.msra.mxu0 0.0
        %1045 = vmatprep.subr.mxu0 0.0
        %1046 = vmatpush1.msra.mxu0 0.0
        %1047 = vmatprep.subr.mxu0 0.0
        %1048 = vmatpush1.msra.mxu0 0.0
        %1049 = vmatprep.subr.mxu0 0.0
        %1050 = vmatpush1.msra.mxu0 0.0
        %1051 = vmatprep.subr.mxu0 0.0
        %1052 = vmatpush1.msra.mxu0 0.0
        %1053 = vmatprep.subr.mxu0 0.0
        %1054 = vmatpush1.msra.mxu0 0.0
        %1055 = vmatprep.subr.mxu0 0.0
        %1056 = vmatpush1.msra.mxu0 0.0
        %1057 = vmatprep.subr.mxu0 0.0
        %1058 = vmatpush1.msra.mxu0 0.0
        %1059 = vmatprep.subr.mxu0 0.0
        %1060 = vmatpush1.msra.mxu0 0.0
        %1061 = vmatprep.subr.mxu0 0.0
        %1062 = vmatpush1.msra.mxu0 0.0
        %1063 = vmatprep.subr.mxu0 0.0
        %1064 = vmatpush1.msra.mxu0 0.0
        %1065 = vmatprep.subr.mxu0 0.0
        %1066 = vmatpush1.msra.mxu0 0.0
        %1067 = vmatprep.subr.mxu0 0.0
        %1068 = vmatpush1.msra.mxu0 0.0
        %1069 = vmatprep.subr.mxu0 0.0
        %1070 = vmatpush1.msra.mxu0 0.0
        %1071 = vmatprep.subr.mxu0 0.0
        %1072 = vmatpush1.msra.mxu0 0.0
        %1073 = vmatprep.subr.mxu0 0.0
        %1074 = vmatpush1.msra.mxu0 0.0
        %1075 = vmatprep.subr.mxu0 0.0
        %1076 = vmatpush1.msra.mxu0 0.0
        %1077 = vmatprep.subr.mxu0 0.0
        %1078 = vmatpush1.msra.mxu0 0.0
        %1079 = vmatprep.subr.mxu0 0.0
        %1080 = vmatpush1.msra.mxu0 0.0
        %1081 = vmatprep.subr.mxu0 0.0
        %1082 = vmatpush1.msra.mxu0 0.0
        %1083 = vmatprep.subr.mxu0 0.0
        %1084 = vmatpush1.msra.mxu0 0.0
        %1085 = vmatprep.subr.mxu0 0.0
        %1086 = vmatpush1.msra.mxu0 0.0
        %1087 = vmatprep.mubr.f32.mxu0 0.0
        %1088 = vmatmul.mubr.f32.gmra.mrb[0].mxu0 %v790
        %v1089 = vpop.f32.mrb[0].mxu0
        %v1090 = vadd.f32 %v751, %v1089
        %v1091 = vpop.f32.mrb[0].mxu0
        %1092 = vmatprep.mubr.f32.mxu0 0.0
        %1093 = vmatmul.mubr.f32.gmra.mrb[0].mxu0 %v793
        %v1094 = vpop.f32.mrb[0].mxu0
        %v1095 = vadd.f32 %v756, %v1094
        %v1096 = vpop.f32.mrb[0].mxu0
        %1097 = vmatprep.mubr.f32.mxu0 0.0
        %1098 = vmatmul.mubr.f32.gmra.mrb[0].mxu0 %v796
        %v1099 = vpop.f32.mrb[0].mxu0
        %v1100 = vadd.f32 %v761, %v1099
        %v1101 = vpop.f32.mrb[0].mxu0
        %1102 = vmatprep.mubr.f32.mxu0 0.0
        %1103 = vmatmul.mubr.f32.gmra.mrb[0].mxu0 %v799
        %v1104 = vpop.f32.mrb[0].mxu0
        %v1105 = vadd.f32 %v766, %v1104
        %v1106 = vpop.f32.mrb[0].mxu0
        %1107 = vmatprep.mubr.f32.mxu0 0.0
        %1108 = vmatmul.mubr.f32.gmra.mrb[0].mxu0 %v802
        %v1109 = vpop.f32.mrb[0].mxu0
        %v1110 = vadd.f32 %v771, %v1109
        %v1111 = vpop.f32.mrb[0].mxu0
        %1112 = vmatprep.mubr.f32.mxu0 0.0
        %1113 = vmatmul.mubr.f32.gmra.mrb[0].mxu0 %v805
        %v1114 = vpop.f32.mrb[0].mxu0
        %v1115 = vadd.f32 %v776, %v1114
        %v1116 = vpop.f32.mrb[0].mxu0
        %1117 = vmatprep.mubr.f32.mxu0 0.0
        %1118 = vmatmul.mubr.f32.gmra.mrb[0].mxu0 %v808
        %v1119 = vpop.f32.mrb[0].mxu0
        %v1120 = vadd.f32 %v781, %v1119
        %v1121 = vpop.f32.mrb[0].mxu0
        %1122 = vmatprep.mubr.f32.mxu0 0.0
        %1123 = vmatmul.mubr.f32.gmra.mrb[0].mxu0 %v811
        %v1124 = vpop.f32.mrb[0].mxu0
        %v1125 = vadd.f32 %v786, %v1124
        %v1126 = vpop.f32.mrb[0].mxu0
        %1127 = vdwg.mxu0
        %1128 = vmatprep.subr.mxu0 0.0
        %1129 = vmatpush1.msra.mxu0 %v720
        %1130 = vmatprep.subr.mxu0 0.0
        %1131 = vmatpush1.msra.mxu0 %v721
        %1132 = vmatprep.subr.mxu0 0.0
        %1133 = vmatpush1.msra.mxu0 0.0
        %1134 = vmatprep.subr.mxu0 0.0
        %1135 = vmatpush1.msra.mxu0 0.0
        %1136 = vmatprep.subr.mxu0 0.0
        %1137 = vmatpush1.msra.mxu0 0.0
        %1138 = vmatprep.subr.mxu0 0.0
        %1139 = vmatpush1.msra.mxu0 0.0
        %1140 = vmatprep.subr.mxu0 0.0
        %1141 = vmatpush1.msra.mxu0 0.0
        %1142 = vmatprep.subr.mxu0 0.0
        %1143 = vmatpush1.msra.mxu0 0.0
        %1144 = vmatprep.subr.mxu0 0.0
        %1145 = vmatpush1.msra.mxu0 0.0
        %1146 = vmatprep.subr.mxu0 0.0
        %1147 = vmatpush1.msra.mxu0 0.0
        %1148 = vmatprep.subr.mxu0 0.0
        %1149 = vmatpush1.msra.mxu0 0.0
        %1150 = vmatprep.subr.mxu0 0.0
        %1151 = vmatpush1.msra.mxu0 0.0
        %1152 = vmatprep.subr.mxu0 0.0
        %1153 = vmatpush1.msra.mxu0 0.0
        %1154 = vmatprep.subr.mxu0 0.0
        %1155 = vmatpush1.msra.mxu0 0.0
        %1156 = vmatprep.subr.mxu0 0.0
        %1157 = vmatpush1.msra.mxu0 0.0
        %1158 = vmatprep.subr.mxu0 0.0
        %1159 = vmatpush1.msra.mxu0 0.0
        %1160 = vmatprep.subr.mxu0 0.0
        %1161 = vmatpush1.msra.mxu0 0.0
        %1162 = vmatprep.subr.mxu0 0.0
        %1163 = vmatpush1.msra.mxu0 0.0
        %1164 = vmatprep.subr.mxu0 0.0
        %1165 = vmatpush1.msra.mxu0 0.0
        %1166 = vmatprep.subr.mxu0 0.0
        %1167 = vmatpush1.msra.mxu0 0.0
        %1168 = vmatprep.subr.mxu0 0.0
        %1169 = vmatpush1.msra.mxu0 0.0
        %1170 = vmatprep.subr.mxu0 0.0
        %1171 = vmatpush1.msra.mxu0 0.0
        %1172 = vmatprep.subr.mxu0 0.0
        %1173 = vmatpush1.msra.mxu0 0.0
        %1174 = vmatprep.subr.mxu0 0.0
        %1175 = vmatpush1.msra.mxu0 0.0
        %1176 = vmatprep.subr.mxu0 0.0
        %1177 = vmatpush1.msra.mxu0 0.0
        %1178 = vmatprep.subr.mxu0 0.0
        %1179 = vmatpush1.msra.mxu0 0.0
        %1180 = vmatprep.subr.mxu0 0.0
        %1181 = vmatpush1.msra.mxu0 0.0
        %1182 = vmatprep.subr.mxu0 0.0
        %1183 = vmatpush1.msra.mxu0 0.0
        %1184 = vmatprep.subr.mxu0 0.0
        %1185 = vmatpush1.msra.mxu0 0.0
        %1186 = vmatprep.subr.mxu0 0.0
        %1187 = vmatpush1.msra.mxu0 0.0
        %1188 = vmatprep.subr.mxu0 0.0
        %1189 = vmatpush1.msra.mxu0 0.0
        %1190 = vmatprep.subr.mxu0 0.0
        %1191 = vmatpush1.msra.mxu0 0.0
        %1192 = vmatprep.mubr.f32.mxu0 0.0
        %1193 = vmatmul.mubr.f32.gmra.mrb[0].mxu0 %v790
        %v1194 = vpop.f32.mrb[0].mxu0
        %v1195 = vadd.f32 %v751, %v1194
        %v1196 = vpop.f32.mrb[0].mxu0
        %1197 = vmatprep.mubr.f32.mxu0 0.0
        %1198 = vmatmul.mubr.f32.gmra.mrb[0].mxu0 %v793
        %v1199 = vpop.f32.mrb[0].mxu0
        %v1200 = vadd.f32 %v756, %v1199
        %v1201 = vpop.f32.mrb[0].mxu0
        %1202 = vmatprep.mubr.f32.mxu0 0.0
        %1203 = vmatmul.mubr.f32.gmra.mrb[0].mxu0 %v796
        %v1204 = vpop.f32.mrb[0].mxu0
        %v1205 = vadd.f32 %v761, %v1204
        %v1206 = vpop.f32.mrb[0].mxu0
        %1207 = vmatprep.mubr.f32.mxu0 0.0
        %1208 = vmatmul.mubr.f32.gmra.mrb[0].mxu0 %v799
        %v1209 = vpop.f32.mrb[0].mxu0
        %v1210 = vadd.f32 %v766, %v1209
        %v1211 = vpop.f32.mrb[0].mxu0
        %1212 = vmatprep.mubr.f32.mxu0 0.0
        %1213 = vmatmul.mubr.f32.gmra.mrb[0].mxu0 %v802
        %v1214 = vpop.f32.mrb[0].mxu0
        %v1215 = vadd.f32 %v771, %v1214
        %v1216 = vpop.f32.mrb[0].mxu0
        %1217 = vmatprep.mubr.f32.mxu0 0.0
        %1218 = vmatmul.mubr.f32.gmra.mrb[0].mxu0 %v805
        %v1219 = vpop.f32.mrb[0].mxu0
        %v1220 = vadd.f32 %v776, %v1219
        %v1221 = vpop.f32.mrb[0].mxu0
        %1222 = vmatprep.mubr.f32.mxu0 0.0
        %1223 = vmatmul.mubr.f32.gmra.mrb[0].mxu0 %v808
        %v1224 = vpop.f32.mrb[0].mxu0
        %v1225 = vadd.f32 %v781, %v1224
        %v1226 = vpop.f32.mrb[0].mxu0
        %1227 = vmatprep.mubr.f32.mxu0 0.0
        %1228 = vmatmul.mubr.f32.gmra.mrb[0].mxu0 %v811
        %v1229 = vpop.f32.mrb[0].mxu0
        %v1230 = vadd.f32 %v786, %v1229
        %v1231 = vpop.f32.mrb[0].mxu0
        %1232 = vdwg.mxu0
        %1233 = vmatprep.subr.mxu0 0.0
        %1234 = vmatpush1.msra.mxu0 %v722
        %1235 = vmatprep.subr.mxu0 0.0
        %1236 = vmatpush1.msra.mxu0 %v723
        %1237 = vmatprep.subr.mxu0 0.0
        %1238 = vmatpush1.msra.mxu0 0.0
        %1239 = vmatprep.subr.mxu0 0.0
        %1240 = vmatpush1.msra.mxu0 0.0
        %1241 = vmatprep.subr.mxu0 0.0
        %1242 = vmatpush1.msra.mxu0 0.0
        %1243 = vmatprep.subr.mxu0 0.0
        %1244 = vmatpush1.msra.mxu0 0.0
        %1245 = vmatprep.subr.mxu0 0.0
        %1246 = vmatpush1.msra.mxu0 0.0
        %1247 = vmatprep.subr.mxu0 0.0
        %1248 = vmatpush1.msra.mxu0 0.0
        %1249 = vmatprep.subr.mxu0 0.0
        %1250 = vmatpush1.msra.mxu0 0.0
        %1251 = vmatprep.subr.mxu0 0.0
        %1252 = vmatpush1.msra.mxu0 0.0
        %1253 = vmatprep.subr.mxu0 0.0
        %1254 = vmatpush1.msra.mxu0 0.0
        %1255 = vmatprep.subr.mxu0 0.0
        %1256 = vmatpush1.msra.mxu0 0.0
        %1257 = vmatprep.subr.mxu0 0.0
        %1258 = vmatpush1.msra.mxu0 0.0
        %1259 = vmatprep.subr.mxu0 0.0
        %1260 = vmatpush1.msra.mxu0 0.0
        %1261 = vmatprep.subr.mxu0 0.0
        %1262 = vmatpush1.msra.mxu0 0.0
        %1263 = vmatprep.subr.mxu0 0.0
        %1264 = vmatpush1.msra.mxu0 0.0
        %1265 = vmatprep.subr.mxu0 0.0
        %1266 = vmatpush1.msra.mxu0 0.0
        %1267 = vmatprep.subr.mxu0 0.0
        %1268 = vmatpush1.msra.mxu0 0.0
        %1269 = vmatprep.subr.mxu0 0.0
        %1270 = vmatpush1.msra.mxu0 0.0
        %1271 = vmatprep.subr.mxu0 0.0
        %1272 = vmatpush1.msra.mxu0 0.0
        %1273 = vmatprep.subr.mxu0 0.0
        %1274 = vmatpush1.msra.mxu0 0.0
        %1275 = vmatprep.subr.mxu0 0.0
        %1276 = vmatpush1.msra.mxu0 0.0
        %1277 = vmatprep.subr.mxu0 0.0
        %1278 = vmatpush1.msra.mxu0 0.0
        %1279 = vmatprep.subr.mxu0 0.0
        %1280 = vmatpush1.msra.mxu0 0.0
        %1281 = vmatprep.subr.mxu0 0.0
        %1282 = vmatpush1.msra.mxu0 0.0
        %1283 = vmatprep.subr.mxu0 0.0
        %1284 = vmatpush1.msra.mxu0 0.0
        %1285 = vmatprep.subr.mxu0 0.0
        %1286 = vmatpush1.msra.mxu0 0.0
        %1287 = vmatprep.subr.mxu0 0.0
        %1288 = vmatpush1.msra.mxu0 0.0
        %1289 = vmatprep.subr.mxu0 0.0
        %1290 = vmatpush1.msra.mxu0 0.0
        %1291 = vmatprep.subr.mxu0 0.0
        %1292 = vmatpush1.msra.mxu0 0.0
        %1293 = vmatprep.subr.mxu0 0.0
        %1294 = vmatpush1.msra.mxu0 0.0
        %1295 = vmatprep.subr.mxu0 0.0
        %1296 = vmatpush1.msra.mxu0 0.0
        %1297 = vmatprep.mubr.f32.mxu0 0.0
        %1298 = vmatmul.mubr.f32.gmra.mrb[0].mxu0 %v790
        %v1299 = vpop.f32.mrb[0].mxu0
        %v1300 = vadd.f32 %v751, %v1299
        %v1301 = vpop.f32.mrb[0].mxu0
        %1302 = vmatprep.mubr.f32.mxu0 0.0
        %1303 = vmatmul.mubr.f32.gmra.mrb[0].mxu0 %v793
        %v1304 = vpop.f32.mrb[0].mxu0
        %v1305 = vadd.f32 %v756, %v1304
        %v1306 = vpop.f32.mrb[0].mxu0
        %1307 = vmatprep.mubr.f32.mxu0 0.0
        %1308 = vmatmul.mubr.f32.gmra.mrb[0].mxu0 %v796
        %v1309 = vpop.f32.mrb[0].mxu0
        %v1310 = vadd.f32 %v761, %v1309
        %v1311 = vpop.f32.mrb[0].mxu0
        %1312 = vmatprep.mubr.f32.mxu0 0.0
        %1313 = vmatmul.mubr.f32.gmra.mrb[0].mxu0 %v799
        %v1314 = vpop.f32.mrb[0].mxu0
        %v1315 = vadd.f32 %v766, %v1314
        %v1316 = vpop.f32.mrb[0].mxu0
        %1317 = vmatprep.mubr.f32.mxu0 0.0
        %1318 = vmatmul.mubr.f32.gmra.mrb[0].mxu0 %v802
        %v1319 = vpop.f32.mrb[0].mxu0
        %v1320 = vadd.f32 %v771, %v1319
        %v1321 = vpop.f32.mrb[0].mxu0
        %1322 = vmatprep.mubr.f32.mxu0 0.0
        %1323 = vmatmul.mubr.f32.gmra.mrb[0].mxu0 %v805
        %v1324 = vpop.f32.mrb[0].mxu0
        %v1325 = vadd.f32 %v776, %v1324
        %v1326 = vpop.f32.mrb[0].mxu0
        %1327 = vmatprep.mubr.f32.mxu0 0.0
        %1328 = vmatmul.mubr.f32.gmra.mrb[0].mxu0 %v808
        %v1329 = vpop.f32.mrb[0].mxu0
        %v1330 = vadd.f32 %v781, %v1329
        %v1331 = vpop.f32.mrb[0].mxu0
        %1332 = vmatprep.mubr.f32.mxu0 0.0
        %1333 = vmatmul.mubr.f32.gmra.mrb[0].mxu0 %v811
        %v1334 = vpop.f32.mrb[0].mxu0
        %v1335 = vadd.f32 %v786, %v1334
        %v1336 = vpop.f32.mrb[0].mxu0
        %1337 = vdwg.mxu0
        %1338 = vmatprep.subr.mxu0 0.0
        %1339 = vmatpush1.msra.mxu0 %v724
        %1340 = vmatprep.subr.mxu0 0.0
        %1341 = vmatpush1.msra.mxu0 %v725
        %1342 = vmatprep.subr.mxu0 0.0
        %1343 = vmatpush1.msra.mxu0 0.0
        %1344 = vmatprep.subr.mxu0 0.0
        %1345 = vmatpush1.msra.mxu0 0.0
        %1346 = vmatprep.subr.mxu0 0.0
        %1347 = vmatpush1.msra.mxu0 0.0
        %1348 = vmatprep.subr.mxu0 0.0
        %1349 = vmatpush1.msra.mxu0 0.0
        %1350 = vmatprep.subr.mxu0 0.0
        %1351 = vmatpush1.msra.mxu0 0.0
        %1352 = vmatprep.subr.mxu0 0.0
        %1353 = vmatpush1.msra.mxu0 0.0
        %1354 = vmatprep.subr.mxu0 0.0
        %1355 = vmatpush1.msra.mxu0 0.0
        %1356 = vmatprep.subr.mxu0 0.0
        %1357 = vmatpush1.msra.mxu0 0.0
        %1358 = vmatprep.subr.mxu0 0.0
        %1359 = vmatpush1.msra.mxu0 0.0
        %1360 = vmatprep.subr.mxu0 0.0
        %1361 = vmatpush1.msra.mxu0 0.0
        %1362 = vmatprep.subr.mxu0 0.0
        %1363 = vmatpush1.msra.mxu0 0.0
        %1364 = vmatprep.subr.mxu0 0.0
        %1365 = vmatpush1.msra.mxu0 0.0
        %1366 = vmatprep.subr.mxu0 0.0
        %1367 = vmatpush1.msra.mxu0 0.0
        %1368 = vmatprep.subr.mxu0 0.0
        %1369 = vmatpush1.msra.mxu0 0.0
        %1370 = vmatprep.subr.mxu0 0.0
        %1371 = vmatpush1.msra.mxu0 0.0
        %1372 = vmatprep.subr.mxu0 0.0
        %1373 = vmatpush1.msra.mxu0 0.0
        %1374 = vmatprep.subr.mxu0 0.0
        %1375 = vmatpush1.msra.mxu0 0.0
        %1376 = vmatprep.subr.mxu0 0.0
        %1377 = vmatpush1.msra.mxu0 0.0
        %1378 = vmatprep.subr.mxu0 0.0
        %1379 = vmatpush1.msra.mxu0 0.0
        %1380 = vmatprep.subr.mxu0 0.0
        %1381 = vmatpush1.msra.mxu0 0.0
        %1382 = vmatprep.subr.mxu0 0.0
        %1383 = vmatpush1.msra.mxu0 0.0
        %1384 = vmatprep.subr.mxu0 0.0
        %1385 = vmatpush1.msra.mxu0 0.0
        %1386 = vmatprep.subr.mxu0 0.0
        %1387 = vmatpush1.msra.mxu0 0.0
        %1388 = vmatprep.subr.mxu0 0.0
        %1389 = vmatpush1.msra.mxu0 0.0
        %1390 = vmatprep.subr.mxu0 0.0
        %1391 = vmatpush1.msra.mxu0 0.0
        %1392 = vmatprep.subr.mxu0 0.0
        %1393 = vmatpush1.msra.mxu0 0.0
        %1394 = vmatprep.subr.mxu0 0.0
        %1395 = vmatpush1.msra.mxu0 0.0
        %1396 = vmatprep.subr.mxu0 0.0
        %1397 = vmatpush1.msra.mxu0 0.0
        %1398 = vmatprep.subr.mxu0 0.0
        %1399 = vmatpush1.msra.mxu0 0.0
        %1400 = vmatprep.subr.mxu0 0.0
        %1401 = vmatpush1.msra.mxu0 0.0
        %1402 = vmatprep.mubr.f32.mxu0 0.0
        %1403 = vmatmul.mubr.f32.gmra.mrb[0].mxu0 %v790
        %v1404 = vpop.f32.mrb[0].mxu0
        %v1405 = vadd.f32 %v751, %v1404
        %v1406 = vpop.f32.mrb[0].mxu0
        %1407 = vmatprep.mubr.f32.mxu0 0.0
        %1408 = vmatmul.mubr.f32.gmra.mrb[0].mxu0 %v793
        %v1409 = vpop.f32.mrb[0].mxu0
        %v1410 = vadd.f32 %v756, %v1409
        %v1411 = vpop.f32.mrb[0].mxu0
        %1412 = vmatprep.mubr.f32.mxu0 0.0
        %1413 = vmatmul.mubr.f32.gmra.mrb[0].mxu0 %v796
        %v1414 = vpop.f32.mrb[0].mxu0
        %v1415 = vadd.f32 %v761, %v1414
        %v1416 = vpop.f32.mrb[0].mxu0
        %1417 = vmatprep.mubr.f32.mxu0 0.0
        %1418 = vmatmul.mubr.f32.gmra.mrb[0].mxu0 %v799
        %v1419 = vpop.f32.mrb[0].mxu0
        %v1420 = vadd.f32 %v766, %v1419
        %v1421 = vpop.f32.mrb[0].mxu0
        %1422 = vmatprep.mubr.f32.mxu0 0.0
        %1423 = vmatmul.mubr.f32.gmra.mrb[0].mxu0 %v802
        %v1424 = vpop.f32.mrb[0].mxu0
        %v1425 = vadd.f32 %v771, %v1424
        %v1426 = vpop.f32.mrb[0].mxu0
        %1427 = vmatprep.mubr.f32.mxu0 0.0
        %1428 = vmatmul.mubr.f32.gmra.mrb[0].mxu0 %v805
        %v1429 = vpop.f32.mrb[0].mxu0
        %v1430 = vadd.f32 %v776, %v1429
        %v1431 = vpop.f32.mrb[0].mxu0
        %1432 = vmatprep.mubr.f32.mxu0 0.0
        %1433 = vmatmul.mubr.f32.gmra.mrb[0].mxu0 %v808
        %v1434 = vpop.f32.mrb[0].mxu0
        %v1435 = vadd.f32 %v781, %v1434
        %v1436 = vpop.f32.mrb[0].mxu0
        %1437 = vmatprep.mubr.f32.mxu0 0.0
        %1438 = vmatmul.mubr.f32.gmra.mrb[0].mxu0 %v811
        %v1439 = vpop.f32.mrb[0].mxu0
        %v1440 = vadd.f32 %v786, %v1439
        %v1441 = vpop.f32.mrb[0].mxu0
        %1442 = vdwg.mxu0
        %1443 = vmatprep.subr.mxu0 0.0
        %1444 = vmatpush1.msra.mxu0 %v726
        %1445 = vmatprep.subr.mxu0 0.0
        %1446 = vmatpush1.msra.mxu0 %v727
        %1447 = vmatprep.subr.mxu0 0.0
        %1448 = vmatpush1.msra.mxu0 0.0
        %1449 = vmatprep.subr.mxu0 0.0
        %1450 = vmatpush1.msra.mxu0 0.0
        %1451 = vmatprep.subr.mxu0 0.0
        %1452 = vmatpush1.msra.mxu0 0.0
        %1453 = vmatprep.subr.mxu0 0.0
        %1454 = vmatpush1.msra.mxu0 0.0
        %1455 = vmatprep.subr.mxu0 0.0
        %1456 = vmatpush1.msra.mxu0 0.0
        %1457 = vmatprep.subr.mxu0 0.0
        %1458 = vmatpush1.msra.mxu0 0.0
        %1459 = vmatprep.subr.mxu0 0.0
        %1460 = vmatpush1.msra.mxu0 0.0
        %1461 = vmatprep.subr.mxu0 0.0
        %1462 = vmatpush1.msra.mxu0 0.0
        %1463 = vmatprep.subr.mxu0 0.0
        %1464 = vmatpush1.msra.mxu0 0.0
        %1465 = vmatprep.subr.mxu0 0.0
        %1466 = vmatpush1.msra.mxu0 0.0
        %1467 = vmatprep.subr.mxu0 0.0
        %1468 = vmatpush1.msra.mxu0 0.0
        %1469 = vmatprep.subr.mxu0 0.0
        %1470 = vmatpush1.msra.mxu0 0.0
        %1471 = vmatprep.subr.mxu0 0.0
        %1472 = vmatpush1.msra.mxu0 0.0
        %1473 = vmatprep.subr.mxu0 0.0
        %1474 = vmatpush1.msra.mxu0 0.0
        %1475 = vmatprep.subr.mxu0 0.0
        %1476 = vmatpush1.msra.mxu0 0.0
        %1477 = vmatprep.subr.mxu0 0.0
        %1478 = vmatpush1.msra.mxu0 0.0
        %1479 = vmatprep.subr.mxu0 0.0
        %1480 = vmatpush1.msra.mxu0 0.0
        %1481 = vmatprep.subr.mxu0 0.0
        %1482 = vmatpush1.msra.mxu0 0.0
        %1483 = vmatprep.subr.mxu0 0.0
        %1484 = vmatpush1.msra.mxu0 0.0
        %1485 = vmatprep.subr.mxu0 0.0
        %1486 = vmatpush1.msra.mxu0 0.0
        %1487 = vmatprep.subr.mxu0 0.0
        %1488 = vmatpush1.msra.mxu0 0.0
        %1489 = vmatprep.subr.mxu0 0.0
        %1490 = vmatpush1.msra.mxu0 0.0
        %1491 = vmatprep.subr.mxu0 0.0
        %1492 = vmatpush1.msra.mxu0 0.0
        %1493 = vmatprep.subr.mxu0 0.0
        %1494 = vmatpush1.msra.mxu0 0.0
        %1495 = vmatprep.subr.mxu0 0.0
        %1496 = vmatpush1.msra.mxu0 0.0
        %1497 = vmatprep.subr.mxu0 0.0
        %1498 = vmatpush1.msra.mxu0 0.0
        %1499 = vmatprep.subr.mxu0 0.0
        %1500 = vmatpush1.msra.mxu0 0.0
        %1501 = vmatprep.subr.mxu0 0.0
        %1502 = vmatpush1.msra.mxu0 0.0
        %1503 = vmatprep.subr.mxu0 0.0
        %1504 = vmatpush1.msra.mxu0 0.0
        %1505 = vmatprep.subr.mxu0 0.0
        %1506 = vmatpush1.msra.mxu0 0.0
        %1507 = vmatprep.mubr.f32.mxu0 0.0
        %1508 = vmatmul.mubr.f32.gmra.mrb[0].mxu0 %v790
        %v1509 = vpop.f32.mrb[0].mxu0
        %v1510 = vadd.f32 %v751, %v1509
        %v1511 = vpop.f32.mrb[0].mxu0
        %1512 = vmatprep.mubr.f32.mxu0 0.0
        %1513 = vmatmul.mubr.f32.gmra.mrb[0].mxu0 %v793
        %v1514 = vpop.f32.mrb[0].mxu0
        %v1515 = vadd.f32 %v756, %v1514
        %v1516 = vpop.f32.mrb[0].mxu0
        %1517 = vmatprep.mubr.f32.mxu0 0.0
        %1518 = vmatmul.mubr.f32.gmra.mrb[0].mxu0 %v796
        %v1519 = vpop.f32.mrb[0].mxu0
        %v1520 = vadd.f32 %v761, %v1519
        %v1521 = vpop.f32.mrb[0].mxu0
        %1522 = vmatprep.mubr.f32.mxu0 0.0
        %1523 = vmatmul.mubr.f32.gmra.mrb[0].mxu0 %v799
        %v1524 = vpop.f32.mrb[0].mxu0
        %v1525 = vadd.f32 %v766, %v1524
        %v1526 = vpop.f32.mrb[0].mxu0
        %1527 = vmatprep.mubr.f32.mxu0 0.0
        %1528 = vmatmul.mubr.f32.gmra.mrb[0].mxu0 %v802
        %v1529 = vpop.f32.mrb[0].mxu0
        %v1530 = vadd.f32 %v771, %v1529
        %v1531 = vpop.f32.mrb[0].mxu0
        %1532 = vmatprep.mubr.f32.mxu0 0.0
        %1533 = vmatmul.mubr.f32.gmra.mrb[0].mxu0 %v805
        %v1534 = vpop.f32.mrb[0].mxu0
        %v1535 = vadd.f32 %v776, %v1534
        %v1536 = vpop.f32.mrb[0].mxu0
        %1537 = vmatprep.mubr.f32.mxu0 0.0
        %1538 = vmatmul.mubr.f32.gmra.mrb[0].mxu0 %v808
        %v1539 = vpop.f32.mrb[0].mxu0
        %v1540 = vadd.f32 %v781, %v1539
        %v1541 = vpop.f32.mrb[0].mxu0
        %1542 = vmatprep.mubr.f32.mxu0 0.0
        %1543 = vmatmul.mubr.f32.gmra.mrb[0].mxu0 %v811
        %v1544 = vpop.f32.mrb[0].mxu0
        %v1545 = vadd.f32 %v786, %v1544
        %v1546 = vpop.f32.mrb[0].mxu0
        %1547 = vdwg.mxu0
        %1548 = vmatprep.subr.mxu0 0.0
        %1549 = vmatpush1.msra.mxu0 %v728
        %1550 = vmatprep.subr.mxu0 0.0
        %1551 = vmatpush1.msra.mxu0 %v729
        %1552 = vmatprep.subr.mxu0 0.0
        %1553 = vmatpush1.msra.mxu0 0.0
        %1554 = vmatprep.subr.mxu0 0.0
        %1555 = vmatpush1.msra.mxu0 0.0
        %1556 = vmatprep.subr.mxu0 0.0
        %1557 = vmatpush1.msra.mxu0 0.0
        %1558 = vmatprep.subr.mxu0 0.0
        %1559 = vmatpush1.msra.mxu0 0.0
        %1560 = vmatprep.subr.mxu0 0.0
        %1561 = vmatpush1.msra.mxu0 0.0
        %1562 = vmatprep.subr.mxu0 0.0
        %1563 = vmatpush1.msra.mxu0 0.0
        %1564 = vmatprep.subr.mxu0 0.0
        %1565 = vmatpush1.msra.mxu0 0.0
        %1566 = vmatprep.subr.mxu0 0.0
        %1567 = vmatpush1.msra.mxu0 0.0
        %1568 = vmatprep.subr.mxu0 0.0
        %1569 = vmatpush1.msra.mxu0 0.0
        %1570 = vmatprep.subr.mxu0 0.0
        %1571 = vmatpush1.msra.mxu0 0.0
        %1572 = vmatprep.subr.mxu0 0.0
        %1573 = vmatpush1.msra.mxu0 0.0
        %1574 = vmatprep.subr.mxu0 0.0
        %1575 = vmatpush1.msra.mxu0 0.0
        %1576 = vmatprep.subr.mxu0 0.0
        %1577 = vmatpush1.msra.mxu0 0.0
        %1578 = vmatprep.subr.mxu0 0.0
        %1579 = vmatpush1.msra.mxu0 0.0
        %1580 = vmatprep.subr.mxu0 0.0
        %1581 = vmatpush1.msra.mxu0 0.0
        %1582 = vmatprep.subr.mxu0 0.0
        %1583 = vmatpush1.msra.mxu0 0.0
        %1584 = vmatprep.subr.mxu0 0.0
        %1585 = vmatpush1.msra.mxu0 0.0
        %1586 = vmatprep.subr.mxu0 0.0
        %1587 = vmatpush1.msra.mxu0 0.0
        %1588 = vmatprep.subr.mxu0 0.0
        %1589 = vmatpush1.msra.mxu0 0.0
        %1590 = vmatprep.subr.mxu0 0.0
        %1591 = vmatpush1.msra.mxu0 0.0
        %1592 = vmatprep.subr.mxu0 0.0
        %1593 = vmatpush1.msra.mxu0 0.0
        %1594 = vmatprep.subr.mxu0 0.0
        %1595 = vmatpush1.msra.mxu0 0.0
        %1596 = vmatprep.subr.mxu0 0.0
        %1597 = vmatpush1.msra.mxu0 0.0
        %1598 = vmatprep.subr.mxu0 0.0
        %1599 = vmatpush1.msra.mxu0 0.0
        %1600 = vmatprep.subr.mxu0 0.0
        %1601 = vmatpush1.msra.mxu0 0.0
        %1602 = vmatprep.subr.mxu0 0.0
        %1603 = vmatpush1.msra.mxu0 0.0
        %1604 = vmatprep.subr.mxu0 0.0
        %1605 = vmatpush1.msra.mxu0 0.0
        %1606 = vmatprep.subr.mxu0 0.0
        %1607 = vmatpush1.msra.mxu0 0.0
        %1608 = vmatprep.subr.mxu0 0.0
        %1609 = vmatpush1.msra.mxu0 0.0
        %1610 = vmatprep.subr.mxu0 0.0
        %1611 = vmatpush1.msra.mxu0 0.0
        %1612 = vmatprep.mubr.f32.mxu0 0.0
        %1613 = vmatmul.mubr.f32.gmra.mrb[0].mxu0 %v790
        %v1614 = vpop.f32.mrb[0].mxu0
        %v1615 = vadd.f32 %v751, %v1614
        %v1616 = vpop.f32.mrb[0].mxu0
        %1617 = vmatprep.mubr.f32.mxu0 0.0
        %1618 = vmatmul.mubr.f32.gmra.mrb[0].mxu0 %v793
        %v1619 = vpop.f32.mrb[0].mxu0
        %v1620 = vadd.f32 %v756, %v1619
        %v1621 = vpop.f32.mrb[0].mxu0
        %1622 = vmatprep.mubr.f32.mxu0 0.0
        %1623 = vmatmul.mubr.f32.gmra.mrb[0].mxu0 %v796
        %v1624 = vpop.f32.mrb[0].mxu0
        %v1625 = vadd.f32 %v761, %v1624
        %v1626 = vpop.f32.mrb[0].mxu0
        %1627 = vmatprep.mubr.f32.mxu0 0.0
        %1628 = vmatmul.mubr.f32.gmra.mrb[0].mxu0 %v799
        %v1629 = vpop.f32.mrb[0].mxu0
        %v1630 = vadd.f32 %v766, %v1629
        %v1631 = vpop.f32.mrb[0].mxu0
        %1632 = vmatprep.mubr.f32.mxu0 0.0
        %1633 = vmatmul.mubr.f32.gmra.mrb[0].mxu0 %v802
        %v1634 = vpop.f32.mrb[0].mxu0
        %v1635 = vadd.f32 %v771, %v1634
        %v1636 = vpop.f32.mrb[0].mxu0
        %1637 = vmatprep.mubr.f32.mxu0 0.0
        %1638 = vmatmul.mubr.f32.gmra.mrb[0].mxu0 %v805
        %v1639 = vpop.f32.mrb[0].mxu0
        %v1640 = vadd.f32 %v776, %v1639
        %v1641 = vpop.f32.mrb[0].mxu0
        %1642 = vmatprep.mubr.f32.mxu0 0.0
        %1643 = vmatmul.mubr.f32.gmra.mrb[0].mxu0 %v808
        %v1644 = vpop.f32.mrb[0].mxu0
        %v1645 = vadd.f32 %v781, %v1644
        %v1646 = vpop.f32.mrb[0].mxu0
        %1647 = vmatprep.mubr.f32.mxu0 0.0
        %1648 = vmatmul.mubr.f32.gmra.mrb[0].mxu0 %v811
        %v1649 = vpop.f32.mrb[0].mxu0
        %v1650 = vadd.f32 %v786, %v1649
        %v1651 = vpop.f32.mrb[0].mxu0
        %1652 = vdwg.mxu0
        %v1653 = vmul.f32 %v880, 0.5
        %v1654 = vmul.f32 %v885, 0.5
        %v1655 = vmul.f32 %v890, 0.5
        %v1656 = vmul.f32 %v895, 0.5
        %v1657 = vmul.f32 %v900, 0.5
        %v1658 = vmul.f32 %v905, 0.5
        %v1659 = vmul.f32 %v910, 0.5
        %v1660 = vmul.f32 %v915, 0.5
        %v1661 = vmul.f32 %v985, 0.5
        %v1662 = vmul.f32 %v990, 0.5
        %v1663 = vmul.f32 %v995, 0.5
        %v1664 = vmul.f32 %v1000, 0.5
        %v1665 = vmul.f32 %v1005, 0.5
        %v1666 = vmul.f32 %v1010, 0.5
        %v1667 = vmul.f32 %v1015, 0.5
        %v1668 = vmul.f32 %v1020, 0.5
        %v1669 = vmul.f32 %v1090, 0.5
        %v1670 = vmul.f32 %v1095, 0.5
        %v1671 = vmul.f32 %v1100, 0.5
        %v1672 = vmul.f32 %v1105, 0.5
        %v1673 = vmul.f32 %v1110, 0.5
        %v1674 = vmul.f32 %v1115, 0.5
        %v1675 = vmul.f32 %v1120, 0.5
        %v1676 = vmul.f32 %v1125, 0.5
        %v1677 = vmul.f32 %v1195, 0.5
        %v1678 = vmul.f32 %v1200, 0.5
        %v1679 = vmul.f32 %v1205, 0.5
        %v1680 = vmul.f32 %v1210, 0.5
        %v1681 = vmul.f32 %v1215, 0.5
        %v1682 = vmul.f32 %v1220, 0.5
        %v1683 = vmul.f32 %v1225, 0.5
        %v1684 = vmul.f32 %v1230, 0.5
        %v1685 = vmul.f32 %v1300, 0.5
        %v1686 = vmul.f32 %v1305, 0.5
        %v1687 = vmul.f32 %v1310, 0.5
        %v1688 = vmul.f32 %v1315, 0.5
        %v1689 = vmul.f32 %v1320, 0.5
        %v1690 = vmul.f32 %v1325, 0.5
        %v1691 = vmul.f32 %v1330, 0.5
        %v1692 = vmul.f32 %v1335, 0.5
        %v1693 = vmul.f32 %v1405, 0.5
        %v1694 = vmul.f32 %v1410, 0.5
        %v1695 = vmul.f32 %v1415, 0.5
        %v1696 = vmul.f32 %v1420, 0.5
        %v1697 = vmul.f32 %v1425, 0.5
        %v1698 = vmul.f32 %v1430, 0.5
        %v1699 = vmul.f32 %v1435, 0.5
        %v1700 = vmul.f32 %v1440, 0.5
        %v1701 = vmul.f32 %v1510, 0.5
        %v1702 = vmul.f32 %v1515, 0.5
        %v1703 = vmul.f32 %v1520, 0.5
        %v1704 = vmul.f32 %v1525, 0.5
        %v1705 = vmul.f32 %v1530, 0.5
        %v1706 = vmul.f32 %v1535, 0.5
        %v1707 = vmul.f32 %v1540, 0.5
        %v1708 = vmul.f32 %v1545, 0.5
        %v1709 = vmul.f32 %v1615, 0.5
        %v1710 = vmul.f32 %v1620, 0.5
        %v1711 = vmul.f32 %v1625, 0.5
        %v1712 = vmul.f32 %v1630, 0.5
        %v1713 = vmul.f32 %v1635, 0.5
        %v1714 = vmul.f32 %v1640, 0.5
        %v1715 = vmul.f32 %v1645, 0.5
        %v1716 = vmul.f32 %v1650, 0.5
        %v1717 = vmul.f32 %v880, 0.70710677
        %v1718 = vmul.f32 %v885, 0.70710677
        %v1719 = vmul.f32 %v890, 0.70710677
        %v1720 = vmul.f32 %v895, 0.70710677
        %v1721 = vmul.f32 %v900, 0.70710677
        %v1722 = vmul.f32 %v905, 0.70710677
        %v1723 = vmul.f32 %v910, 0.70710677
        %v1724 = vmul.f32 %v915, 0.70710677
        %v1725 = vmul.f32 %v985, 0.70710677
        %v1726 = vmul.f32 %v990, 0.70710677
        %v1727 = vmul.f32 %v995, 0.70710677
        %v1728 = vmul.f32 %v1000, 0.70710677
        %v1729 = vmul.f32 %v1005, 0.70710677
        %v1730 = vmul.f32 %v1010, 0.70710677
        %v1731 = vmul.f32 %v1015, 0.70710677
        %v1732 = vmul.f32 %v1020, 0.70710677
        %v1733 = vmul.f32 %v1090, 0.70710677
        %v1734 = vmul.f32 %v1095, 0.70710677
        %v1735 = vmul.f32 %v1100, 0.70710677
        %v1736 = vmul.f32 %v1105, 0.70710677
        %v1737 = vmul.f32 %v1110, 0.70710677
        %v1738 = vmul.f32 %v1115, 0.70710677
        %v1739 = vmul.f32 %v1120, 0.70710677
        %v1740 = vmul.f32 %v1125, 0.70710677
        %v1741 = vmul.f32 %v1195, 0.70710677
        %v1742 = vmul.f32 %v1200, 0.70710677
        %v1743 = vmul.f32 %v1205, 0.70710677
        %v1744 = vmul.f32 %v1210, 0.70710677
        %v1745 = vmul.f32 %v1215, 0.70710677
        %v1746 = vmul.f32 %v1220, 0.70710677
        %v1747 = vmul.f32 %v1225, 0.70710677
        %v1748 = vmul.f32 %v1230, 0.70710677
        %v1749 = vmul.f32 %v1300, 0.70710677
        %v1750 = vmul.f32 %v1305, 0.70710677
        %v1751 = vmul.f32 %v1310, 0.70710677
        %v1752 = vmul.f32 %v1315, 0.70710677
        %v1753 = vmul.f32 %v1320, 0.70710677
        %v1754 = vmul.f32 %v1325, 0.70710677
        %v1755 = vmul.f32 %v1330, 0.70710677
        %v1756 = vmul.f32 %v1335, 0.70710677
        %v1757 = vmul.f32 %v1405, 0.70710677
        %v1758 = vmul.f32 %v1410, 0.70710677
        %v1759 = vmul.f32 %v1415, 0.70710677
        %v1760 = vmul.f32 %v1420, 0.70710677
        %v1761 = vmul.f32 %v1425, 0.70710677
        %v1762 = vmul.f32 %v1430, 0.70710677
        %v1763 = vmul.f32 %v1435, 0.70710677
        %v1764 = vmul.f32 %v1440, 0.70710677
        %v1765 = vmul.f32 %v1510, 0.70710677
        %v1766 = vmul.f32 %v1515, 0.70710677
        %v1767 = vmul.f32 %v1520, 0.70710677
        %v1768 = vmul.f32 %v1525, 0.70710677
        %v1769 = vmul.f32 %v1530, 0.70710677
        %v1770 = vmul.f32 %v1535, 0.70710677
        %v1771 = vmul.f32 %v1540, 0.70710677
        %v1772 = vmul.f32 %v1545, 0.70710677
        %v1773 = vmul.f32 %v1615, 0.70710677
        %v1774 = vmul.f32 %v1620, 0.70710677
        %v1775 = vmul.f32 %v1625, 0.70710677
        %v1776 = vmul.f32 %v1630, 0.70710677
        %v1777 = vmul.f32 %v1635, 0.70710677
        %v1778 = vmul.f32 %v1640, 0.70710677
        %v1779 = vmul.f32 %v1645, 0.70710677
        %v1780 = vmul.f32 %v1650, 0.70710677
        %v1781 = verf.f32.pop %v1717
        %v1782 = verf.f32.pop %v1718
        %v1783 = verf.f32.pop %v1719
        %v1784 = verf.f32.pop %v1720
        %v1785 = verf.f32.pop %v1721
        %v1786 = verf.f32.pop %v1722
        %v1787 = verf.f32.pop %v1723
        %v1788 = verf.f32.pop %v1724
        %v1789 = verf.f32.pop %v1725
        %v1790 = verf.f32.pop %v1726
        %v1791 = verf.f32.pop %v1727
        %v1792 = verf.f32.pop %v1728
        %v1793 = verf.f32.pop %v1729
        %v1794 = verf.f32.pop %v1730
        %v1795 = verf.f32.pop %v1731
        %v1796 = verf.f32.pop %v1732
        %v1797 = verf.f32.pop %v1733
        %v1798 = verf.f32.pop %v1734
        %v1799 = verf.f32.pop %v1735
        %v1800 = verf.f32.pop %v1736
        %v1801 = verf.f32.pop %v1737
        %v1802 = verf.f32.pop %v1738
        %v1803 = verf.f32.pop %v1739
        %v1804 = verf.f32.pop %v1740
        %v1805 = verf.f32.pop %v1741
        %v1806 = verf.f32.pop %v1742
        %v1807 = verf.f32.pop %v1743
        %v1808 = verf.f32.pop %v1744
        %v1809 = verf.f32.pop %v1745
        %v1810 = verf.f32.pop %v1746
        %v1811 = verf.f32.pop %v1747
        %v1812 = verf.f32.pop %v1748
        %v1813 = verf.f32.pop %v1749
        %v1814 = verf.f32.pop %v1750
        %v1815 = verf.f32.pop %v1751
        %v1816 = verf.f32.pop %v1752
        %v1817 = verf.f32.pop %v1753
        %v1818 = verf.f32.pop %v1754
        %v1819 = verf.f32.pop %v1755
        %v1820 = verf.f32.pop %v1756
        %v1821 = verf.f32.pop %v1757
        %v1822 = verf.f32.pop %v1758
        %v1823 = verf.f32.pop %v1759
        %v1824 = verf.f32.pop %v1760
        %v1825 = verf.f32.pop %v1761
        %v1826 = verf.f32.pop %v1762
        %v1827 = verf.f32.pop %v1763
        %v1828 = verf.f32.pop %v1764
        %v1829 = verf.f32.pop %v1765
        %v1830 = verf.f32.pop %v1766
        %v1831 = verf.f32.pop %v1767
        %v1832 = verf.f32.pop %v1768
        %v1833 = verf.f32.pop %v1769
        %v1834 = verf.f32.pop %v1770
        %v1835 = verf.f32.pop %v1771
        %v1836 = verf.f32.pop %v1772
        %v1837 = verf.f32.pop %v1773
        %v1838 = verf.f32.pop %v1774
        %v1839 = verf.f32.pop %v1775
        %v1840 = verf.f32.pop %v1776
        %v1841 = verf.f32.pop %v1777
        %v1842 = verf.f32.pop %v1778
        %v1843 = verf.f32.pop %v1779
        %v1844 = verf.f32.pop %v1780
        %v1845 = vadd.f32 %v1781, 1.0
        %v1846 = vadd.f32 %v1782, 1.0
        %v1847 = vadd.f32 %v1783, 1.0
        %v1848 = vadd.f32 %v1784, 1.0
        %v1849 = vadd.f32 %v1785, 1.0
        %v1850 = vadd.f32 %v1786, 1.0
        %v1851 = vadd.f32 %v1787, 1.0
        %v1852 = vadd.f32 %v1788, 1.0
        %v1853 = vadd.f32 %v1789, 1.0
        %v1854 = vadd.f32 %v1790, 1.0
        %v1855 = vadd.f32 %v1791, 1.0
        %v1856 = vadd.f32 %v1792, 1.0
        %v1857 = vadd.f32 %v1793, 1.0
        %v1858 = vadd.f32 %v1794, 1.0
        %v1859 = vadd.f32 %v1795, 1.0
        %v1860 = vadd.f32 %v1796, 1.0
        %v1861 = vadd.f32 %v1797, 1.0
        %v1862 = vadd.f32 %v1798, 1.0
        %v1863 = vadd.f32 %v1799, 1.0
        %v1864 = vadd.f32 %v1800, 1.0
        %v1865 = vadd.f32 %v1801, 1.0
        %v1866 = vadd.f32 %v1802, 1.0
        %v1867 = vadd.f32 %v1803, 1.0
        %v1868 = vadd.f32 %v1804, 1.0
        %v1869 = vadd.f32 %v1805, 1.0
        %v1870 = vadd.f32 %v1806, 1.0
        %v1871 = vadd.f32 %v1807, 1.0
        %v1872 = vadd.f32 %v1808, 1.0
        %v1873 = vadd.f32 %v1809, 1.0
        %v1874 = vadd.f32 %v1810, 1.0
        %v1875 = vadd.f32 %v1811, 1.0
        %v1876 = vadd.f32 %v1812, 1.0
        %v1877 = vadd.f32 %v1813, 1.0
        %v1878 = vadd.f32 %v1814, 1.0
        %v1879 = vadd.f32 %v1815, 1.0
        %v1880 = vadd.f32 %v1816, 1.0
        %v1881 = vadd.f32 %v1817, 1.0
        %v1882 = vadd.f32 %v1818, 1.0
        %v1883 = vadd.f32 %v1819, 1.0
        %v1884 = vadd.f32 %v1820, 1.0
        %v1885 = vadd.f32 %v1821, 1.0
        %v1886 = vadd.f32 %v1822, 1.0
        %v1887 = vadd.f32 %v1823, 1.0
        %v1888 = vadd.f32 %v1824, 1.0
        %v1889 = vadd.f32 %v1825, 1.0
        %v1890 = vadd.f32 %v1826, 1.0
        %v1891 = vadd.f32 %v1827, 1.0
        %v1892 = vadd.f32 %v1828, 1.0
        %v1893 = vadd.f32 %v1829, 1.0
        %v1894 = vadd.f32 %v1830, 1.0
        %v1895 = vadd.f32 %v1831, 1.0
        %v1896 = vadd.f32 %v1832, 1.0
        %v1897 = vadd.f32 %v1833, 1.0
        %v1898 = vadd.f32 %v1834, 1.0
        %v1899 = vadd.f32 %v1835, 1.0
        %v1900 = vadd.f32 %v1836, 1.0
        %v1901 = vadd.f32 %v1837, 1.0
        %v1902 = vadd.f32 %v1838, 1.0
        %v1903 = vadd.f32 %v1839, 1.0
        %v1904 = vadd.f32 %v1840, 1.0
        %v1905 = vadd.f32 %v1841, 1.0
        %v1906 = vadd.f32 %v1842, 1.0
        %v1907 = vadd.f32 %v1843, 1.0
        %v1908 = vadd.f32 %v1844, 1.0
        %v1909 = vmul.f32 %v1653, %v1845
        %v1910 = vmul.f32 %v1654, %v1846
        %v1911 = vmul.f32 %v1655, %v1847
        %v1912 = vmul.f32 %v1656, %v1848
        %v1913 = vmul.f32 %v1657, %v1849
        %v1914 = vmul.f32 %v1658, %v1850
        %v1915 = vmul.f32 %v1659, %v1851
        %v1916 = vmul.f32 %v1660, %v1852
        %v1917 = vmul.f32 %v1661, %v1853
        %v1918 = vmul.f32 %v1662, %v1854
        %v1919 = vmul.f32 %v1663, %v1855
        %v1920 = vmul.f32 %v1664, %v1856
        %v1921 = vmul.f32 %v1665, %v1857
        %v1922 = vmul.f32 %v1666, %v1858
        %v1923 = vmul.f32 %v1667, %v1859
        %v1924 = vmul.f32 %v1668, %v1860
        %v1925 = vmul.f32 %v1669, %v1861
        %v1926 = vmul.f32 %v1670, %v1862
        %v1927 = vmul.f32 %v1671, %v1863
        %v1928 = vmul.f32 %v1672, %v1864
        %v1929 = vmul.f32 %v1673, %v1865
        %v1930 = vmul.f32 %v1674, %v1866
        %v1931 = vmul.f32 %v1675, %v1867
        %v1932 = vmul.f32 %v1676, %v1868
        %v1933 = vmul.f32 %v1677, %v1869
        %v1934 = vmul.f32 %v1678, %v1870
        %v1935 = vmul.f32 %v1679, %v1871
        %v1936 = vmul.f32 %v1680, %v1872
        %v1937 = vmul.f32 %v1681, %v1873
        %v1938 = vmul.f32 %v1682, %v1874
        %v1939 = vmul.f32 %v1683, %v1875
        %v1940 = vmul.f32 %v1684, %v1876
        %v1941 = vmul.f32 %v1685, %v1877
        %v1942 = vmul.f32 %v1686, %v1878
        %v1943 = vmul.f32 %v1687, %v1879
        %v1944 = vmul.f32 %v1688, %v1880
        %v1945 = vmul.f32 %v1689, %v1881
        %v1946 = vmul.f32 %v1690, %v1882
        %v1947 = vmul.f32 %v1691, %v1883
        %v1948 = vmul.f32 %v1692, %v1884
        %v1949 = vmul.f32 %v1693, %v1885
        %v1950 = vmul.f32 %v1694, %v1886
        %v1951 = vmul.f32 %v1695, %v1887
        %v1952 = vmul.f32 %v1696, %v1888
        %v1953 = vmul.f32 %v1697, %v1889
        %v1954 = vmul.f32 %v1698, %v1890
        %v1955 = vmul.f32 %v1699, %v1891
        %v1956 = vmul.f32 %v1700, %v1892
        %v1957 = vmul.f32 %v1701, %v1893
        %v1958 = vmul.f32 %v1702, %v1894
        %v1959 = vmul.f32 %v1703, %v1895
        %v1960 = vmul.f32 %v1704, %v1896
        %v1961 = vmul.f32 %v1705, %v1897
        %v1962 = vmul.f32 %v1706, %v1898
        %v1963 = vmul.f32 %v1707, %v1899
        %v1964 = vmul.f32 %v1708, %v1900
        %v1965 = vmul.f32 %v1709, %v1901
        %v1966 = vmul.f32 %v1710, %v1902
        %v1967 = vmul.f32 %v1711, %v1903
        %v1968 = vmul.f32 %v1712, %v1904
        %v1969 = vmul.f32 %v1713, %v1905
        %v1970 = vmul.f32 %v1714, %v1906
        %v1971 = vmul.f32 %v1715, %v1907
        %v1972 = vmul.f32 %v1716, %v1908
        %vm1973 = vcmask 523264
        %v1975 = vsel %vm1973, %v738, 0
        %v1978 = vsel %vm1973, %v739, 0
        %1980 = vmatprep.subr.mxu0 0.0
        %1981 = vmatpush1.msra.mxu0 %v1909
        %1982 = vmatprep.subr.mxu0 0.0
        %1983 = vmatpush1.msra.mxu0 %v1910
        %1984 = vmatprep.subr.mxu0 0.0
        %1985 = vmatpush1.msra.mxu0 %v1911
        %1986 = vmatprep.subr.mxu0 0.0
        %1987 = vmatpush1.msra.mxu0 %v1912
        %1988 = vmatprep.subr.mxu0 0.0
        %1989 = vmatpush1.msra.mxu0 %v1913
        %1990 = vmatprep.subr.mxu0 0.0
        %1991 = vmatpush1.msra.mxu0 %v1914
        %1992 = vmatprep.subr.mxu0 0.0
        %1993 = vmatpush1.msra.mxu0 %v1915
        %1994 = vmatprep.subr.mxu0 0.0
        %1995 = vmatpush1.msra.mxu0 %v1916
        %1996 = vmatprep.subr.mxu0 0.0
        %1997 = vmatpush1.msra.mxu0 0.0
        %1998 = vmatprep.subr.mxu0 0.0
        %1999 = vmatpush1.msra.mxu0 0.0
        %2000 = vmatprep.subr.mxu0 0.0
        %2001 = vmatpush1.msra.mxu0 0.0
        %2002 = vmatprep.subr.mxu0 0.0
        %2003 = vmatpush1.msra.mxu0 0.0
        %2004 = vmatprep.subr.mxu0 0.0
        %2005 = vmatpush1.msra.mxu0 0.0
        %2006 = vmatprep.subr.mxu0 0.0
        %2007 = vmatpush1.msra.mxu0 0.0
        %2008 = vmatprep.subr.mxu0 0.0
        %2009 = vmatpush1.msra.mxu0 0.0
        %2010 = vmatprep.subr.mxu0 0.0
        %2011 = vmatpush1.msra.mxu0 0.0
        %2012 = vmatprep.subr.mxu0 0.0
        %2013 = vmatpush1.msra.mxu0 0.0
        %2014 = vmatprep.subr.mxu0 0.0
        %2015 = vmatpush1.msra.mxu0 0.0
        %2016 = vmatprep.subr.mxu0 0.0
        %2017 = vmatpush1.msra.mxu0 0.0
        %2018 = vmatprep.subr.mxu0 0.0
        %2019 = vmatpush1.msra.mxu0 0.0
        %2020 = vmatprep.subr.mxu0 0.0
        %2021 = vmatpush1.msra.mxu0 0.0
        %2022 = vmatprep.subr.mxu0 0.0
        %2023 = vmatpush1.msra.mxu0 0.0
        %2024 = vmatprep.subr.mxu0 0.0
        %2025 = vmatpush1.msra.mxu0 0.0
        %2026 = vmatprep.subr.mxu0 0.0
        %2027 = vmatpush1.msra.mxu0 0.0
        %2028 = vmatprep.subr.mxu0 0.0
        %2029 = vmatpush1.msra.mxu0 0.0
        %2030 = vmatprep.subr.mxu0 0.0
        %2031 = vmatpush1.msra.mxu0 0.0
        %2032 = vmatprep.subr.mxu0 0.0
        %2033 = vmatpush1.msra.mxu0 0.0
        %2034 = vmatprep.subr.mxu0 0.0
        %2035 = vmatpush1.msra.mxu0 0.0
        %2036 = vmatprep.subr.mxu0 0.0
        %2037 = vmatpush1.msra.mxu0 0.0
        %2038 = vmatprep.subr.mxu0 0.0
        %2039 = vmatpush1.msra.mxu0 0.0
        %2040 = vmatprep.subr.mxu0 0.0
        %2041 = vmatpush1.msra.mxu0 0.0
        %2042 = vmatprep.subr.mxu0 0.0
        %2043 = vmatpush1.msra.mxu0 0.0
        %2044 = vmatprep.mubr.f32.mxu0 0.0
        %2045 = vmatmul.mubr.f32.gmra.mrb[0].mxu0 %v1975
        %v2046 = vpop.f32.mrb[0].mxu0
        %v2047 = vadd.f32 0.0, %v2046
        %v2048 = vpop.f32.mrb[0].mxu0
        %2049 = vmatprep.mubr.f32.mxu0 0.0
        %2050 = vmatmul.mubr.f32.gmra.mrb[0].mxu0 %v1978
        %v2051 = vpop.f32.mrb[0].mxu0
        %v2052 = vadd.f32 0.0, %v2051
        %v2053 = vpop.f32.mrb[0].mxu0
        %2054 = vdwg.mxu0
        %2055 = vmatprep.subr.mxu0 0.0
        %2056 = vmatpush1.msra.mxu0 %v1917
        %2057 = vmatprep.subr.mxu0 0.0
        %2058 = vmatpush1.msra.mxu0 %v1918
        %2059 = vmatprep.subr.mxu0 0.0
        %2060 = vmatpush1.msra.mxu0 %v1919
        %2061 = vmatprep.subr.mxu0 0.0
        %2062 = vmatpush1.msra.mxu0 %v1920
        %2063 = vmatprep.subr.mxu0 0.0
        %2064 = vmatpush1.msra.mxu0 %v1921
        %2065 = vmatprep.subr.mxu0 0.0
        %2066 = vmatpush1.msra.mxu0 %v1922
        %2067 = vmatprep.subr.mxu0 0.0
        %2068 = vmatpush1.msra.mxu0 %v1923
        %2069 = vmatprep.subr.mxu0 0.0
        %2070 = vmatpush1.msra.mxu0 %v1924
        %2071 = vmatprep.subr.mxu0 0.0
        %2072 = vmatpush1.msra.mxu0 0.0
        %2073 = vmatprep.subr.mxu0 0.0
        %2074 = vmatpush1.msra.mxu0 0.0
        %2075 = vmatprep.subr.mxu0 0.0
        %2076 = vmatpush1.msra.mxu0 0.0
        %2077 = vmatprep.subr.mxu0 0.0
        %2078 = vmatpush1.msra.mxu0 0.0
        %2079 = vmatprep.subr.mxu0 0.0
        %2080 = vmatpush1.msra.mxu0 0.0
        %2081 = vmatprep.subr.mxu0 0.0
        %2082 = vmatpush1.msra.mxu0 0.0
        %2083 = vmatprep.subr.mxu0 0.0
        %2084 = vmatpush1.msra.mxu0 0.0
        %2085 = vmatprep.subr.mxu0 0.0
        %2086 = vmatpush1.msra.mxu0 0.0
        %2087 = vmatprep.subr.mxu0 0.0
        %2088 = vmatpush1.msra.mxu0 0.0
        %2089 = vmatprep.subr.mxu0 0.0
        %2090 = vmatpush1.msra.mxu0 0.0
        %2091 = vmatprep.subr.mxu0 0.0
        %2092 = vmatpush1.msra.mxu0 0.0
        %2093 = vmatprep.subr.mxu0 0.0
        %2094 = vmatpush1.msra.mxu0 0.0
        %2095 = vmatprep.subr.mxu0 0.0
        %2096 = vmatpush1.msra.mxu0 0.0
        %2097 = vmatprep.subr.mxu0 0.0
        %2098 = vmatpush1.msra.mxu0 0.0
        %2099 = vmatprep.subr.mxu0 0.0
        %2100 = vmatpush1.msra.mxu0 0.0
        %2101 = vmatprep.subr.mxu0 0.0
        %2102 = vmatpush1.msra.mxu0 0.0
        %2103 = vmatprep.subr.mxu0 0.0
        %2104 = vmatpush1.msra.mxu0 0.0
        %2105 = vmatprep.subr.mxu0 0.0
        %2106 = vmatpush1.msra.mxu0 0.0
        %2107 = vmatprep.subr.mxu0 0.0
        %2108 = vmatpush1.msra.mxu0 0.0
        %2109 = vmatprep.subr.mxu0 0.0
        %2110 = vmatpush1.msra.mxu0 0.0
        %2111 = vmatprep.subr.mxu0 0.0
        %2112 = vmatpush1.msra.mxu0 0.0
        %2113 = vmatprep.subr.mxu0 0.0
        %2114 = vmatpush1.msra.mxu0 0.0
        %2115 = vmatprep.subr.mxu0 0.0
        %2116 = vmatpush1.msra.mxu0 0.0
        %2117 = vmatprep.subr.mxu0 0.0
        %2118 = vmatpush1.msra.mxu0 0.0
        %2119 = vmatprep.mubr.f32.mxu0 0.0
        %2120 = vmatmul.mubr.f32.gmra.mrb[0].mxu0 %v1975
        %v2121 = vpop.f32.mrb[0].mxu0
        %v2122 = vadd.f32 0.0, %v2121
        %v2123 = vpop.f32.mrb[0].mxu0
        %2124 = vmatprep.mubr.f32.mxu0 0.0
        %2125 = vmatmul.mubr.f32.gmra.mrb[0].mxu0 %v1978
        %v2126 = vpop.f32.mrb[0].mxu0
        %v2127 = vadd.f32 0.0, %v2126
        %v2128 = vpop.f32.mrb[0].mxu0
        %2129 = vdwg.mxu0
        %2130 = vmatprep.subr.mxu0 0.0
        %2131 = vmatpush1.msra.mxu0 %v1925
        %2132 = vmatprep.subr.mxu0 0.0
        %2133 = vmatpush1.msra.mxu0 %v1926
        %2134 = vmatprep.subr.mxu0 0.0
        %2135 = vmatpush1.msra.mxu0 %v1927
        %2136 = vmatprep.subr.mxu0 0.0
        %2137 = vmatpush1.msra.mxu0 %v1928
        %2138 = vmatprep.subr.mxu0 0.0
        %2139 = vmatpush1.msra.mxu0 %v1929
        %2140 = vmatprep.subr.mxu0 0.0
        %2141 = vmatpush1.msra.mxu0 %v1930
        %2142 = vmatprep.subr.mxu0 0.0
        %2143 = vmatpush1.msra.mxu0 %v1931
        %2144 = vmatprep.subr.mxu0 0.0
        %2145 = vmatpush1.msra.mxu0 %v1932
        %2146 = vmatprep.subr.mxu0 0.0
        %2147 = vmatpush1.msra.mxu0 0.0
        %2148 = vmatprep.subr.mxu0 0.0
        %2149 = vmatpush1.msra.mxu0 0.0
        %2150 = vmatprep.subr.mxu0 0.0
        %2151 = vmatpush1.msra.mxu0 0.0
        %2152 = vmatprep.subr.mxu0 0.0
        %2153 = vmatpush1.msra.mxu0 0.0
        %2154 = vmatprep.subr.mxu0 0.0
        %2155 = vmatpush1.msra.mxu0 0.0
        %2156 = vmatprep.subr.mxu0 0.0
        %2157 = vmatpush1.msra.mxu0 0.0
        %2158 = vmatprep.subr.mxu0 0.0
        %2159 = vmatpush1.msra.mxu0 0.0
        %2160 = vmatprep.subr.mxu0 0.0
        %2161 = vmatpush1.msra.mxu0 0.0
        %2162 = vmatprep.subr.mxu0 0.0
        %2163 = vmatpush1.msra.mxu0 0.0
        %2164 = vmatprep.subr.mxu0 0.0
        %2165 = vmatpush1.msra.mxu0 0.0
        %2166 = vmatprep.subr.mxu0 0.0
        %2167 = vmatpush1.msra.mxu0 0.0
        %2168 = vmatprep.subr.mxu0 0.0
        %2169 = vmatpush1.msra.mxu0 0.0
        %2170 = vmatprep.subr.mxu0 0.0
        %2171 = vmatpush1.msra.mxu0 0.0
        %2172 = vmatprep.subr.mxu0 0.0
        %2173 = vmatpush1.msra.mxu0 0.0
        %2174 = vmatprep.subr.mxu0 0.0
        %2175 = vmatpush1.msra.mxu0 0.0
        %2176 = vmatprep.subr.mxu0 0.0
        %2177 = vmatpush1.msra.mxu0 0.0
        %2178 = vmatprep.subr.mxu0 0.0
        %2179 = vmatpush1.msra.mxu0 0.0
        %2180 = vmatprep.subr.mxu0 0.0
        %2181 = vmatpush1.msra.mxu0 0.0
        %2182 = vmatprep.subr.mxu0 0.0
        %2183 = vmatpush1.msra.mxu0 0.0
        %2184 = vmatprep.subr.mxu0 0.0
        %2185 = vmatpush1.msra.mxu0 0.0
        %2186 = vmatprep.subr.mxu0 0.0
        %2187 = vmatpush1.msra.mxu0 0.0
        %2188 = vmatprep.subr.mxu0 0.0
        %2189 = vmatpush1.msra.mxu0 0.0
        %2190 = vmatprep.subr.mxu0 0.0
        %2191 = vmatpush1.msra.mxu0 0.0
        %2192 = vmatprep.subr.mxu0 0.0
        %2193 = vmatpush1.msra.mxu0 0.0
        %2194 = vmatprep.mubr.f32.mxu0 0.0
        %2195 = vmatmul.mubr.f32.gmra.mrb[0].mxu0 %v1975
        %v2196 = vpop.f32.mrb[0].mxu0
        %v2197 = vadd.f32 0.0, %v2196
        %v2198 = vpop.f32.mrb[0].mxu0
        %2199 = vmatprep.mubr.f32.mxu0 0.0
        %2200 = vmatmul.mubr.f32.gmra.mrb[0].mxu0 %v1978
        %v2201 = vpop.f32.mrb[0].mxu0
        %v2202 = vadd.f32 0.0, %v2201
        %v2203 = vpop.f32.mrb[0].mxu0
        %2204 = vdwg.mxu0
        %2205 = vmatprep.subr.mxu0 0.0
        %2206 = vmatpush1.msra.mxu0 %v1933
        %2207 = vmatprep.subr.mxu0 0.0
        %2208 = vmatpush1.msra.mxu0 %v1934
        %2209 = vmatprep.subr.mxu0 0.0
        %2210 = vmatpush1.msra.mxu0 %v1935
        %2211 = vmatprep.subr.mxu0 0.0
        %2212 = vmatpush1.msra.mxu0 %v1936
        %2213 = vmatprep.subr.mxu0 0.0
        %2214 = vmatpush1.msra.mxu0 %v1937
        %2215 = vmatprep.subr.mxu0 0.0
        %2216 = vmatpush1.msra.mxu0 %v1938
        %2217 = vmatprep.subr.mxu0 0.0
        %2218 = vmatpush1.msra.mxu0 %v1939
        %2219 = vmatprep.subr.mxu0 0.0
        %2220 = vmatpush1.msra.mxu0 %v1940
        %2221 = vmatprep.subr.mxu0 0.0
        %2222 = vmatpush1.msra.mxu0 0.0
        %2223 = vmatprep.subr.mxu0 0.0
        %2224 = vmatpush1.msra.mxu0 0.0
        %2225 = vmatprep.subr.mxu0 0.0
        %2226 = vmatpush1.msra.mxu0 0.0
        %2227 = vmatprep.subr.mxu0 0.0
        %2228 = vmatpush1.msra.mxu0 0.0
        %2229 = vmatprep.subr.mxu0 0.0
        %2230 = vmatpush1.msra.mxu0 0.0
        %2231 = vmatprep.subr.mxu0 0.0
        %2232 = vmatpush1.msra.mxu0 0.0
        %2233 = vmatprep.subr.mxu0 0.0
        %2234 = vmatpush1.msra.mxu0 0.0
        %2235 = vmatprep.subr.mxu0 0.0
        %2236 = vmatpush1.msra.mxu0 0.0
        %2237 = vmatprep.subr.mxu0 0.0
        %2238 = vmatpush1.msra.mxu0 0.0
        %2239 = vmatprep.subr.mxu0 0.0
        %2240 = vmatpush1.msra.mxu0 0.0
        %2241 = vmatprep.subr.mxu0 0.0
        %2242 = vmatpush1.msra.mxu0 0.0
        %2243 = vmatprep.subr.mxu0 0.0
        %2244 = vmatpush1.msra.mxu0 0.0
        %2245 = vmatprep.subr.mxu0 0.0
        %2246 = vmatpush1.msra.mxu0 0.0
        %2247 = vmatprep.subr.mxu0 0.0
        %2248 = vmatpush1.msra.mxu0 0.0
        %2249 = vmatprep.subr.mxu0 0.0
        %2250 = vmatpush1.msra.mxu0 0.0
        %2251 = vmatprep.subr.mxu0 0.0
        %2252 = vmatpush1.msra.mxu0 0.0
        %2253 = vmatprep.subr.mxu0 0.0
        %2254 = vmatpush1.msra.mxu0 0.0
        %2255 = vmatprep.subr.mxu0 0.0
        %2256 = vmatpush1.msra.mxu0 0.0
        %2257 = vmatprep.subr.mxu0 0.0
        %2258 = vmatpush1.msra.mxu0 0.0
        %2259 = vmatprep.subr.mxu0 0.0
        %2260 = vmatpush1.msra.mxu0 0.0
        %2261 = vmatprep.subr.mxu0 0.0
        %2262 = vmatpush1.msra.mxu0 0.0
        %2263 = vmatprep.subr.mxu0 0.0
        %2264 = vmatpush1.msra.mxu0 0.0
        %2265 = vmatprep.subr.mxu0 0.0
        %2266 = vmatpush1.msra.mxu0 0.0
        %2267 = vmatprep.subr.mxu0 0.0
        %2268 = vmatpush1.msra.mxu0 0.0
        %2269 = vmatprep.mubr.f32.mxu0 0.0
        %2270 = vmatmul.mubr.f32.gmra.mrb[0].mxu0 %v1975
        %v2271 = vpop.f32.mrb[0].mxu0
        %v2272 = vadd.f32 0.0, %v2271
        %v2273 = vpop.f32.mrb[0].mxu0
        %2274 = vmatprep.mubr.f32.mxu0 0.0
        %2275 = vmatmul.mubr.f32.gmra.mrb[0].mxu0 %v1978
        %v2276 = vpop.f32.mrb[0].mxu0
        %v2277 = vadd.f32 0.0, %v2276
        %v2278 = vpop.f32.mrb[0].mxu0
        %2279 = vdwg.mxu0
        %2280 = vmatprep.subr.mxu0 0.0
        %2281 = vmatpush1.msra.mxu0 %v1941
        %2282 = vmatprep.subr.mxu0 0.0
        %2283 = vmatpush1.msra.mxu0 %v1942
        %2284 = vmatprep.subr.mxu0 0.0
        %2285 = vmatpush1.msra.mxu0 %v1943
        %2286 = vmatprep.subr.mxu0 0.0
        %2287 = vmatpush1.msra.mxu0 %v1944
        %2288 = vmatprep.subr.mxu0 0.0
        %2289 = vmatpush1.msra.mxu0 %v1945
        %2290 = vmatprep.subr.mxu0 0.0
        %2291 = vmatpush1.msra.mxu0 %v1946
        %2292 = vmatprep.subr.mxu0 0.0
        %2293 = vmatpush1.msra.mxu0 %v1947
        %2294 = vmatprep.subr.mxu0 0.0
        %2295 = vmatpush1.msra.mxu0 %v1948
        %2296 = vmatprep.subr.mxu0 0.0
        %2297 = vmatpush1.msra.mxu0 0.0
        %2298 = vmatprep.subr.mxu0 0.0
        %2299 = vmatpush1.msra.mxu0 0.0
        %2300 = vmatprep.subr.mxu0 0.0
        %2301 = vmatpush1.msra.mxu0 0.0
        %2302 = vmatprep.subr.mxu0 0.0
        %2303 = vmatpush1.msra.mxu0 0.0
        %2304 = vmatprep.subr.mxu0 0.0
        %2305 = vmatpush1.msra.mxu0 0.0
        %2306 = vmatprep.subr.mxu0 0.0
        %2307 = vmatpush1.msra.mxu0 0.0
        %2308 = vmatprep.subr.mxu0 0.0
        %2309 = vmatpush1.msra.mxu0 0.0
        %2310 = vmatprep.subr.mxu0 0.0
        %2311 = vmatpush1.msra.mxu0 0.0
        %2312 = vmatprep.subr.mxu0 0.0
        %2313 = vmatpush1.msra.mxu0 0.0
        %2314 = vmatprep.subr.mxu0 0.0
        %2315 = vmatpush1.msra.mxu0 0.0
        %2316 = vmatprep.subr.mxu0 0.0
        %2317 = vmatpush1.msra.mxu0 0.0
        %2318 = vmatprep.subr.mxu0 0.0
        %2319 = vmatpush1.msra.mxu0 0.0
        %2320 = vmatprep.subr.mxu0 0.0
        %2321 = vmatpush1.msra.mxu0 0.0
        %2322 = vmatprep.subr.mxu0 0.0
        %2323 = vmatpush1.msra.mxu0 0.0
        %2324 = vmatprep.subr.mxu0 0.0
        %2325 = vmatpush1.msra.mxu0 0.0
        %2326 = vmatprep.subr.mxu0 0.0
        %2327 = vmatpush1.msra.mxu0 0.0
        %2328 = vmatprep.subr.mxu0 0.0
        %2329 = vmatpush1.msra.mxu0 0.0
        %2330 = vmatprep.subr.mxu0 0.0
        %2331 = vmatpush1.msra.mxu0 0.0
        %2332 = vmatprep.subr.mxu0 0.0
        %2333 = vmatpush1.msra.mxu0 0.0
        %2334 = vmatprep.subr.mxu0 0.0
        %2335 = vmatpush1.msra.mxu0 0.0
        %2336 = vmatprep.subr.mxu0 0.0
        %2337 = vmatpush1.msra.mxu0 0.0
        %2338 = vmatprep.subr.mxu0 0.0
        %2339 = vmatpush1.msra.mxu0 0.0
        %2340 = vmatprep.subr.mxu0 0.0
        %2341 = vmatpush1.msra.mxu0 0.0
        %2342 = vmatprep.subr.mxu0 0.0
        %2343 = vmatpush1.msra.mxu0 0.0
        %2344 = vmatprep.mubr.f32.mxu0 0.0
        %2345 = vmatmul.mubr.f32.gmra.mrb[0].mxu0 %v1975
        %v2346 = vpop.f32.mrb[0].mxu0
        %v2347 = vadd.f32 0.0, %v2346
        %v2348 = vpop.f32.mrb[0].mxu0
        %2349 = vmatprep.mubr.f32.mxu0 0.0
        %2350 = vmatmul.mubr.f32.gmra.mrb[0].mxu0 %v1978
        %v2351 = vpop.f32.mrb[0].mxu0
        %v2352 = vadd.f32 0.0, %v2351
        %v2353 = vpop.f32.mrb[0].mxu0
        %2354 = vdwg.mxu0
        %2355 = vmatprep.subr.mxu0 0.0
        %2356 = vmatpush1.msra.mxu0 %v1949
        %2357 = vmatprep.subr.mxu0 0.0
        %2358 = vmatpush1.msra.mxu0 %v1950
        %2359 = vmatprep.subr.mxu0 0.0
        %2360 = vmatpush1.msra.mxu0 %v1951
        %2361 = vmatprep.subr.mxu0 0.0
        %2362 = vmatpush1.msra.mxu0 %v1952
        %2363 = vmatprep.subr.mxu0 0.0
        %2364 = vmatpush1.msra.mxu0 %v1953
        %2365 = vmatprep.subr.mxu0 0.0
        %2366 = vmatpush1.msra.mxu0 %v1954
        %2367 = vmatprep.subr.mxu0 0.0
        %2368 = vmatpush1.msra.mxu0 %v1955
        %2369 = vmatprep.subr.mxu0 0.0
        %2370 = vmatpush1.msra.mxu0 %v1956
        %2371 = vmatprep.subr.mxu0 0.0
        %2372 = vmatpush1.msra.mxu0 0.0
        %2373 = vmatprep.subr.mxu0 0.0
        %2374 = vmatpush1.msra.mxu0 0.0
        %2375 = vmatprep.subr.mxu0 0.0
        %2376 = vmatpush1.msra.mxu0 0.0
        %2377 = vmatprep.subr.mxu0 0.0
        %2378 = vmatpush1.msra.mxu0 0.0
        %2379 = vmatprep.subr.mxu0 0.0
        %2380 = vmatpush1.msra.mxu0 0.0
        %2381 = vmatprep.subr.mxu0 0.0
        %2382 = vmatpush1.msra.mxu0 0.0
        %2383 = vmatprep.subr.mxu0 0.0
        %2384 = vmatpush1.msra.mxu0 0.0
        %2385 = vmatprep.subr.mxu0 0.0
        %2386 = vmatpush1.msra.mxu0 0.0
        %2387 = vmatprep.subr.mxu0 0.0
        %2388 = vmatpush1.msra.mxu0 0.0
        %2389 = vmatprep.subr.mxu0 0.0
        %2390 = vmatpush1.msra.mxu0 0.0
        %2391 = vmatprep.subr.mxu0 0.0
        %2392 = vmatpush1.msra.mxu0 0.0
        %2393 = vmatprep.subr.mxu0 0.0
        %2394 = vmatpush1.msra.mxu0 0.0
        %2395 = vmatprep.subr.mxu0 0.0
        %2396 = vmatpush1.msra.mxu0 0.0
        %2397 = vmatprep.subr.mxu0 0.0
        %2398 = vmatpush1.msra.mxu0 0.0
        %2399 = vmatprep.subr.mxu0 0.0
        %2400 = vmatpush1.msra.mxu0 0.0
        %2401 = vmatprep.subr.mxu0 0.0
        %2402 = vmatpush1.msra.mxu0 0.0
        %2403 = vmatprep.subr.mxu0 0.0
        %2404 = vmatpush1.msra.mxu0 0.0
        %2405 = vmatprep.subr.mxu0 0.0
        %2406 = vmatpush1.msra.mxu0 0.0
        %2407 = vmatprep.subr.mxu0 0.0
        %2408 = vmatpush1.msra.mxu0 0.0
        %2409 = vmatprep.subr.mxu0 0.0
        %2410 = vmatpush1.msra.mxu0 0.0
        %2411 = vmatprep.subr.mxu0 0.0
        %2412 = vmatpush1.msra.mxu0 0.0
        %2413 = vmatprep.subr.mxu0 0.0
        %2414 = vmatpush1.msra.mxu0 0.0
        %2415 = vmatprep.subr.mxu0 0.0
        %2416 = vmatpush1.msra.mxu0 0.0
        %2417 = vmatprep.subr.mxu0 0.0
        %2418 = vmatpush1.msra.mxu0 0.0
        %2419 = vmatprep.mubr.f32.mxu0 0.0
        %2420 = vmatmul.mubr.f32.gmra.mrb[0].mxu0 %v1975
        %v2421 = vpop.f32.mrb[0].mxu0
        %v2422 = vadd.f32 0.0, %v2421
        %v2423 = vpop.f32.mrb[0].mxu0
        %2424 = vmatprep.mubr.f32.mxu0 0.0
        %2425 = vmatmul.mubr.f32.gmra.mrb[0].mxu0 %v1978
        %v2426 = vpop.f32.mrb[0].mxu0
        %v2427 = vadd.f32 0.0, %v2426
        %v2428 = vpop.f32.mrb[0].mxu0
        %2429 = vdwg.mxu0
        %2430 = vmatprep.subr.mxu0 0.0
        %2431 = vmatpush1.msra.mxu0 %v1957
        %2432 = vmatprep.subr.mxu0 0.0
        %2433 = vmatpush1.msra.mxu0 %v1958
        %2434 = vmatprep.subr.mxu0 0.0
        %2435 = vmatpush1.msra.mxu0 %v1959
        %2436 = vmatprep.subr.mxu0 0.0
        %2437 = vmatpush1.msra.mxu0 %v1960
        %2438 = vmatprep.subr.mxu0 0.0
        %2439 = vmatpush1.msra.mxu0 %v1961
        %2440 = vmatprep.subr.mxu0 0.0
        %2441 = vmatpush1.msra.mxu0 %v1962
        %2442 = vmatprep.subr.mxu0 0.0
        %2443 = vmatpush1.msra.mxu0 %v1963
        %2444 = vmatprep.subr.mxu0 0.0
        %2445 = vmatpush1.msra.mxu0 %v1964
        %2446 = vmatprep.subr.mxu0 0.0
        %2447 = vmatpush1.msra.mxu0 0.0
        %2448 = vmatprep.subr.mxu0 0.0
        %2449 = vmatpush1.msra.mxu0 0.0
        %2450 = vmatprep.subr.mxu0 0.0
        %2451 = vmatpush1.msra.mxu0 0.0
        %2452 = vmatprep.subr.mxu0 0.0
        %2453 = vmatpush1.msra.mxu0 0.0
        %2454 = vmatprep.subr.mxu0 0.0
        %2455 = vmatpush1.msra.mxu0 0.0
        %2456 = vmatprep.subr.mxu0 0.0
        %2457 = vmatpush1.msra.mxu0 0.0
        %2458 = vmatprep.subr.mxu0 0.0
        %2459 = vmatpush1.msra.mxu0 0.0
        %2460 = vmatprep.subr.mxu0 0.0
        %2461 = vmatpush1.msra.mxu0 0.0
        %2462 = vmatprep.subr.mxu0 0.0
        %2463 = vmatpush1.msra.mxu0 0.0
        %2464 = vmatprep.subr.mxu0 0.0
        %2465 = vmatpush1.msra.mxu0 0.0
        %2466 = vmatprep.subr.mxu0 0.0
        %2467 = vmatpush1.msra.mxu0 0.0
        %2468 = vmatprep.subr.mxu0 0.0
        %2469 = vmatpush1.msra.mxu0 0.0
        %2470 = vmatprep.subr.mxu0 0.0
        %2471 = vmatpush1.msra.mxu0 0.0
        %2472 = vmatprep.subr.mxu0 0.0
        %2473 = vmatpush1.msra.mxu0 0.0
        %2474 = vmatprep.subr.mxu0 0.0
        %2475 = vmatpush1.msra.mxu0 0.0
        %2476 = vmatprep.subr.mxu0 0.0
        %2477 = vmatpush1.msra.mxu0 0.0
        %2478 = vmatprep.subr.mxu0 0.0
        %2479 = vmatpush1.msra.mxu0 0.0
        %2480 = vmatprep.subr.mxu0 0.0
        %2481 = vmatpush1.msra.mxu0 0.0
        %2482 = vmatprep.subr.mxu0 0.0
        %2483 = vmatpush1.msra.mxu0 0.0
        %2484 = vmatprep.subr.mxu0 0.0
        %2485 = vmatpush1.msra.mxu0 0.0
        %2486 = vmatprep.subr.mxu0 0.0
        %2487 = vmatpush1.msra.mxu0 0.0
        %2488 = vmatprep.subr.mxu0 0.0
        %2489 = vmatpush1.msra.mxu0 0.0
        %2490 = vmatprep.subr.mxu0 0.0
        %2491 = vmatpush1.msra.mxu0 0.0
        %2492 = vmatprep.subr.mxu0 0.0
        %2493 = vmatpush1.msra.mxu0 0.0
        %2494 = vmatprep.mubr.f32.mxu0 0.0
        %2495 = vmatmul.mubr.f32.gmra.mrb[0].mxu0 %v1975
        %v2496 = vpop.f32.mrb[0].mxu0
        %v2497 = vadd.f32 0.0, %v2496
        %v2498 = vpop.f32.mrb[0].mxu0
        %2499 = vmatprep.mubr.f32.mxu0 0.0
        %2500 = vmatmul.mubr.f32.gmra.mrb[0].mxu0 %v1978
        %v2501 = vpop.f32.mrb[0].mxu0
        %v2502 = vadd.f32 0.0, %v2501
        %v2503 = vpop.f32.mrb[0].mxu0
        %2504 = vdwg.mxu0
        %2505 = vmatprep.subr.mxu0 0.0
        %2506 = vmatpush1.msra.mxu0 %v1965
        %2507 = vmatprep.subr.mxu0 0.0
        %2508 = vmatpush1.msra.mxu0 %v1966
        %2509 = vmatprep.subr.mxu0 0.0
        %2510 = vmatpush1.msra.mxu0 %v1967
        %2511 = vmatprep.subr.mxu0 0.0
        %2512 = vmatpush1.msra.mxu0 %v1968
        %2513 = vmatprep.subr.mxu0 0.0
        %2514 = vmatpush1.msra.mxu0 %v1969
        %2515 = vmatprep.subr.mxu0 0.0
        %2516 = vmatpush1.msra.mxu0 %v1970
        %2517 = vmatprep.subr.mxu0 0.0
        %2518 = vmatpush1.msra.mxu0 %v1971
        %2519 = vmatprep.subr.mxu0 0.0
        %2520 = vmatpush1.msra.mxu0 %v1972
        %2521 = vmatprep.subr.mxu0 0.0
        %2522 = vmatpush1.msra.mxu0 0.0
        %2523 = vmatprep.subr.mxu0 0.0
        %2524 = vmatpush1.msra.mxu0 0.0
        %2525 = vmatprep.subr.mxu0 0.0
        %2526 = vmatpush1.msra.mxu0 0.0
        %2527 = vmatprep.subr.mxu0 0.0
        %2528 = vmatpush1.msra.mxu0 0.0
        %2529 = vmatprep.subr.mxu0 0.0
        %2530 = vmatpush1.msra.mxu0 0.0
        %2531 = vmatprep.subr.mxu0 0.0
        %2532 = vmatpush1.msra.mxu0 0.0
        %2533 = vmatprep.subr.mxu0 0.0
        %2534 = vmatpush1.msra.mxu0 0.0
        %2535 = vmatprep.subr.mxu0 0.0
        %2536 = vmatpush1.msra.mxu0 0.0
        %2537 = vmatprep.subr.mxu0 0.0
        %2538 = vmatpush1.msra.mxu0 0.0
        %2539 = vmatprep.subr.mxu0 0.0
        %2540 = vmatpush1.msra.mxu0 0.0
        %2541 = vmatprep.subr.mxu0 0.0
        %2542 = vmatpush1.msra.mxu0 0.0
        %2543 = vmatprep.subr.mxu0 0.0
        %2544 = vmatpush1.msra.mxu0 0.0
        %2545 = vmatprep.subr.mxu0 0.0
        %2546 = vmatpush1.msra.mxu0 0.0
        %2547 = vmatprep.subr.mxu0 0.0
        %2548 = vmatpush1.msra.mxu0 0.0
        %2549 = vmatprep.subr.mxu0 0.0
        %2550 = vmatpush1.msra.mxu0 0.0
        %2551 = vmatprep.subr.mxu0 0.0
        %2552 = vmatpush1.msra.mxu0 0.0
        %2553 = vmatprep.subr.mxu0 0.0
        %2554 = vmatpush1.msra.mxu0 0.0
        %2555 = vmatprep.subr.mxu0 0.0
        %2556 = vmatpush1.msra.mxu0 0.0
        %2557 = vmatprep.subr.mxu0 0.0
        %2558 = vmatpush1.msra.mxu0 0.0
        %2559 = vmatprep.subr.mxu0 0.0
        %2560 = vmatpush1.msra.mxu0 0.0
        %2561 = vmatprep.subr.mxu0 0.0
        %2562 = vmatpush1.msra.mxu0 0.0
        %2563 = vmatprep.subr.mxu0 0.0
        %2564 = vmatpush1.msra.mxu0 0.0
        %2565 = vmatprep.subr.mxu0 0.0
        %2566 = vmatpush1.msra.mxu0 0.0
        %2567 = vmatprep.subr.mxu0 0.0
        %2568 = vmatpush1.msra.mxu0 0.0
        %2569 = vmatprep.mubr.f32.mxu0 0.0
        %2570 = vmatmul.mubr.f32.gmra.mrb[0].mxu0 %v1975
        %v2571 = vpop.f32.mrb[0].mxu0
        %v2572 = vadd.f32 0.0, %v2571
        %v2573 = vpop.f32.mrb[0].mxu0
        %2574 = vmatprep.mubr.f32.mxu0 0.0
        %2575 = vmatmul.mubr.f32.gmra.mrb[0].mxu0 %v1978
        %v2576 = vpop.f32.mrb[0].mxu0
        %v2577 = vadd.f32 0.0, %v2576
        %v2578 = vpop.f32.mrb[0].mxu0
        %2579 = vdwg.mxu0
        %v2580 = vadd.f32 %v491, %v2047
        %v2581 = vadd.f32 %v492, %v2052
        %v2582 = vadd.f32 %v493, %v2122
        %v2583 = vadd.f32 %v494, %v2127
        %v2584 = vadd.f32 %v495, %v2197
        %v2585 = vadd.f32 %v496, %v2202
        %v2586 = vadd.f32 %v497, %v2272
        %v2587 = vadd.f32 %v498, %v2277
        %v2588 = vadd.f32 %v499, %v2347
        %v2589 = vadd.f32 %v500, %v2352
        %v2590 = vadd.f32 %v501, %v2422
        %v2591 = vadd.f32 %v502, %v2427
        %v2592 = vadd.f32 %v503, %v2497
        %v2593 = vadd.f32 %v504, %v2502
        %v2594 = vadd.f32 %v505, %v2572
        %v2595 = vadd.f32 %v506, %v2577
        %v2596 = vld [vmem:[%s6] sm:$0xff]
        %v2597 = vld [vmem:[%s6 + $0x8] sm:$0xff]
        %2599 = vset.pattern.permute.xlu0 0
        %2600 = vperm.xlu0 %2599, %v2596
        %v2601 = vpop.permute.xlu0 %2600
        %2604 = vset.pattern.permute.xlu0 0
        %2605 = vperm.xlu0 %2604, %v2597
        %v2606 = vpop.permute.xlu0 %2605
        %v2608 = vadd.f32 %v2580, %v2601
        %v2609 = vadd.f32 %v2581, %v2606
        %v2610 = vadd.f32 %v2582, %v2601
        %v2611 = vadd.f32 %v2583, %v2606
        %v2612 = vadd.f32 %v2584, %v2601
        %v2613 = vadd.f32 %v2585, %v2606
        %v2614 = vadd.f32 %v2586, %v2601
        %v2615 = vadd.f32 %v2587, %v2606
        %v2616 = vadd.f32 %v2588, %v2601
        %v2617 = vadd.f32 %v2589, %v2606
        %v2618 = vadd.f32 %v2590, %v2601
        %v2619 = vadd.f32 %v2591, %v2606
        %v2620 = vadd.f32 %v2592, %v2601
        %v2621 = vadd.f32 %v2593, %v2606
        %v2622 = vadd.f32 %v2594, %v2601
        %v2623 = vadd.f32 %v2595, %v2606
        %v2624 = vld [vmem:[%s7] sm:$0x1]
        %v2625 = vld [vmem:[%s8] sm:$0x1]
        %2626 = vadd.xlane.f32.xlu0 %v2608
        %v2627 = vpop.xlane.xlu0 %2626
        %2628 = vadd.xlane.f32.xlu0 %v2609
        %v2629 = vpop.xlane.xlu0 %2628
        %2630 = vadd.xlane.f32.xlu0 %v2610
        %v2631 = vpop.xlane.xlu0 %2630
        %2632 = vadd.xlane.f32.xlu0 %v2611
        %v2633 = vpop.xlane.xlu0 %2632
        %2634 = vadd.xlane.f32.xlu0 %v2612
        %v2635 = vpop.xlane.xlu0 %2634
        %2636 = vadd.xlane.f32.xlu0 %v2613
        %v2637 = vpop.xlane.xlu0 %2636
        %2638 = vadd.xlane.f32.xlu0 %v2614
        %v2639 = vpop.xlane.xlu0 %2638
        %2640 = vadd.xlane.f32.xlu0 %v2615
        %v2641 = vpop.xlane.xlu0 %2640
        %2642 = vadd.xlane.f32.xlu0 %v2616
        %v2643 = vpop.xlane.xlu0 %2642
        %2644 = vadd.xlane.f32.xlu0 %v2617
        %v2645 = vpop.xlane.xlu0 %2644
        %2646 = vadd.xlane.f32.xlu0 %v2618
        %v2647 = vpop.xlane.xlu0 %2646
        %2648 = vadd.xlane.f32.xlu0 %v2619
        %v2649 = vpop.xlane.xlu0 %2648
        %2650 = vadd.xlane.f32.xlu0 %v2620
        %v2651 = vpop.xlane.xlu0 %2650
        %2652 = vadd.xlane.f32.xlu0 %v2621
        %v2653 = vpop.xlane.xlu0 %2652
        %2654 = vadd.xlane.f32.xlu0 %v2622
        %v2655 = vpop.xlane.xlu0 %2654
        %2656 = vadd.xlane.f32.xlu0 %v2623
        %v2657 = vpop.xlane.xlu0 %2656
        %v2658 = vmul.f32 %v2627, %v541
        %v2659 = vmul.f32 %v2629, %v541
        %v2660 = vmul.f32 %v2631, %v541
        %v2661 = vmul.f32 %v2633, %v541
        %v2662 = vmul.f32 %v2635, %v541
        %v2663 = vmul.f32 %v2637, %v541
        %v2664 = vmul.f32 %v2639, %v541
        %v2665 = vmul.f32 %v2641, %v541
        %v2666 = vmul.f32 %v2643, %v541
        %v2667 = vmul.f32 %v2645, %v541
        %v2668 = vmul.f32 %v2647, %v541
        %v2669 = vmul.f32 %v2649, %v541
        %v2670 = vmul.f32 %v2651, %v541
        %v2671 = vmul.f32 %v2653, %v541
        %v2672 = vmul.f32 %v2655, %v541
        %v2673 = vmul.f32 %v2657, %v541
        %v2674 = vsub.f32 %v2608, %v2658
        %v2675 = vsub.f32 %v2609, %v2659
        %v2676 = vsub.f32 %v2610, %v2660
        %v2677 = vsub.f32 %v2611, %v2661
        %v2678 = vsub.f32 %v2612, %v2662
        %v2679 = vsub.f32 %v2613, %v2663
        %v2680 = vsub.f32 %v2614, %v2664
        %v2681 = vsub.f32 %v2615, %v2665
        %v2682 = vsub.f32 %v2616, %v2666
        %v2683 = vsub.f32 %v2617, %v2667
        %v2684 = vsub.f32 %v2618, %v2668
        %v2685 = vsub.f32 %v2619, %v2669
        %v2686 = vsub.f32 %v2620, %v2670
        %v2687 = vsub.f32 %v2621, %v2671
        %v2688 = vsub.f32 %v2622, %v2672
        %v2689 = vsub.f32 %v2623, %v2673
        %v2690 = vmul.f32 %v2674, %v2674
        %v2691 = vmul.f32 %v2675, %v2675
        %v2692 = vmul.f32 %v2676, %v2676
        %v2693 = vmul.f32 %v2677, %v2677
        %v2694 = vmul.f32 %v2678, %v2678
        %v2695 = vmul.f32 %v2679, %v2679
        %v2696 = vmul.f32 %v2680, %v2680
        %v2697 = vmul.f32 %v2681, %v2681
        %v2698 = vmul.f32 %v2682, %v2682
        %v2699 = vmul.f32 %v2683, %v2683
        %v2700 = vmul.f32 %v2684, %v2684
        %v2701 = vmul.f32 %v2685, %v2685
        %v2702 = vmul.f32 %v2686, %v2686
        %v2703 = vmul.f32 %v2687, %v2687
        %v2704 = vmul.f32 %v2688, %v2688
        %v2705 = vmul.f32 %v2689, %v2689
        %2706 = vadd.xlane.f32.xlu0 %v2690
        %v2707 = vpop.xlane.xlu0 %2706
        %2708 = vadd.xlane.f32.xlu0 %v2691
        %v2709 = vpop.xlane.xlu0 %2708
        %2710 = vadd.xlane.f32.xlu0 %v2692
        %v2711 = vpop.xlane.xlu0 %2710
        %2712 = vadd.xlane.f32.xlu0 %v2693
        %v2713 = vpop.xlane.xlu0 %2712
        %2714 = vadd.xlane.f32.xlu0 %v2694
        %v2715 = vpop.xlane.xlu0 %2714
        %2716 = vadd.xlane.f32.xlu0 %v2695
        %v2717 = vpop.xlane.xlu0 %2716
        %2718 = vadd.xlane.f32.xlu0 %v2696
        %v2719 = vpop.xlane.xlu0 %2718
        %2720 = vadd.xlane.f32.xlu0 %v2697
        %v2721 = vpop.xlane.xlu0 %2720
        %2722 = vadd.xlane.f32.xlu0 %v2698
        %v2723 = vpop.xlane.xlu0 %2722
        %2724 = vadd.xlane.f32.xlu0 %v2699
        %v2725 = vpop.xlane.xlu0 %2724
        %2726 = vadd.xlane.f32.xlu0 %v2700
        %v2727 = vpop.xlane.xlu0 %2726
        %2728 = vadd.xlane.f32.xlu0 %v2701
        %v2729 = vpop.xlane.xlu0 %2728
        %2730 = vadd.xlane.f32.xlu0 %v2702
        %v2731 = vpop.xlane.xlu0 %2730
        %2732 = vadd.xlane.f32.xlu0 %v2703
        %v2733 = vpop.xlane.xlu0 %2732
        %2734 = vadd.xlane.f32.xlu0 %v2704
        %v2735 = vpop.xlane.xlu0 %2734
        %2736 = vadd.xlane.f32.xlu0 %v2705
        %v2737 = vpop.xlane.xlu0 %2736
        %v2738 = vmul.f32 %v2707, %v541
        %v2739 = vmul.f32 %v2709, %v541
        %v2740 = vmul.f32 %v2711, %v541
        %v2741 = vmul.f32 %v2713, %v541
        %v2742 = vmul.f32 %v2715, %v541
        %v2743 = vmul.f32 %v2717, %v541
        %v2744 = vmul.f32 %v2719, %v541
        %v2745 = vmul.f32 %v2721, %v541
        %v2746 = vmul.f32 %v2723, %v541
        %v2747 = vmul.f32 %v2725, %v541
        %v2748 = vmul.f32 %v2727, %v541
        %v2749 = vmul.f32 %v2729, %v541
        %v2750 = vmul.f32 %v2731, %v541
        %v2751 = vmul.f32 %v2733, %v541
        %v2752 = vmul.f32 %v2735, %v541
        %v2753 = vmul.f32 %v2737, %v541
        %v2754 = vadd.f32 %v2738, 1e-05
        %v2755 = vadd.f32 %v2739, 1e-05
        %v2756 = vadd.f32 %v2740, 1e-05
        %v2757 = vadd.f32 %v2741, 1e-05
        %v2758 = vadd.f32 %v2742, 1e-05
        %v2759 = vadd.f32 %v2743, 1e-05
        %v2760 = vadd.f32 %v2744, 1e-05
        %v2761 = vadd.f32 %v2745, 1e-05
        %v2762 = vadd.f32 %v2746, 1e-05
        %v2763 = vadd.f32 %v2747, 1e-05
        %v2764 = vadd.f32 %v2748, 1e-05
        %v2765 = vadd.f32 %v2749, 1e-05
        %v2766 = vadd.f32 %v2750, 1e-05
        %v2767 = vadd.f32 %v2751, 1e-05
        %v2768 = vadd.f32 %v2752, 1e-05
        %v2769 = vadd.f32 %v2753, 1e-05
        %v2770 = vrsqrt.pop %v2754
        %v2771 = vrsqrt.pop %v2755
        %v2772 = vrsqrt.pop %v2756
        %v2773 = vrsqrt.pop %v2757
        %v2774 = vrsqrt.pop %v2758
        %v2775 = vrsqrt.pop %v2759
        %v2776 = vrsqrt.pop %v2760
        %v2777 = vrsqrt.pop %v2761
        %v2778 = vrsqrt.pop %v2762
        %v2779 = vrsqrt.pop %v2763
        %v2780 = vrsqrt.pop %v2764
        %v2781 = vrsqrt.pop %v2765
        %v2782 = vrsqrt.pop %v2766
        %v2783 = vrsqrt.pop %v2767
        %v2784 = vrsqrt.pop %v2768
        %v2785 = vrsqrt.pop %v2769
        %v2786 = vmul.f32 %v2674, %v2770
        %v2787 = vmul.f32 %v2675, %v2771
        %v2788 = vmul.f32 %v2676, %v2772
        %v2789 = vmul.f32 %v2677, %v2773
        %v2790 = vmul.f32 %v2678, %v2774
        %v2791 = vmul.f32 %v2679, %v2775
        %v2792 = vmul.f32 %v2680, %v2776
        %v2793 = vmul.f32 %v2681, %v2777
        %v2794 = vmul.f32 %v2682, %v2778
        %v2795 = vmul.f32 %v2683, %v2779
        %v2796 = vmul.f32 %v2684, %v2780
        %v2797 = vmul.f32 %v2685, %v2781
        %v2798 = vmul.f32 %v2686, %v2782
        %v2799 = vmul.f32 %v2687, %v2783
        %v2800 = vmul.f32 %v2688, %v2784
        %v2801 = vmul.f32 %v2689, %v2785
        %v2803 = vlaneseq
        %v2804 = vshrl.u32 %v2803, 7
        %v2805 = vsub.s32 0, %v2804
        %v2806 = vrot.slane %v2624, %v2805
        %v2808 = vmul.f32 %v2786, %v2806
        %v2809 = vmul.f32 %v2787, %v2806
        %v2810 = vmul.f32 %v2788, %v2806
        %v2811 = vmul.f32 %v2789, %v2806
        %v2812 = vmul.f32 %v2790, %v2806
        %v2813 = vmul.f32 %v2791, %v2806
        %v2814 = vmul.f32 %v2792, %v2806
        %v2815 = vmul.f32 %v2793, %v2806
        %v2816 = vmul.f32 %v2794, %v2806
        %v2817 = vmul.f32 %v2795, %v2806
        %v2818 = vmul.f32 %v2796, %v2806
        %v2819 = vmul.f32 %v2797, %v2806
        %v2820 = vmul.f32 %v2798, %v2806
        %v2821 = vmul.f32 %v2799, %v2806
        %v2822 = vmul.f32 %v2800, %v2806
        %v2823 = vmul.f32 %v2801, %v2806
        %v2825 = vlaneseq
        %v2826 = vshrl.u32 %v2825, 7
        %v2827 = vsub.s32 0, %v2826
        %v2828 = vrot.slane %v2625, %v2827
        %v2830 = vadd.f32 %v2808, %v2828
        %v2831 = vadd.f32 %v2809, %v2828
        %v2832 = vadd.f32 %v2810, %v2828
        %v2833 = vadd.f32 %v2811, %v2828
        %v2834 = vadd.f32 %v2812, %v2828
        %v2835 = vadd.f32 %v2813, %v2828
        %v2836 = vadd.f32 %v2814, %v2828
        %v2837 = vadd.f32 %v2815, %v2828
        %v2838 = vadd.f32 %v2816, %v2828
        %v2839 = vadd.f32 %v2817, %v2828
        %v2840 = vadd.f32 %v2818, %v2828
        %v2841 = vadd.f32 %v2819, %v2828
        %v2842 = vadd.f32 %v2820, %v2828
        %v2843 = vadd.f32 %v2821, %v2828
        %v2844 = vadd.f32 %v2822, %v2828
        %v2845 = vadd.f32 %v2823, %v2828
        %v2846 = vld [vmem:[#allocation5] sm:$0xff]
        %v2847 = vld [vmem:[#allocation5 + $0x8] sm:$0xff]
        %v2848 = vld [vmem:[#allocation5 + $0x10] sm:$0xff]
        %v2849 = vld [vmem:[#allocation5 + $0x18] sm:$0xff]
        %v2850 = vld [vmem:[#allocation5 + $0x20] sm:$0xff]
        %v2851 = vld [vmem:[#allocation5 + $0x28] sm:$0xff]
        %v2852 = vld [vmem:[#allocation5 + $0x30] sm:$0xff]
        %v2853 = vld [vmem:[#allocation5 + $0x38] sm:$0xff]
        %v2854 = vld [vmem:[#allocation5 + $0x40] sm:$0xff]
        %v2855 = vld [vmem:[#allocation5 + $0x48] sm:$0xff]
        %v2856 = vld [vmem:[#allocation5 + $0x50] sm:$0xff]
        %v2857 = vld [vmem:[#allocation5 + $0x58] sm:$0xff]
        %v2858 = vld [vmem:[#allocation5 + $0x60] sm:$0xff]
        %v2859 = vld [vmem:[#allocation5 + $0x68] sm:$0xff]
        %v2860 = vld [vmem:[#allocation5 + $0x70] sm:$0xff]
        %v2861 = vld [vmem:[#allocation5 + $0x78] sm:$0xff]
        %v2862 = vld [vmem:[#allocation5 + $0x80] sm:$0xff]
        %v2863 = vld [vmem:[#allocation5 + $0x88] sm:$0xff]
        %v2864 = vld [vmem:[#allocation5 + $0x90] sm:$0xff]
        %v2865 = vld [vmem:[#allocation5 + $0x98] sm:$0xff]
        %v2866 = vld [vmem:[#allocation5 + $0xa0] sm:$0xff]
        %v2867 = vld [vmem:[#allocation5 + $0xa8] sm:$0xff]
        %v2868 = vld [vmem:[#allocation5 + $0xb0] sm:$0xff]
        %v2869 = vld [vmem:[#allocation5 + $0xb8] sm:$0xff]
        %v2870 = vld [vmem:[#allocation5 + $0xc0] sm:$0xff]
        %v2871 = vld [vmem:[#allocation5 + $0xc8] sm:$0xff]
        %v2872 = vld [vmem:[#allocation5 + $0xd0] sm:$0xff]
        %v2873 = vld [vmem:[#allocation5 + $0xd8] sm:$0xff]
        %v2874 = vld [vmem:[#allocation5 + $0xe0] sm:$0xff]
        %v2875 = vld [vmem:[#allocation5 + $0xe8] sm:$0xff]
        %v2876 = vld [vmem:[#allocation5 + $0xf0] sm:$0xff]
        %v2877 = vld [vmem:[#allocation5 + $0xf8] sm:$0xff]
        %v2878 = vld [vmem:[%s10] sm:$0x3]
        %v2880 = vlaneseq
        %v2881 = vshrl.u32 %v2880, 7
        %v2882 = vsub.s32 0, %v2881
        %v2883 = vrot.slane %v2878, %v2882
        %v2884 = vlaneseq
        %v2885 = vshrl.u32 %v2884, 7
        %v2886 = vsub.s32 1, %v2885
        %v2887 = vrot.slane %v2878, %v2886
        %2890 = vmatprep.subr.mxu0 %v2847
        %2891 = vmatpush1.msra.mxu0 %v2846
        %2892 = vmatprep.subr.mxu0 %v2849
        %2893 = vmatpush1.msra.mxu0 %v2848
        %2894 = vmatprep.subr.mxu0 %v2851
        %2895 = vmatpush1.msra.mxu0 %v2850
        %2896 = vmatprep.subr.mxu0 %v2853
        %2897 = vmatpush1.msra.mxu0 %v2852
        %2898 = vmatprep.subr.mxu0 %v2855
        %2899 = vmatpush1.msra.mxu0 %v2854
        %2900 = vmatprep.subr.mxu0 %v2857
        %2901 = vmatpush1.msra.mxu0 %v2856
        %2902 = vmatprep.subr.mxu0 %v2859
        %2903 = vmatpush1.msra.mxu0 %v2858
        %2904 = vmatprep.subr.mxu0 %v2861
        %2905 = vmatpush1.msra.mxu0 %v2860
        %2906 = vmatprep.subr.mxu0 %v2863
        %2907 = vmatpush1.msra.mxu0 %v2862
        %2908 = vmatprep.subr.mxu0 %v2865
        %2909 = vmatpush1.msra.mxu0 %v2864
        %2910 = vmatprep.subr.mxu0 %v2867
        %2911 = vmatpush1.msra.mxu0 %v2866
        %2912 = vmatprep.subr.mxu0 %v2869
        %2913 = vmatpush1.msra.mxu0 %v2868
        %2914 = vmatprep.subr.mxu0 %v2871
        %2915 = vmatpush1.msra.mxu0 %v2870
        %2916 = vmatprep.subr.mxu0 %v2873
        %2917 = vmatpush1.msra.mxu0 %v2872
        %2918 = vmatprep.subr.mxu0 %v2875
        %2919 = vmatpush1.msra.mxu0 %v2874
        %2920 = vmatprep.subr.mxu0 %v2877
        %2921 = vmatpush1.msra.mxu0 %v2876
        %2922 = vmatprep.subr.mxu0 0.0
        %2923 = vmatpush1.msra.mxu0 0.0
        %2924 = vmatprep.subr.mxu0 0.0
        %2925 = vmatpush1.msra.mxu0 0.0
        %2926 = vmatprep.subr.mxu0 0.0
        %2927 = vmatpush1.msra.mxu0 0.0
        %2928 = vmatprep.subr.mxu0 0.0
        %2929 = vmatpush1.msra.mxu0 0.0
        %2930 = vmatprep.subr.mxu0 0.0
        %2931 = vmatpush1.msra.mxu0 0.0
        %2932 = vmatprep.subr.mxu0 0.0
        %2933 = vmatpush1.msra.mxu0 0.0
        %2934 = vmatprep.subr.mxu0 0.0
        %2935 = vmatpush1.msra.mxu0 0.0
        %2936 = vmatprep.subr.mxu0 0.0
        %2937 = vmatpush1.msra.mxu0 0.0
        %2938 = vmatprep.subr.mxu0 0.0
        %2939 = vmatpush1.msra.mxu0 0.0
        %2940 = vmatprep.subr.mxu0 0.0
        %2941 = vmatpush1.msra.mxu0 0.0
        %2942 = vmatprep.subr.mxu0 0.0
        %2943 = vmatpush1.msra.mxu0 0.0
        %2944 = vmatprep.subr.mxu0 0.0
        %2945 = vmatpush1.msra.mxu0 0.0
        %2946 = vmatprep.subr.mxu0 0.0
        %2947 = vmatpush1.msra.mxu0 0.0
        %2948 = vmatprep.subr.mxu0 0.0
        %2949 = vmatpush1.msra.mxu0 0.0
        %2950 = vmatprep.subr.mxu0 0.0
        %2951 = vmatpush1.msra.mxu0 0.0
        %2952 = vmatprep.subr.mxu0 0.0
        %2953 = vmatpush1.msra.mxu0 0.0
        %2954 = vmatprep.mubr.f32.mxu0 0.0
        %2955 = vmatmul.mubr.f32.gmra.mrb[0].mxu0 %v2830
        %v2956 = vpop.f32.mrb[0].mxu0
        %v2957 = vadd.f32 %v2883, %v2956
        %v2958 = vpop.f32.mrb[0].mxu0
        %v2959 = vadd.f32 %v2887, %v2958
        %2960 = vmatprep.mubr.f32.mxu0 0.0
        %2961 = vmatmul.mubr.f32.gmra.mrb[0].mxu0 %v2831
        %v2962 = vpop.f32.mrb[0].mxu0
        %v2963 = vadd.f32 %v2883, %v2962
        %v2964 = vpop.f32.mrb[0].mxu0
        %v2965 = vadd.f32 %v2887, %v2964
        %2966 = vmatprep.mubr.f32.mxu0 0.0
        %2967 = vmatmul.mubr.f32.gmra.mrb[0].mxu0 %v2832
        %v2968 = vpop.f32.mrb[0].mxu0
        %v2969 = vadd.f32 %v2883, %v2968
        %v2970 = vpop.f32.mrb[0].mxu0
        %v2971 = vadd.f32 %v2887, %v2970
        %2972 = vmatprep.mubr.f32.mxu0 0.0
        %2973 = vmatmul.mubr.f32.gmra.mrb[0].mxu0 %v2833
        %v2974 = vpop.f32.mrb[0].mxu0
        %v2975 = vadd.f32 %v2883, %v2974
        %v2976 = vpop.f32.mrb[0].mxu0
        %v2977 = vadd.f32 %v2887, %v2976
        %2978 = vmatprep.mubr.f32.mxu0 0.0
        %2979 = vmatmul.mubr.f32.gmra.mrb[0].mxu0 %v2834
        %v2980 = vpop.f32.mrb[0].mxu0
        %v2981 = vadd.f32 %v2883, %v2980
        %v2982 = vpop.f32.mrb[0].mxu0
        %v2983 = vadd.f32 %v2887, %v2982
        %2984 = vmatprep.mubr.f32.mxu0 0.0
        %2985 = vmatmul.mubr.f32.gmra.mrb[0].mxu0 %v2835
        %v2986 = vpop.f32.mrb[0].mxu0
        %v2987 = vadd.f32 %v2883, %v2986
        %v2988 = vpop.f32.mrb[0].mxu0
        %v2989 = vadd.f32 %v2887, %v2988
        %2990 = vmatprep.mubr.f32.mxu0 0.0
        %2991 = vmatmul.mubr.f32.gmra.mrb[0].mxu0 %v2836
        %v2992 = vpop.f32.mrb[0].mxu0
        %v2993 = vadd.f32 %v2883, %v2992
        %v2994 = vpop.f32.mrb[0].mxu0
        %v2995 = vadd.f32 %v2887, %v2994
        %2996 = vmatprep.mubr.f32.mxu0 0.0
        %2997 = vmatmul.mubr.f32.gmra.mrb[0].mxu0 %v2837
        %v2998 = vpop.f32.mrb[0].mxu0
        %v2999 = vadd.f32 %v2883, %v2998
        %v3000 = vpop.f32.mrb[0].mxu0
        %v3001 = vadd.f32 %v2887, %v3000
        %3002 = vmatprep.mubr.f32.mxu0 0.0
        %3003 = vmatmul.mubr.f32.gmra.mrb[0].mxu0 %v2838
        %v3004 = vpop.f32.mrb[0].mxu0
        %v3005 = vadd.f32 %v2883, %v3004
        %v3006 = vpop.f32.mrb[0].mxu0
        %v3007 = vadd.f32 %v2887, %v3006
        %3008 = vmatprep.mubr.f32.mxu0 0.0
        %3009 = vmatmul.mubr.f32.gmra.mrb[0].mxu0 %v2839
        %v3010 = vpop.f32.mrb[0].mxu0
        %v3011 = vadd.f32 %v2883, %v3010
        %v3012 = vpop.f32.mrb[0].mxu0
        %v3013 = vadd.f32 %v2887, %v3012
        %3014 = vmatprep.mubr.f32.mxu0 0.0
        %3015 = vmatmul.mubr.f32.gmra.mrb[0].mxu0 %v2840
        %v3016 = vpop.f32.mrb[0].mxu0
        %v3017 = vadd.f32 %v2883, %v3016
        %v3018 = vpop.f32.mrb[0].mxu0
        %v3019 = vadd.f32 %v2887, %v3018
        %3020 = vmatprep.mubr.f32.mxu0 0.0
        %3021 = vmatmul.mubr.f32.gmra.mrb[0].mxu0 %v2841
        %v3022 = vpop.f32.mrb[0].mxu0
        %v3023 = vadd.f32 %v2883, %v3022
        %v3024 = vpop.f32.mrb[0].mxu0
        %v3025 = vadd.f32 %v2887, %v3024
        %3026 = vmatprep.mubr.f32.mxu0 0.0
        %3027 = vmatmul.mubr.f32.gmra.mrb[0].mxu0 %v2842
        %v3028 = vpop.f32.mrb[0].mxu0
        %v3029 = vadd.f32 %v2883, %v3028
        %v3030 = vpop.f32.mrb[0].mxu0
        %v3031 = vadd.f32 %v2887, %v3030
        %3032 = vmatprep.mubr.f32.mxu0 0.0
        %3033 = vmatmul.mubr.f32.gmra.mrb[0].mxu0 %v2843
        %v3034 = vpop.f32.mrb[0].mxu0
        %v3035 = vadd.f32 %v2883, %v3034
        %v3036 = vpop.f32.mrb[0].mxu0
        %v3037 = vadd.f32 %v2887, %v3036
        %3038 = vmatprep.mubr.f32.mxu0 0.0
        %3039 = vmatmul.mubr.f32.gmra.mrb[0].mxu0 %v2844
        %v3040 = vpop.f32.mrb[0].mxu0
        %v3041 = vadd.f32 %v2883, %v3040
        %v3042 = vpop.f32.mrb[0].mxu0
        %v3043 = vadd.f32 %v2887, %v3042
        %3044 = vmatprep.mubr.f32.mxu0 0.0
        %3045 = vmatmul.mubr.f32.gmra.mrb[0].mxu0 %v2845
        %v3046 = vpop.f32.mrb[0].mxu0
        %v3047 = vadd.f32 %v2883, %v3046
        %v3048 = vpop.f32.mrb[0].mxu0
        %v3049 = vadd.f32 %v2887, %v3048
        %3050 = vdwg.mxu0
        %v3051 = vmul.f32 %v2957, 0.5
        %v3052 = vmul.f32 %v2959, 0.5
        %v3053 = vmul.f32 %v2963, 0.5
        %v3054 = vmul.f32 %v2965, 0.5
        %v3055 = vmul.f32 %v2969, 0.5
        %v3056 = vmul.f32 %v2971, 0.5
        %v3057 = vmul.f32 %v2975, 0.5
        %v3058 = vmul.f32 %v2977, 0.5
        %v3059 = vmul.f32 %v2981, 0.5
        %v3060 = vmul.f32 %v2983, 0.5
        %v3061 = vmul.f32 %v2987, 0.5
        %v3062 = vmul.f32 %v2989, 0.5
        %v3063 = vmul.f32 %v2993, 0.5
        %v3064 = vmul.f32 %v2995, 0.5
        %v3065 = vmul.f32 %v2999, 0.5
        %v3066 = vmul.f32 %v3001, 0.5
        %v3067 = vmul.f32 %v3005, 0.5
        %v3068 = vmul.f32 %v3007, 0.5
        %v3069 = vmul.f32 %v3011, 0.5
        %v3070 = vmul.f32 %v3013, 0.5
        %v3071 = vmul.f32 %v3017, 0.5
        %v3072 = vmul.f32 %v3019, 0.5
        %v3073 = vmul.f32 %v3023, 0.5
        %v3074 = vmul.f32 %v3025, 0.5
        %v3075 = vmul.f32 %v3029, 0.5
        %v3076 = vmul.f32 %v3031, 0.5
        %v3077 = vmul.f32 %v3035, 0.5
        %v3078 = vmul.f32 %v3037, 0.5
        %v3079 = vmul.f32 %v3041, 0.5
        %v3080 = vmul.f32 %v3043, 0.5
        %v3081 = vmul.f32 %v3047, 0.5
        %v3082 = vmul.f32 %v3049, 0.5
        %v3083 = vmul.f32 %v2957, 0.70710677
        %v3084 = vmul.f32 %v2959, 0.70710677
        %v3085 = vmul.f32 %v2963, 0.70710677
        %v3086 = vmul.f32 %v2965, 0.70710677
        %v3087 = vmul.f32 %v2969, 0.70710677
        %v3088 = vmul.f32 %v2971, 0.70710677
        %v3089 = vmul.f32 %v2975, 0.70710677
        %v3090 = vmul.f32 %v2977, 0.70710677
        %v3091 = vmul.f32 %v2981, 0.70710677
        %v3092 = vmul.f32 %v2983, 0.70710677
        %v3093 = vmul.f32 %v2987, 0.70710677
        %v3094 = vmul.f32 %v2989, 0.70710677
        %v3095 = vmul.f32 %v2993, 0.70710677
        %v3096 = vmul.f32 %v2995, 0.70710677
        %v3097 = vmul.f32 %v2999, 0.70710677
        %v3098 = vmul.f32 %v3001, 0.70710677
        %v3099 = vmul.f32 %v3005, 0.70710677
        %v3100 = vmul.f32 %v3007, 0.70710677
        %v3101 = vmul.f32 %v3011, 0.70710677
        %v3102 = vmul.f32 %v3013, 0.70710677
        %v3103 = vmul.f32 %v3017, 0.70710677
        %v3104 = vmul.f32 %v3019, 0.70710677
        %v3105 = vmul.f32 %v3023, 0.70710677
        %v3106 = vmul.f32 %v3025, 0.70710677
        %v3107 = vmul.f32 %v3029, 0.70710677
        %v3108 = vmul.f32 %v3031, 0.70710677
        %v3109 = vmul.f32 %v3035, 0.70710677
        %v3110 = vmul.f32 %v3037, 0.70710677
        %v3111 = vmul.f32 %v3041, 0.70710677
        %v3112 = vmul.f32 %v3043, 0.70710677
        %v3113 = vmul.f32 %v3047, 0.70710677
        %v3114 = vmul.f32 %v3049, 0.70710677
        %v3115 = verf.f32.pop %v3083
        %v3116 = verf.f32.pop %v3084
        %v3117 = verf.f32.pop %v3085
        %v3118 = verf.f32.pop %v3086
        %v3119 = verf.f32.pop %v3087
        %v3120 = verf.f32.pop %v3088
        %v3121 = verf.f32.pop %v3089
        %v3122 = verf.f32.pop %v3090
        %v3123 = verf.f32.pop %v3091
        %v3124 = verf.f32.pop %v3092
        %v3125 = verf.f32.pop %v3093
        %v3126 = verf.f32.pop %v3094
        %v3127 = verf.f32.pop %v3095
        %v3128 = verf.f32.pop %v3096
        %v3129 = verf.f32.pop %v3097
        %v3130 = verf.f32.pop %v3098
        %v3131 = verf.f32.pop %v3099
        %v3132 = verf.f32.pop %v3100
        %v3133 = verf.f32.pop %v3101
        %v3134 = verf.f32.pop %v3102
        %v3135 = verf.f32.pop %v3103
        %v3136 = verf.f32.pop %v3104
        %v3137 = verf.f32.pop %v3105
        %v3138 = verf.f32.pop %v3106
        %v3139 = verf.f32.pop %v3107
        %v3140 = verf.f32.pop %v3108
        %v3141 = verf.f32.pop %v3109
        %v3142 = verf.f32.pop %v3110
        %v3143 = verf.f32.pop %v3111
        %v3144 = verf.f32.pop %v3112
        %v3145 = verf.f32.pop %v3113
        %v3146 = verf.f32.pop %v3114
        %v3147 = vadd.f32 %v3115, 1.0
        %v3148 = vadd.f32 %v3116, 1.0
        %v3149 = vadd.f32 %v3117, 1.0
        %v3150 = vadd.f32 %v3118, 1.0
        %v3151 = vadd.f32 %v3119, 1.0
        %v3152 = vadd.f32 %v3120, 1.0
        %v3153 = vadd.f32 %v3121, 1.0
        %v3154 = vadd.f32 %v3122, 1.0
        %v3155 = vadd.f32 %v3123, 1.0
        %v3156 = vadd.f32 %v3124, 1.0
        %v3157 = vadd.f32 %v3125, 1.0
        %v3158 = vadd.f32 %v3126, 1.0
        %v3159 = vadd.f32 %v3127, 1.0
        %v3160 = vadd.f32 %v3128, 1.0
        %v3161 = vadd.f32 %v3129, 1.0
        %v3162 = vadd.f32 %v3130, 1.0
        %v3163 = vadd.f32 %v3131, 1.0
        %v3164 = vadd.f32 %v3132, 1.0
        %v3165 = vadd.f32 %v3133, 1.0
        %v3166 = vadd.f32 %v3134, 1.0
        %v3167 = vadd.f32 %v3135, 1.0
        %v3168 = vadd.f32 %v3136, 1.0
        %v3169 = vadd.f32 %v3137, 1.0
        %v3170 = vadd.f32 %v3138, 1.0
        %v3171 = vadd.f32 %v3139, 1.0
        %v3172 = vadd.f32 %v3140, 1.0
        %v3173 = vadd.f32 %v3141, 1.0
        %v3174 = vadd.f32 %v3142, 1.0
        %v3175 = vadd.f32 %v3143, 1.0
        %v3176 = vadd.f32 %v3144, 1.0
        %v3177 = vadd.f32 %v3145, 1.0
        %v3178 = vadd.f32 %v3146, 1.0
        %v3179 = vmul.f32 %v3051, %v3147
        %v3180 = vmul.f32 %v3052, %v3148
        %v3181 = vmul.f32 %v3053, %v3149
        %v3182 = vmul.f32 %v3054, %v3150
        %v3183 = vmul.f32 %v3055, %v3151
        %v3184 = vmul.f32 %v3056, %v3152
        %v3185 = vmul.f32 %v3057, %v3153
        %v3186 = vmul.f32 %v3058, %v3154
        %v3187 = vmul.f32 %v3059, %v3155
        %v3188 = vmul.f32 %v3060, %v3156
        %v3189 = vmul.f32 %v3061, %v3157
        %v3190 = vmul.f32 %v3062, %v3158
        %v3191 = vmul.f32 %v3063, %v3159
        %v3192 = vmul.f32 %v3064, %v3160
        %v3193 = vmul.f32 %v3065, %v3161
        %v3194 = vmul.f32 %v3066, %v3162
        %v3195 = vmul.f32 %v3067, %v3163
        %v3196 = vmul.f32 %v3068, %v3164
        %v3197 = vmul.f32 %v3069, %v3165
        %v3198 = vmul.f32 %v3070, %v3166
        %v3199 = vmul.f32 %v3071, %v3167
        %v3200 = vmul.f32 %v3072, %v3168
        %v3201 = vmul.f32 %v3073, %v3169
        %v3202 = vmul.f32 %v3074, %v3170
        %v3203 = vmul.f32 %v3075, %v3171
        %v3204 = vmul.f32 %v3076, %v3172
        %v3205 = vmul.f32 %v3077, %v3173
        %v3206 = vmul.f32 %v3078, %v3174
        %v3207 = vmul.f32 %v3079, %v3175
        %v3208 = vmul.f32 %v3080, %v3176
        %v3209 = vmul.f32 %v3081, %v3177
        %v3210 = vmul.f32 %v3082, %v3178
        %v3211 = vld [vmem:[#allocation7] sm:$0xff]
        %v3212 = vld [vmem:[#allocation7 + $0x8] sm:$0xff]
        %v3213 = vld [vmem:[#allocation7 + $0x10] sm:$0xff]
        %v3214 = vld [vmem:[#allocation7 + $0x18] sm:$0xff]
        %v3215 = vld [vmem:[#allocation7 + $0x20] sm:$0xff]
        %v3216 = vld [vmem:[#allocation7 + $0x28] sm:$0xff]
        %v3217 = vld [vmem:[#allocation7 + $0x30] sm:$0xff]
        %v3218 = vld [vmem:[#allocation7 + $0x38] sm:$0xff]
        %v3219 = vld [vmem:[#allocation7 + $0x40] sm:$0xff]
        %v3220 = vld [vmem:[#allocation7 + $0x48] sm:$0xff]
        %v3221 = vld [vmem:[#allocation7 + $0x50] sm:$0xff]
        %v3222 = vld [vmem:[#allocation7 + $0x58] sm:$0xff]
        %v3223 = vld [vmem:[#allocation7 + $0x60] sm:$0xff]
        %v3224 = vld [vmem:[#allocation7 + $0x68] sm:$0xff]
        %v3225 = vld [vmem:[#allocation7 + $0x70] sm:$0xff]
        %v3226 = vld [vmem:[#allocation7 + $0x78] sm:$0xff]
        %v3227 = vld [vmem:[#allocation7 + $0x80] sm:$0xff]
        %v3228 = vld [vmem:[#allocation7 + $0x88] sm:$0xff]
        %v3229 = vld [vmem:[#allocation7 + $0x90] sm:$0xff]
        %v3230 = vld [vmem:[#allocation7 + $0x98] sm:$0xff]
        %v3231 = vld [vmem:[#allocation7 + $0xa0] sm:$0xff]
        %v3232 = vld [vmem:[#allocation7 + $0xa8] sm:$0xff]
        %v3233 = vld [vmem:[#allocation7 + $0xb0] sm:$0xff]
        %v3234 = vld [vmem:[#allocation7 + $0xb8] sm:$0xff]
        %v3235 = vld [vmem:[#allocation7 + $0xc0] sm:$0xff]
        %v3236 = vld [vmem:[#allocation7 + $0xc8] sm:$0xff]
        %v3237 = vld [vmem:[#allocation7 + $0xd0] sm:$0xff]
        %v3238 = vld [vmem:[#allocation7 + $0xd8] sm:$0xff]
        %v3239 = vld [vmem:[#allocation7 + $0xe0] sm:$0xff]
        %v3240 = vld [vmem:[#allocation7 + $0xe8] sm:$0xff]
        %v3241 = vld [vmem:[#allocation7 + $0xf0] sm:$0xff]
        %v3242 = vld [vmem:[#allocation7 + $0xf8] sm:$0xff]
        %v3243 = vld [vmem:[%s12] sm:$0x1]
        %v3245 = vlaneseq
        %v3246 = vshrl.u32 %v3245, 7
        %v3247 = vsub.s32 0, %v3246
        %v3248 = vrot.slane %v3243, %v3247
        %3250 = vmatprep.subr.mxu0 0.0
        %3251 = vmatpush1.msra.mxu0 %v3211
        %3252 = vmatprep.subr.mxu0 0.0
        %3253 = vmatpush1.msra.mxu0 %v3212
        %3254 = vmatprep.subr.mxu0 0.0
        %3255 = vmatpush1.msra.mxu0 %v3213
        %3256 = vmatprep.subr.mxu0 0.0
        %3257 = vmatpush1.msra.mxu0 %v3214
        %3258 = vmatprep.subr.mxu0 0.0
        %3259 = vmatpush1.msra.mxu0 %v3215
        %3260 = vmatprep.subr.mxu0 0.0
        %3261 = vmatpush1.msra.mxu0 %v3216
        %3262 = vmatprep.subr.mxu0 0.0
        %3263 = vmatpush1.msra.mxu0 %v3217
        %3264 = vmatprep.subr.mxu0 0.0
        %3265 = vmatpush1.msra.mxu0 %v3218
        %3266 = vmatprep.subr.mxu0 0.0
        %3267 = vmatpush1.msra.mxu0 %v3219
        %3268 = vmatprep.subr.mxu0 0.0
        %3269 = vmatpush1.msra.mxu0 %v3220
        %3270 = vmatprep.subr.mxu0 0.0
        %3271 = vmatpush1.msra.mxu0 %v3221
        %3272 = vmatprep.subr.mxu0 0.0
        %3273 = vmatpush1.msra.mxu0 %v3222
        %3274 = vmatprep.subr.mxu0 0.0
        %3275 = vmatpush1.msra.mxu0 %v3223
        %3276 = vmatprep.subr.mxu0 0.0
        %3277 = vmatpush1.msra.mxu0 %v3224
        %3278 = vmatprep.subr.mxu0 0.0
        %3279 = vmatpush1.msra.mxu0 %v3225
        %3280 = vmatprep.subr.mxu0 0.0
        %3281 = vmatpush1.msra.mxu0 %v3226
        %3282 = vmatprep.subr.mxu0 0.0
        %3283 = vmatpush1.msra.mxu0 %v3227
        %3284 = vmatprep.subr.mxu0 0.0
        %3285 = vmatpush1.msra.mxu0 %v3228
        %3286 = vmatprep.subr.mxu0 0.0
        %3287 = vmatpush1.msra.mxu0 %v3229
        %3288 = vmatprep.subr.mxu0 0.0
        %3289 = vmatpush1.msra.mxu0 %v3230
        %3290 = vmatprep.subr.mxu0 0.0
        %3291 = vmatpush1.msra.mxu0 %v3231
        %3292 = vmatprep.subr.mxu0 0.0
        %3293 = vmatpush1.msra.mxu0 %v3232
        %3294 = vmatprep.subr.mxu0 0.0
        %3295 = vmatpush1.msra.mxu0 %v3233
        %3296 = vmatprep.subr.mxu0 0.0
        %3297 = vmatpush1.msra.mxu0 %v3234
        %3298 = vmatprep.subr.mxu0 0.0
        %3299 = vmatpush1.msra.mxu0 %v3235
        %3300 = vmatprep.subr.mxu0 0.0
        %3301 = vmatpush1.msra.mxu0 %v3236
        %3302 = vmatprep.subr.mxu0 0.0
        %3303 = vmatpush1.msra.mxu0 %v3237
        %3304 = vmatprep.subr.mxu0 0.0
        %3305 = vmatpush1.msra.mxu0 %v3238
        %3306 = vmatprep.subr.mxu0 0.0
        %3307 = vmatpush1.msra.mxu0 %v3239
        %3308 = vmatprep.subr.mxu0 0.0
        %3309 = vmatpush1.msra.mxu0 %v3240
        %3310 = vmatprep.subr.mxu0 0.0
        %3311 = vmatpush1.msra.mxu0 %v3241
        %3312 = vmatprep.subr.mxu0 0.0
        %3313 = vmatpush1.msra.mxu0 %v3242
        %3314 = vmatprep.mubr.f32.mxu0 %v3180
        %3315 = vmatmul.mubr.f32.gmra.mrb[0].mxu0 %v3179
        %v3316 = vpop.f32.mrb[0].mxu0
        %v3317 = vadd.f32 %v3248, %v3316
        %v3318 = vpop.f32.mrb[0].mxu0
        %3319 = vmatprep.mubr.f32.mxu0 %v3182
        %3320 = vmatmul.mubr.f32.gmra.mrb[0].mxu0 %v3181
        %v3321 = vpop.f32.mrb[0].mxu0
        %v3322 = vadd.f32 %v3248, %v3321
        %v3323 = vpop.f32.mrb[0].mxu0
        %3324 = vmatprep.mubr.f32.mxu0 %v3184
        %3325 = vmatmul.mubr.f32.gmra.mrb[0].mxu0 %v3183
        %v3326 = vpop.f32.mrb[0].mxu0
        %v3327 = vadd.f32 %v3248, %v3326
        %v3328 = vpop.f32.mrb[0].mxu0
        %3329 = vmatprep.mubr.f32.mxu0 %v3186
        %3330 = vmatmul.mubr.f32.gmra.mrb[0].mxu0 %v3185
        %v3331 = vpop.f32.mrb[0].mxu0
        %v3332 = vadd.f32 %v3248, %v3331
        %v3333 = vpop.f32.mrb[0].mxu0
        %3334 = vmatprep.mubr.f32.mxu0 %v3188
        %3335 = vmatmul.mubr.f32.gmra.mrb[0].mxu0 %v3187
        %v3336 = vpop.f32.mrb[0].mxu0
        %v3337 = vadd.f32 %v3248, %v3336
        %v3338 = vpop.f32.mrb[0].mxu0
        %3339 = vmatprep.mubr.f32.mxu0 %v3190
        %3340 = vmatmul.mubr.f32.gmra.mrb[0].mxu0 %v3189
        %v3341 = vpop.f32.mrb[0].mxu0
        %v3342 = vadd.f32 %v3248, %v3341
        %v3343 = vpop.f32.mrb[0].mxu0
        %3344 = vmatprep.mubr.f32.mxu0 %v3192
        %3345 = vmatmul.mubr.f32.gmra.mrb[0].mxu0 %v3191
        %v3346 = vpop.f32.mrb[0].mxu0
        %v3347 = vadd.f32 %v3248, %v3346
        %v3348 = vpop.f32.mrb[0].mxu0
        %3349 = vmatprep.mubr.f32.mxu0 %v3194
        %3350 = vmatmul.mubr.f32.gmra.mrb[0].mxu0 %v3193
        %v3351 = vpop.f32.mrb[0].mxu0
        %v3352 = vadd.f32 %v3248, %v3351
        %v3353 = vpop.f32.mrb[0].mxu0
        %3354 = vmatprep.mubr.f32.mxu0 %v3196
        %3355 = vmatmul.mubr.f32.gmra.mrb[0].mxu0 %v3195
        %v3356 = vpop.f32.mrb[0].mxu0
        %v3357 = vadd.f32 %v3248, %v3356
        %v3358 = vpop.f32.mrb[0].mxu0
        %3359 = vmatprep.mubr.f32.mxu0 %v3198
        %3360 = vmatmul.mubr.f32.gmra.mrb[0].mxu0 %v3197
        %v3361 = vpop.f32.mrb[0].mxu0
        %v3362 = vadd.f32 %v3248, %v3361
        %v3363 = vpop.f32.mrb[0].mxu0
        %3364 = vmatprep.mubr.f32.mxu0 %v3200
        %3365 = vmatmul.mubr.f32.gmra.mrb[0].mxu0 %v3199
        %v3366 = vpop.f32.mrb[0].mxu0
        %v3367 = vadd.f32 %v3248, %v3366
        %v3368 = vpop.f32.mrb[0].mxu0
        %3369 = vmatprep.mubr.f32.mxu0 %v3202
        %3370 = vmatmul.mubr.f32.gmra.mrb[0].mxu0 %v3201
        %v3371 = vpop.f32.mrb[0].mxu0
        %v3372 = vadd.f32 %v3248, %v3371
        %v3373 = vpop.f32.mrb[0].mxu0
        %3374 = vmatprep.mubr.f32.mxu0 %v3204
        %3375 = vmatmul.mubr.f32.gmra.mrb[0].mxu0 %v3203
        %v3376 = vpop.f32.mrb[0].mxu0
        %v3377 = vadd.f32 %v3248, %v3376
        %v3378 = vpop.f32.mrb[0].mxu0
        %3379 = vmatprep.mubr.f32.mxu0 %v3206
        %3380 = vmatmul.mubr.f32.gmra.mrb[0].mxu0 %v3205
        %v3381 = vpop.f32.mrb[0].mxu0
        %v3382 = vadd.f32 %v3248, %v3381
        %v3383 = vpop.f32.mrb[0].mxu0
        %3384 = vmatprep.mubr.f32.mxu0 %v3208
        %3385 = vmatmul.mubr.f32.gmra.mrb[0].mxu0 %v3207
        %v3386 = vpop.f32.mrb[0].mxu0
        %v3387 = vadd.f32 %v3248, %v3386
        %v3388 = vpop.f32.mrb[0].mxu0
        %3389 = vmatprep.mubr.f32.mxu0 %v3210
        %3390 = vmatmul.mubr.f32.gmra.mrb[0].mxu0 %v3209
        %v3391 = vpop.f32.mrb[0].mxu0
        %v3392 = vadd.f32 %v3248, %v3391
        %v3393 = vpop.f32.mrb[0].mxu0
        %3394 = vdwg.mxu0
        %v3395 = vadd.f32 %v2608, %v3317
        %v3396 = vadd.f32 %v2609, %v3322
        %v3397 = vadd.f32 %v2610, %v3327
        %v3398 = vadd.f32 %v2611, %v3332
        %v3399 = vadd.f32 %v2612, %v3337
        %v3400 = vadd.f32 %v2613, %v3342
        %v3401 = vadd.f32 %v2614, %v3347
        %v3402 = vadd.f32 %v2615, %v3352
        %v3403 = vadd.f32 %v2616, %v3357
        %v3404 = vadd.f32 %v2617, %v3362
        %v3405 = vadd.f32 %v2618, %v3367
        %v3406 = vadd.f32 %v2619, %v3372
        %v3407 = vadd.f32 %v2620, %v3377
        %v3408 = vadd.f32 %v2621, %v3382
        %v3409 = vadd.f32 %v2622, %v3387
        %v3410 = vadd.f32 %v2623, %v3392
        %3411 = vst [vmem:[%s488] sm:$0xff] %v3395
        %3412 = vst [vmem:[%s488 + $0x8] sm:$0xff] %v3396
        %3413 = vst [vmem:[%s488 + $0x10] sm:$0xff] %v3397
        %3414 = vst [vmem:[%s488 + $0x18] sm:$0xff] %v3398
        %3415 = vst [vmem:[%s488 + $0x20] sm:$0xff] %v3399
        %3416 = vst [vmem:[%s488 + $0x28] sm:$0xff] %v3400
        %3417 = vst [vmem:[%s488 + $0x30] sm:$0xff] %v3401
        %3418 = vst [vmem:[%s488 + $0x38] sm:$0xff] %v3402
        %3419 = vst [vmem:[%s488 + $0x40] sm:$0xff] %v3403
        %3420 = vst [vmem:[%s488 + $0x48] sm:$0xff] %v3404
        %3421 = vst [vmem:[%s488 + $0x50] sm:$0xff] %v3405
        %3422 = vst [vmem:[%s488 + $0x58] sm:$0xff] %v3406
        %3423 = vst [vmem:[%s488 + $0x60] sm:$0xff] %v3407
        %3424 = vst [vmem:[%s488 + $0x68] sm:$0xff] %v3408
        %3425 = vst [vmem:[%s488 + $0x70] sm:$0xff] %v3409
        %3426 = vst [vmem:[%s488 + $0x78] sm:$0xff] %v3410
        %s3427 = sand.u32 %s317, 1
        %s3428 = scalar_lea.sflag [#allocation4], %s3427
        %s3429 = sand.u32 %s317, 1
        %s3430 = smul.addr %s3429, 128
        %s3431 = scalar_lea.vmem [#allocation8], %s3430
        // Predicated region
        $region85: #{tpu_custom_call.1} parent=71 // pred_check
          %p3432 = pneg %p327
        $region86: #{tpu_custom_call.1} parent=71 // pred_check_branch
          %3434 = sbr.rel (%p3432) target = $region88
        $region87: #{tpu_custom_call.1} parent=71 // pred_region
          %s3435 = smul.u32 8, %s31
          %s3437 = ssub.s32 2048, 2048
          %3438 = vsyncadd %s3428, %s3437
          %s3439 = smul.addr %s3435, 2
          %s3440 = smul.addr %s3439, 128
          %s3441 = scalar_lea.hbm %s13, %s3440
          %s3442 = sshll.u32 %s3431, 4
          %s3443 = int_to_ptr.vmem [resolvable:$true] %s3442
          %3448 = dma.vmem_to_hbm [thread:$0]  %s3443, 2048, %s3441, %s3428, 128, 128, 8
        $region88: #{tpu_custom_call.1} parent=71 // pred_fallthru
          _
      $region72: #{tpu_custom_call.1} parent=5 // pred_fallthru
        _
      %p3449 = scmp.le.s32.totalorder 2, %s26
      // Predicated region
      $region89: #{tpu_custom_call.1} parent=5 // pred_check
        %p3450 = pneg %p3449
      $region90: #{tpu_custom_call.1} parent=5 // pred_check_branch
        %3452 = sbr.rel (%p3450) target = $region92
      $region91: #{tpu_custom_call.1} parent=5 // pred_region
        %s3453 = ssub.s32 %s26, 2
        // Predicated region
        $region93: #{tpu_custom_call.1} parent=91 // pred_check
          %p3454 = pneg %p333
        $region94: #{tpu_custom_call.1} parent=91 // pred_check_branch
          %3456 = sbr.rel (%p3454) target = $region96
        $region95: #{tpu_custom_call.1} parent=91 // pred_region
          %s3457 = sand.u32 %s318, 1
          %s3458 = scalar_lea.sflag [#allocation4], %s3457
          %s3459 = sand.u32 %s318, 1
          %s3460 = smul.addr %s3459, 128
          %s3461 = scalar_lea.vmem [#allocation8], %s3460
          %3462 = dma.done %s3458, 2048
        $region96: #{tpu_custom_call.1} parent=91 // pred_fallthru
          _
      $region92: #{tpu_custom_call.1} parent=5 // pred_fallthru
        _
    $region6: #{tpu_custom_call.1} parent=1 // loop_footer
      %s30 = sadd.s32 1, %s26
    $region7: #{tpu_custom_call.1} parent=1 // loop_footer_branch
      %25 = sbr.rel target = $region3
    $region8: #{tpu_custom_call.1} parent=1 // loop_exit
      _
    %3463 = vsyncpa [#allocation3], 1
    %s3464 = scalar_lea.sflag [#allocation3], 1
    %3465 = vsyncpa %s3464, 1
    %3466 = vsyncpa [#allocation6], 1
    %3467 = vsyncpa [#allocation4], 1
    %s3468 = scalar_lea.sflag [#allocation4], 1
    %3469 = vsyncpa %s3468, 1

</llo_original>
